<compile_context>
chip_gen: v7x
topology: tpu7x:2x2x1
jax: 0.10.0
libtpu: 0.0.40
codegen_flags: <defaults>
</compile_context>

<pallas_src>
import functools

import jax
import jax.numpy as jnp
from jax.experimental import pallas as pl
from jax.experimental.pallas import tpu as pltpu


# Logical (PyTorch) dims and 128-lane-aligned padded dims.
D_IN, D_HID, D_OUT = 500, 1000, 784
DP_IN, DP_HID, DP_OUT = 512, 1024, 896

TM_MAX = 512               # max batch-tile rows
_STEP_OVERHEAD_ROWS = 64   # ~0.35us grid-step overhead, in row-equivalents


def _round_up(n, m):
    return ((n + m - 1) // m) * m


def _choose_tm(batch):
    """Pick the batch tile: one tile for small B, else the tile in
    {512,256,128,64} minimizing padded-row waste + per-step overhead."""
    bp8 = _round_up(max(batch, 1), 8)
    if bp8 <= TM_MAX:
        return bp8                                  # single tile, <=7 wasted rows
    best_tm, best_cost = None, None
    for tm in (512, 256, 128, 64):
        bp = _round_up(bp8, tm)
        cost = (bp - bp8) + (bp // tm) * _STEP_OVERHEAD_ROWS
        if best_cost is None or cost < best_cost:
            best_tm, best_cost = tm, cost
    return best_tm


def attacker_kernel(x_ref, w1_ref, b1_ref, w2_ref, b2_ref, o_ref):
    # x_ref:  (TM, 512)   bf16    w1_ref: (512, 1024) bf16   b1_ref: (1, 1024) f32
    # w2_ref: (1024, 896) bf16    b2_ref: (1, 896)    f32    o_ref:  (TM, 896)
    h = jnp.dot(x_ref[...], w1_ref[...], preferred_element_type=jnp.float32)
    h = jnp.maximum(h + b1_ref[...], 0.0)                       # bias + ReLU in f32
    y = jnp.dot(h.astype(jnp.bfloat16), w2_ref[...],
                preferred_element_type=jnp.float32)
    o_ref[...] = (y + b2_ref[...]).astype(o_ref.dtype)


def prepare_params(w1, b1, w2, b2):
    """Pad params once to 128-aligned shapes; weights in bf16, biases in f32."""
    w1p = jnp.zeros((DP_IN, DP_HID), jnp.bfloat16).at[:D_IN, :D_HID].set(
        w1.astype(jnp.bfloat16))
    b1p = jnp.zeros((1, DP_HID), jnp.float32).at[:, :D_HID].set(
        b1.astype(jnp.float32))
    w2p = jnp.zeros((DP_HID, DP_OUT), jnp.bfloat16).at[:D_HID, :D_OUT].set(
        w2.astype(jnp.bfloat16))
    b2p = jnp.zeros((1, DP_OUT), jnp.float32).at[:, :D_OUT].set(
        b2.astype(jnp.float32))
    return w1p, b1p, w2p, b2p


def prepare_input(x):
    """Pre-pad x to the kernel's (Bp, 512) bf16 layout (small-B fast path)."""
    B = x.shape[0]
    tm = _choose_tm(B)
    Bp = _round_up(_round_up(B, 8), tm)
    xp = jnp.zeros((Bp, DP_IN), jnp.bfloat16).at[:B, :D_IN].set(
        x.astype(jnp.bfloat16))
    return xp, tm


def _call_kernel(xp, w1p, b1p, w2p, b2p, *, tm, out_dtype):
    Bp = xp.shape[0]
    resident = lambda shape: pl.BlockSpec(shape, lambda i: (0,) * len(shape))

    flops = 2 * Bp * (DP_IN * DP_HID + DP_HID * DP_OUT)
    out_bytes = Bp * DP_OUT * jnp.dtype(out_dtype).itemsize
    bytes_accessed = (xp.size * 2 + out_bytes                 # x (bf16) + out
                      + w1p.size * 2 + w2p.size * 2           # weights (bf16)
                      + b1p.size * 4 + b2p.size * 4)          # biases (f32)

    return pl.pallas_call(
        attacker_kernel,
        out_shape=jax.ShapeDtypeStruct((Bp, DP_OUT), out_dtype),
        grid=(Bp // tm,),
        in_specs=[
            pl.BlockSpec((tm, DP_IN), lambda i: (i, 0)),      # batch-tiled x
            resident((DP_IN, DP_HID)),                        # VMEM-resident W1
            resident((1, DP_HID)),                            # b1
            resident((DP_HID, DP_OUT)),                       # VMEM-resident W2
            resident((1, DP_OUT)),                            # b2
        ],
        out_specs=pl.BlockSpec((tm, DP_OUT), lambda i: (i, 0)),
        compiler_params=pltpu.CompilerParams(
            dimension_semantics=("parallel",)),               # shard batch tiles
        cost_estimate=pl.CostEstimate(
            flops=flops, transcendentals=0, bytes_accessed=bytes_accessed),
    )(xp, w1p, b1p, w2p, b2p)


@functools.partial(jax.jit, static_argnames=("tm", "out_dtype"))
def attacker_forward_padded(xp, w1p, b1p, w2p, b2p, *, tm, out_dtype=jnp.float32):
    """Fast path: pre-padded (Bp, 512) bf16 in, padded (Bp, 896) out (no extra HLOs)."""
    return _call_kernel(xp, w1p, b1p, w2p, b2p, tm=tm, out_dtype=out_dtype)


@functools.partial(jax.jit, static_argnames=("tm", "out_dtype"))
def _attacker_forward_impl(x, w1p, b1p, w2p, b2p, *, tm, out_dtype):
    B = x.shape[0]
    Bp = _round_up(_round_up(B, 8), tm)
    xp = jnp.zeros((Bp, DP_IN), jnp.bfloat16).at[:B, :D_IN].set(
        x.astype(jnp.bfloat16))
    out = _call_kernel(xp, w1p, b1p, w2p, b2p, tm=tm, out_dtype=out_dtype)
    return out[:B, :D_OUT]


def attacker_forward(x, w1p, b1p, w2p, b2p, out_dtype=jnp.float32):
    """x: (B, 500) float -> (B, 784). Params from prepare_params()."""
    tm = _choose_tm(x.shape[0])
    return _attacker_forward_impl(x, w1p, b1p, w2p, b2p, tm=tm, out_dtype=out_dtype)


def init_params(key):
    """Deterministic init mimicking nn.Linear's uniform(-1/sqrt(fan_in), ...) ranges."""
    k1, k2, k3, k4 = jax.random.split(key, 4)
    bound1 = 1.0 / (D_IN ** 0.5)
    bound2 = 1.0 / (D_HID ** 0.5)
    w1 = jax.random.uniform(k1, (D_IN, D_HID), jnp.float32, -bound1, bound1)
    b1 = jax.random.uniform(k2, (1, D_HID), jnp.float32, -bound1, bound1)
    w2 = jax.random.uniform(k3, (D_HID, D_OUT), jnp.float32, -bound2, bound2)
    b2 = jax.random.uniform(k4, (1, D_OUT), jnp.float32, -bound2, bound2)
    return w1, b1, w2, b2


def _reference(x, w1, b1, w2, b2):
    return jnp.maximum(x @ w1 + b1, 0.0) @ w2 + b2


if __name__ == "__main__":
    key = jax.random.PRNGKey(0)
    kx1, kx2, kp = jax.random.split(key, 3)

    w1, b1, w2, b2 = init_params(kp)
    params = prepare_params(w1, b1, w2, b2)

    # Small batch (single tile).
    B1 = 8
    x1 = jax.random.normal(kx1, (B1, D_IN), dtype=jnp.float32)
    out1 = jax.block_until_ready(attacker_forward(x1, *params))
    ref1 = _reference(x1, w1, b1, w2, b2)
    assert out1.shape == (B1, D_OUT)
    # bf16 weights/activations -> looser tolerance than pure f32.
    assert jnp.allclose(out1, ref1, atol=2e-2, rtol=2e-2)

    # Larger, non-multiple batch: now a single 304-row tile (was padded to 512).
    B2 = 300
    x2 = jax.random.normal(kx2, (B2, D_IN), dtype=jnp.float32)
    out2 = jax.block_until_ready(attacker_forward(x2, *params))
    ref2 = _reference(x2, w1, b1, w2, b2)
    assert out2.shape == (B2, D_OUT)
    assert jnp.allclose(out2, ref2, atol=2e-2, rtol=2e-2)

    # Pre-padded fast path: no pad / slice HLOs around the kernel.
    xp2, tm2 = prepare_input(x2)
    outp = jax.block_until_ready(attacker_forward_padded(xp2, *params, tm=tm2))
    assert outp.shape[1] == DP_OUT
    assert jnp.allclose(outp[:B2, :D_OUT], ref2, atol=2e-2, rtol=2e-2)

    print("KERNEL_OK")
</pallas_src>

<mosaic_0001>
module attributes {stable_mosaic.version = 11 : i64} {
  func.func @attacker_kernel(%arg0: i32, %arg1: memref<8x512xbf16, #tpu.memory_space<vmem>>, %arg2: memref<512x1024xbf16, #tpu.memory_space<vmem>>, %arg3: memref<1x1024xf32, #tpu.memory_space<vmem>>, %arg4: memref<1024x896xbf16, #tpu.memory_space<vmem>>, %arg5: memref<1x896xf32, #tpu.memory_space<vmem>>, %arg6: memref<8x896xf32, #tpu.memory_space<vmem>>) attributes {dimension_semantics = [#tpu.dimension_semantics<parallel>], iteration_bounds = array<i64: 1>, scalar_prefetch = 0 : i64, scratch_operands = 0 : i64, tpu.core_type = #tpu.core_type<tc>, window_params = [{transform_indices = @transform_0, window_bounds = array<i64: 8, 512>}, {pipeline_mode = #tpu.pipeline_mode<synchronous>, transform_indices = @transform_1, window_bounds = array<i64: 512, 1024>}, {pipeline_mode = #tpu.pipeline_mode<synchronous>, transform_indices = @transform_2, window_bounds = array<i64: 1, 1024>}, {pipeline_mode = #tpu.pipeline_mode<synchronous>, transform_indices = @transform_3, window_bounds = array<i64: 1024, 896>}, {pipeline_mode = #tpu.pipeline_mode<synchronous>, transform_indices = @transform_4, window_bounds = array<i64: 1, 896>}, {transform_indices = @transform_5, window_bounds = array<i64: 8, 896>}]} {
    %c0 = arith.constant 0 : index
    %c0_0 = arith.constant 0 : index
    %0 = vector.load %arg1[%c0, %c0_0] : memref<8x512xbf16, #tpu.memory_space<vmem>>, vector<8x512xbf16>
    %c0_1 = arith.constant 0 : index
    %c0_2 = arith.constant 0 : index
    %1 = vector.load %arg2[%c0_1, %c0_2] : memref<512x1024xbf16, #tpu.memory_space<vmem>>, vector<512x1024xbf16>
    %cst = arith.constant dense<0.000000e+00> : vector<8x1024xf32>
    %2 = tpu.matmul %0, %1, %cst {dimension_numbers = #tpu.dot_dimension_numbers<[1], [0], [0], [1], [0, 0, 1, 1], [], []>} : vector<8x512xbf16>, vector<512x1024xbf16>, vector<8x1024xf32> -> vector<8x1024xf32>
    %c0_3 = arith.constant 0 : index
    %c0_4 = arith.constant 0 : index
    %3 = vector.load %arg3[%c0_3, %c0_4] : memref<1x1024xf32, #tpu.memory_space<vmem>>, vector<1x1024xf32>
    %4 = vector.broadcast %3 : vector<1x1024xf32> to vector<8x1024xf32>
    %5 = arith.addf %2, %4 : vector<8x1024xf32>
    %cst_5 = arith.constant 0.000000e+00 : f32
    %6 = vector.broadcast %cst_5 : f32 to vector<8x1024xf32>
    %7 = arith.maximumf %5, %6 : vector<8x1024xf32>
    %8 = arith.truncf %7 : vector<8x1024xf32> to vector<8x1024xbf16>
    %c0_6 = arith.constant 0 : index
    %c0_7 = arith.constant 0 : index
    %9 = vector.load %arg4[%c0_6, %c0_7] : memref<1024x896xbf16, #tpu.memory_space<vmem>>, vector<1024x896xbf16>
    %cst_8 = arith.constant dense<0.000000e+00> : vector<8x896xf32>
    %10 = tpu.matmul %8, %9, %cst_8 {dimension_numbers = #tpu.dot_dimension_numbers<[1], [0], [0], [1], [0, 0, 1, 1], [], []>} : vector<8x1024xbf16>, vector<1024x896xbf16>, vector<8x896xf32> -> vector<8x896xf32>
    %c0_9 = arith.constant 0 : index
    %c0_10 = arith.constant 0 : index
    %11 = vector.load %arg5[%c0_9, %c0_10] : memref<1x896xf32, #tpu.memory_space<vmem>>, vector<1x896xf32>
    %12 = vector.broadcast %11 : vector<1x896xf32> to vector<8x896xf32>
    %13 = arith.addf %10, %12 : vector<8x896xf32>
    %c0_11 = arith.constant 0 : index
    %c0_12 = arith.constant 0 : index
    %14 = vector.load %arg6[%c0_11, %c0_12] : memref<8x896xf32, #tpu.memory_space<vmem>>, vector<8x896xf32>
    tpu.vector_store %arg6[%c0_11, %c0_12], %13 {strides = array<i32>} : memref<8x896xf32, #tpu.memory_space<vmem>>, vector<8x896xf32>,
    return
  }
  func.func @transform_0(%arg0: i32) -> (i32, i32) {
    %c0_i32 = arith.constant 0 : i32
    %c0_i32_0 = arith.constant 0 : i32
    return %arg0, %c0_i32 : i32, i32
  }
  func.func @transform_1(%arg0: i32) -> (i32, i32) {
    %c0_i32 = arith.constant 0 : i32
    %c0_i32_0 = arith.constant 0 : i32
    %c0_i32_1 = arith.constant 0 : i32
    return %c0_i32, %c0_i32_0 : i32, i32
  }
  func.func @transform_2(%arg0: i32) -> (i32, i32) {
    %c0_i32 = arith.constant 0 : i32
    %c0_i32_0 = arith.constant 0 : i32
    %c0_i32_1 = arith.constant 0 : i32
    return %c0_i32, %c0_i32_0 : i32, i32
  }
  func.func @transform_3(%arg0: i32) -> (i32, i32) {
    %c0_i32 = arith.constant 0 : i32
    %c0_i32_0 = arith.constant 0 : i32
    %c0_i32_1 = arith.constant 0 : i32
    return %c0_i32, %c0_i32_0 : i32, i32
  }
  func.func @transform_4(%arg0: i32) -> (i32, i32) {
    %c0_i32 = arith.constant 0 : i32
    %c0_i32_0 = arith.constant 0 : i32
    %c0_i32_1 = arith.constant 0 : i32
    return %c0_i32, %c0_i32_0 : i32, i32
  }
  func.func @transform_5(%arg0: i32) -> (i32, i32) {
    %c0_i32 = arith.constant 0 : i32
    %c0_i32_0 = arith.constant 0 : i32
    return %arg0, %c0_i32 : i32, i32
  }
}

</mosaic_0001>

<llo_original>
// kernel: _attacker_forward_impl.1
$region0: #{_attacker_forward_impl.1}
  #allocation0 [shape = 'u32[]', space=smem, size = 0x4, offset = 0x4, fixed_abs, tag = 'smem constant byte address 0x4 - core index']
  #allocation1 [shape = 'u32[144,128]{1,0:T(1,128)}', space=vmem, size = 0x12000, scoped, tag = 'internal scratch']
  %s0 = inlined_call_operand.vmem [shape: bf16[8,512], index: 0, kind: input, shape index: {}]
  %s1 = inlined_call_operand.hbm [shape: bf16[512,1024], index: 1, kind: input, shape index: {}]
  %s2 = inlined_call_operand.hbm [shape: f32[1,1024], index: 2, kind: input, shape index: {}]
  %s3 = inlined_call_operand.hbm [shape: bf16[1024,896], index: 3, kind: input, shape index: {}]
  %s4 = inlined_call_operand.hbm [shape: f32[1,896], index: 4, kind: input, shape index: {}]
  %s5 = inlined_call_operand.hbm [shape: f32[8,896], index: 5, kind: output, shape index: {}]
  %s6 = sld [smem:[#allocation0]]
  $region46: #{_attacker_forward_impl.1} parent=0
    _
  %s8 = ssub.s32 1, %s6
  %s9 = scalar_select 0, %s8, %s6
  $region1: #{_attacker_forward_impl.1} parent=0
    #allocation2 [shape = 'u8[1048576]{0}', space=vmem, size = 0x100000, scoped, tag = 'input window, operand 1, single buffered']
    #allocation3 [shape = 's32[1]{0}', space=sflag, size = 0x4, scoped, tag = 'scoped memory for _attacker_forward_impl.1']
    #allocation4 [shape = 's32[1]{0}', space=sflag, size = 0x4, scoped, tag = 'scoped memory for _attacker_forward_impl.1']
    #allocation5 [shape = 'u8[4096]{0}', space=vmem, size = 0x1000, scoped, tag = 'input window, operand 2, single buffered']
    #allocation6 [shape = 's32[1]{0}', space=sflag, size = 0x4, scoped, tag = 'scoped memory for _attacker_forward_impl.1']
    #allocation7 [shape = 'u8[1835008]{0}', space=vmem, size = 0x1c0000, scoped, tag = 'input window, operand 3, single buffered']
    #allocation8 [shape = 'u8[3584]{0}', space=vmem, size = 0x1000, scoped, tag = 'input window, operand 4, single buffered']
    #allocation9 [shape = 's32[1]{0}', space=sflag, size = 0x4, scoped, tag = 'scoped memory for _attacker_forward_impl.1']
    #allocation10 [shape = 'u8[28672]{0}', space=vmem, size = 0x7000, scoped, tag = 'output window, operand 0, single buffered']
    %10 = vsyncpa [#allocation3], 0
    %11 = vsyncpa [#allocation6], 0
    %12 = vsyncpa [#allocation9], 0
    %13 = vsyncpa [#allocation4], 0
    // Predicated region
    $region2: #{_attacker_forward_impl.1} parent=1 // pred_check
      _
    $region3: #{_attacker_forward_impl.1} parent=1 // pred_check_branch
      %15 = sbr.rel (0) target = $region5
    $region4: #{_attacker_forward_impl.1} parent=1 // pred_region
      _
    $region5: #{_attacker_forward_impl.1} parent=1 // pred_fallthru
      _
    // Predicated region
    $region6: #{_attacker_forward_impl.1} parent=1 // pred_check
      _
    $region7: #{_attacker_forward_impl.1} parent=1 // pred_check_branch
      %17 = sbr.rel (0) target = $region9
    $region8: #{_attacker_forward_impl.1} parent=1 // pred_region
      %s19 = ssub.s32 32768, 32768
      %20 = vsyncadd [#allocation3], %s19
      %s21 = sshll.u32 [#allocation2], 4
      %s22 = int_to_ptr.vmem [resolvable:$true] %s21
      %27 = dma.hbm_to_vmem [thread:$0]  %s1, 32768, %s22, [#allocation3], 512, 512, 32
    $region9: #{_attacker_forward_impl.1} parent=1 // pred_fallthru
      _
    // Predicated region
    $region10: #{_attacker_forward_impl.1} parent=1 // pred_check
      _
    $region11: #{_attacker_forward_impl.1} parent=1 // pred_check_branch
      %29 = sbr.rel (0) target = $region13
    $region12: #{_attacker_forward_impl.1} parent=1 // pred_region
      %s31 = ssub.s32 128, 128
      %32 = vsyncadd [#allocation6], %s31
      %s34 = sshll.u32 [#allocation5], 4
      %s35 = int_to_ptr.vmem [resolvable:$true] %s34
      %37 = dma.hbm_to_vmem [thread:$0]  %s2, 128, %s35, [#allocation6]
    $region13: #{_attacker_forward_impl.1} parent=1 // pred_fallthru
      _
    // Predicated region
    $region14: #{_attacker_forward_impl.1} parent=1 // pred_check
      _
    $region15: #{_attacker_forward_impl.1} parent=1 // pred_check_branch
      %39 = sbr.rel (0) target = $region17
    $region16: #{_attacker_forward_impl.1} parent=1 // pred_region
      %s41 = ssub.s32 57344, 57344
      %42 = vsyncadd [#allocation6], %s41
      %s43 = sshll.u32 [#allocation7], 4
      %s44 = int_to_ptr.vmem [resolvable:$true] %s43
      %49 = dma.hbm_to_vmem [thread:$0]  %s3, 57344, %s44, [#allocation6], 448, 448, 28
    $region17: #{_attacker_forward_impl.1} parent=1 // pred_fallthru
      _
    // Predicated region
    $region18: #{_attacker_forward_impl.1} parent=1 // pred_check
      _
    $region19: #{_attacker_forward_impl.1} parent=1 // pred_check_branch
      %51 = sbr.rel (0) target = $region21
    $region20: #{_attacker_forward_impl.1} parent=1 // pred_region
      %s53 = ssub.s32 112, 112
      %54 = vsyncadd [#allocation9], %s53
      %s56 = sshll.u32 [#allocation8], 4
      %s57 = int_to_ptr.vmem [resolvable:$true] %s56
      %59 = dma.hbm_to_vmem [thread:$0]  %s4, 112, %s57, [#allocation9]
    $region21: #{_attacker_forward_impl.1} parent=1 // pred_fallthru
      _
    // Predicated region
    $region22: #{_attacker_forward_impl.1} parent=1 // pred_check
      _
    $region23: #{_attacker_forward_impl.1} parent=1 // pred_check_branch
      %61 = sbr.rel (0) target = $region25
    $region24: #{_attacker_forward_impl.1} parent=1 // pred_region
      %62 = dma.done [#allocation3], 32768
    $region25: #{_attacker_forward_impl.1} parent=1 // pred_fallthru
      _
    // Predicated region
    $region26: #{_attacker_forward_impl.1} parent=1 // pred_check
      _
    $region27: #{_attacker_forward_impl.1} parent=1 // pred_check_branch
      %64 = sbr.rel (0) target = $region29
    $region28: #{_attacker_forward_impl.1} parent=1 // pred_region
      %65 = dma.done [#allocation6], 128
    $region29: #{_attacker_forward_impl.1} parent=1 // pred_fallthru
      _
    // Predicated region
    $region30: #{_attacker_forward_impl.1} parent=1 // pred_check
      _
    $region31: #{_attacker_forward_impl.1} parent=1 // pred_check_branch
      %67 = sbr.rel (0) target = $region33
    $region32: #{_attacker_forward_impl.1} parent=1 // pred_region
      %68 = dma.done [#allocation6], 57344
    $region33: #{_attacker_forward_impl.1} parent=1 // pred_fallthru
      _
    // Predicated region
    $region34: #{_attacker_forward_impl.1} parent=1 // pred_check
      _
    $region35: #{_attacker_forward_impl.1} parent=1 // pred_check_branch
      %70 = sbr.rel (0) target = $region37
    $region36: #{_attacker_forward_impl.1} parent=1 // pred_region
      %71 = dma.done [#allocation9], 112
    $region37: #{_attacker_forward_impl.1} parent=1 // pred_fallthru
      _
    %v73 = vld [vmem:[%s0] sm:$0xff]
    %v74 = vld [vmem:[%s0 + $0x8] sm:$0xff]
    %v75 = vld [vmem:[#allocation2] sm:$0xff]
    %v76 = vld [vmem:[#allocation2 + $0x8] sm:$0xff]
    %v77 = vld [vmem:[#allocation2 + $0x10] sm:$0xff]
    %v78 = vld [vmem:[#allocation2 + $0x18] sm:$0xff]
    %v79 = vld [vmem:[#allocation2 + $0x20] sm:$0xff]
    %v80 = vld [vmem:[#allocation2 + $0x28] sm:$0xff]
    %v81 = vld [vmem:[#allocation2 + $0x30] sm:$0xff]
    %v82 = vld [vmem:[#allocation2 + $0x38] sm:$0xff]
    %v83 = vld [vmem:[#allocation2 + $0x40] sm:$0xff]
    %v84 = vld [vmem:[#allocation2 + $0x48] sm:$0xff]
    %v85 = vld [vmem:[#allocation2 + $0x50] sm:$0xff]
    %v86 = vld [vmem:[#allocation2 + $0x58] sm:$0xff]
    %v87 = vld [vmem:[#allocation2 + $0x60] sm:$0xff]
    %v88 = vld [vmem:[#allocation2 + $0x68] sm:$0xff]
    %v89 = vld [vmem:[#allocation2 + $0x70] sm:$0xff]
    %v90 = vld [vmem:[#allocation2 + $0x78] sm:$0xff]
    %v91 = vld [vmem:[#allocation2 + $0x80] sm:$0xff]
    %v92 = vld [vmem:[#allocation2 + $0x88] sm:$0xff]
    %v93 = vld [vmem:[#allocation2 + $0x90] sm:$0xff]
    %v94 = vld [vmem:[#allocation2 + $0x98] sm:$0xff]
    %v95 = vld [vmem:[#allocation2 + $0xa0] sm:$0xff]
    %v96 = vld [vmem:[#allocation2 + $0xa8] sm:$0xff]
    %v97 = vld [vmem:[#allocation2 + $0xb0] sm:$0xff]
    %v98 = vld [vmem:[#allocation2 + $0xb8] sm:$0xff]
    %v99 = vld [vmem:[#allocation2 + $0xc0] sm:$0xff]
    %v100 = vld [vmem:[#allocation2 + $0xc8] sm:$0xff]
    %v101 = vld [vmem:[#allocation2 + $0xd0] sm:$0xff]
    %v102 = vld [vmem:[#allocation2 + $0xd8] sm:$0xff]
    %v103 = vld [vmem:[#allocation2 + $0xe0] sm:$0xff]
    %v104 = vld [vmem:[#allocation2 + $0xe8] sm:$0xff]
    %v105 = vld [vmem:[#allocation2 + $0xf0] sm:$0xff]
    %v106 = vld [vmem:[#allocation2 + $0xf8] sm:$0xff]
    %v107 = vld [vmem:[#allocation2 + $0x100] sm:$0xff]
    %v108 = vld [vmem:[#allocation2 + $0x108] sm:$0xff]
    %v109 = vld [vmem:[#allocation2 + $0x110] sm:$0xff]
    %v110 = vld [vmem:[#allocation2 + $0x118] sm:$0xff]
    %v111 = vld [vmem:[#allocation2 + $0x120] sm:$0xff]
    %v112 = vld [vmem:[#allocation2 + $0x128] sm:$0xff]
    %v113 = vld [vmem:[#allocation2 + $0x130] sm:$0xff]
    %v114 = vld [vmem:[#allocation2 + $0x138] sm:$0xff]
    %v115 = vld [vmem:[#allocation2 + $0x140] sm:$0xff]
    %v116 = vld [vmem:[#allocation2 + $0x148] sm:$0xff]
    %v117 = vld [vmem:[#allocation2 + $0x150] sm:$0xff]
    %v118 = vld [vmem:[#allocation2 + $0x158] sm:$0xff]
    %v119 = vld [vmem:[#allocation2 + $0x160] sm:$0xff]
    %v120 = vld [vmem:[#allocation2 + $0x168] sm:$0xff]
    %v121 = vld [vmem:[#allocation2 + $0x170] sm:$0xff]
    %v122 = vld [vmem:[#allocation2 + $0x178] sm:$0xff]
    %v123 = vld [vmem:[#allocation2 + $0x180] sm:$0xff]
    %v124 = vld [vmem:[#allocation2 + $0x188] sm:$0xff]
    %v125 = vld [vmem:[#allocation2 + $0x190] sm:$0xff]
    %v126 = vld [vmem:[#allocation2 + $0x198] sm:$0xff]
    %v127 = vld [vmem:[#allocation2 + $0x1a0] sm:$0xff]
    %v128 = vld [vmem:[#allocation2 + $0x1a8] sm:$0xff]
    %v129 = vld [vmem:[#allocation2 + $0x1b0] sm:$0xff]
    %v130 = vld [vmem:[#allocation2 + $0x1b8] sm:$0xff]
    %v131 = vld [vmem:[#allocation2 + $0x1c0] sm:$0xff]
    %v132 = vld [vmem:[#allocation2 + $0x1c8] sm:$0xff]
    %v133 = vld [vmem:[#allocation2 + $0x1d0] sm:$0xff]
    %v134 = vld [vmem:[#allocation2 + $0x1d8] sm:$0xff]
    %v135 = vld [vmem:[#allocation2 + $0x1e0] sm:$0xff]
    %v136 = vld [vmem:[#allocation2 + $0x1e8] sm:$0xff]
    %v137 = vld [vmem:[#allocation2 + $0x1f0] sm:$0xff]
    %v138 = vld [vmem:[#allocation2 + $0x1f8] sm:$0xff]
    %v139 = vld [vmem:[#allocation2 + $0x200] sm:$0xff]
    %v140 = vld [vmem:[#allocation2 + $0x208] sm:$0xff]
    %v141 = vld [vmem:[#allocation2 + $0x210] sm:$0xff]
    %v142 = vld [vmem:[#allocation2 + $0x218] sm:$0xff]
    %v143 = vld [vmem:[#allocation2 + $0x220] sm:$0xff]
    %v144 = vld [vmem:[#allocation2 + $0x228] sm:$0xff]
    %v145 = vld [vmem:[#allocation2 + $0x230] sm:$0xff]
    %v146 = vld [vmem:[#allocation2 + $0x238] sm:$0xff]
    %v147 = vld [vmem:[#allocation2 + $0x240] sm:$0xff]
    %v148 = vld [vmem:[#allocation2 + $0x248] sm:$0xff]
    %v149 = vld [vmem:[#allocation2 + $0x250] sm:$0xff]
    %v150 = vld [vmem:[#allocation2 + $0x258] sm:$0xff]
    %v151 = vld [vmem:[#allocation2 + $0x260] sm:$0xff]
    %v152 = vld [vmem:[#allocation2 + $0x268] sm:$0xff]
    %v153 = vld [vmem:[#allocation2 + $0x270] sm:$0xff]
    %v154 = vld [vmem:[#allocation2 + $0x278] sm:$0xff]
    %v155 = vld [vmem:[#allocation2 + $0x280] sm:$0xff]
    %v156 = vld [vmem:[#allocation2 + $0x288] sm:$0xff]
    %v157 = vld [vmem:[#allocation2 + $0x290] sm:$0xff]
    %v158 = vld [vmem:[#allocation2 + $0x298] sm:$0xff]
    %v159 = vld [vmem:[#allocation2 + $0x2a0] sm:$0xff]
    %v160 = vld [vmem:[#allocation2 + $0x2a8] sm:$0xff]
    %v161 = vld [vmem:[#allocation2 + $0x2b0] sm:$0xff]
    %v162 = vld [vmem:[#allocation2 + $0x2b8] sm:$0xff]
    %v163 = vld [vmem:[#allocation2 + $0x2c0] sm:$0xff]
    %v164 = vld [vmem:[#allocation2 + $0x2c8] sm:$0xff]
    %v165 = vld [vmem:[#allocation2 + $0x2d0] sm:$0xff]
    %v166 = vld [vmem:[#allocation2 + $0x2d8] sm:$0xff]
    %v167 = vld [vmem:[#allocation2 + $0x2e0] sm:$0xff]
    %v168 = vld [vmem:[#allocation2 + $0x2e8] sm:$0xff]
    %v169 = vld [vmem:[#allocation2 + $0x2f0] sm:$0xff]
    %v170 = vld [vmem:[#allocation2 + $0x2f8] sm:$0xff]
    %v171 = vld [vmem:[#allocation2 + $0x300] sm:$0xff]
    %v172 = vld [vmem:[#allocation2 + $0x308] sm:$0xff]
    %v173 = vld [vmem:[#allocation2 + $0x310] sm:$0xff]
    %v174 = vld [vmem:[#allocation2 + $0x318] sm:$0xff]
    %v175 = vld [vmem:[#allocation2 + $0x320] sm:$0xff]
    %v176 = vld [vmem:[#allocation2 + $0x328] sm:$0xff]
    %v177 = vld [vmem:[#allocation2 + $0x330] sm:$0xff]
    %v178 = vld [vmem:[#allocation2 + $0x338] sm:$0xff]
    %v179 = vld [vmem:[#allocation2 + $0x340] sm:$0xff]
    %v180 = vld [vmem:[#allocation2 + $0x348] sm:$0xff]
    %v181 = vld [vmem:[#allocation2 + $0x350] sm:$0xff]
    %v182 = vld [vmem:[#allocation2 + $0x358] sm:$0xff]
    %v183 = vld [vmem:[#allocation2 + $0x360] sm:$0xff]
    %v184 = vld [vmem:[#allocation2 + $0x368] sm:$0xff]
    %v185 = vld [vmem:[#allocation2 + $0x370] sm:$0xff]
    %v186 = vld [vmem:[#allocation2 + $0x378] sm:$0xff]
    %v187 = vld [vmem:[#allocation2 + $0x380] sm:$0xff]
    %v188 = vld [vmem:[#allocation2 + $0x388] sm:$0xff]
    %v189 = vld [vmem:[#allocation2 + $0x390] sm:$0xff]
    %v190 = vld [vmem:[#allocation2 + $0x398] sm:$0xff]
    %v191 = vld [vmem:[#allocation2 + $0x3a0] sm:$0xff]
    %v192 = vld [vmem:[#allocation2 + $0x3a8] sm:$0xff]
    %v193 = vld [vmem:[#allocation2 + $0x3b0] sm:$0xff]
    %v194 = vld [vmem:[#allocation2 + $0x3b8] sm:$0xff]
    %v195 = vld [vmem:[#allocation2 + $0x3c0] sm:$0xff]
    %v196 = vld [vmem:[#allocation2 + $0x3c8] sm:$0xff]
    %v197 = vld [vmem:[#allocation2 + $0x3d0] sm:$0xff]
    %v198 = vld [vmem:[#allocation2 + $0x3d8] sm:$0xff]
    %v199 = vld [vmem:[#allocation2 + $0x3e0] sm:$0xff]
    %v200 = vld [vmem:[#allocation2 + $0x3e8] sm:$0xff]
    %v201 = vld [vmem:[#allocation2 + $0x3f0] sm:$0xff]
    %v202 = vld [vmem:[#allocation2 + $0x3f8] sm:$0xff]
    %v203 = vld [vmem:[#allocation2 + $0x400] sm:$0xff]
    %v204 = vld [vmem:[#allocation2 + $0x408] sm:$0xff]
    %v205 = vld [vmem:[#allocation2 + $0x410] sm:$0xff]
    %v206 = vld [vmem:[#allocation2 + $0x418] sm:$0xff]
    %v207 = vld [vmem:[#allocation2 + $0x420] sm:$0xff]
    %v208 = vld [vmem:[#allocation2 + $0x428] sm:$0xff]
    %v209 = vld [vmem:[#allocation2 + $0x430] sm:$0xff]
    %v210 = vld [vmem:[#allocation2 + $0x438] sm:$0xff]
    %v211 = vld [vmem:[#allocation2 + $0x440] sm:$0xff]
    %v212 = vld [vmem:[#allocation2 + $0x448] sm:$0xff]
    %v213 = vld [vmem:[#allocation2 + $0x450] sm:$0xff]
    %v214 = vld [vmem:[#allocation2 + $0x458] sm:$0xff]
    %v215 = vld [vmem:[#allocation2 + $0x460] sm:$0xff]
    %v216 = vld [vmem:[#allocation2 + $0x468] sm:$0xff]
    %v217 = vld [vmem:[#allocation2 + $0x470] sm:$0xff]
    %v218 = vld [vmem:[#allocation2 + $0x478] sm:$0xff]
    %v219 = vld [vmem:[#allocation2 + $0x480] sm:$0xff]
    %v220 = vld [vmem:[#allocation2 + $0x488] sm:$0xff]
    %v221 = vld [vmem:[#allocation2 + $0x490] sm:$0xff]
    %v222 = vld [vmem:[#allocation2 + $0x498] sm:$0xff]
    %v223 = vld [vmem:[#allocation2 + $0x4a0] sm:$0xff]
    %v224 = vld [vmem:[#allocation2 + $0x4a8] sm:$0xff]
    %v225 = vld [vmem:[#allocation2 + $0x4b0] sm:$0xff]
    %v226 = vld [vmem:[#allocation2 + $0x4b8] sm:$0xff]
    %v227 = vld [vmem:[#allocation2 + $0x4c0] sm:$0xff]
    %v228 = vld [vmem:[#allocation2 + $0x4c8] sm:$0xff]
    %v229 = vld [vmem:[#allocation2 + $0x4d0] sm:$0xff]
    %v230 = vld [vmem:[#allocation2 + $0x4d8] sm:$0xff]
    %v231 = vld [vmem:[#allocation2 + $0x4e0] sm:$0xff]
    %v232 = vld [vmem:[#allocation2 + $0x4e8] sm:$0xff]
    %v233 = vld [vmem:[#allocation2 + $0x4f0] sm:$0xff]
    %v234 = vld [vmem:[#allocation2 + $0x4f8] sm:$0xff]
    %v235 = vld [vmem:[#allocation2 + $0x500] sm:$0xff]
    %v236 = vld [vmem:[#allocation2 + $0x508] sm:$0xff]
    %v237 = vld [vmem:[#allocation2 + $0x510] sm:$0xff]
    %v238 = vld [vmem:[#allocation2 + $0x518] sm:$0xff]
    %v239 = vld [vmem:[#allocation2 + $0x520] sm:$0xff]
    %v240 = vld [vmem:[#allocation2 + $0x528] sm:$0xff]
    %v241 = vld [vmem:[#allocation2 + $0x530] sm:$0xff]
    %v242 = vld [vmem:[#allocation2 + $0x538] sm:$0xff]
    %v243 = vld [vmem:[#allocation2 + $0x540] sm:$0xff]
    %v244 = vld [vmem:[#allocation2 + $0x548] sm:$0xff]
    %v245 = vld [vmem:[#allocation2 + $0x550] sm:$0xff]
    %v246 = vld [vmem:[#allocation2 + $0x558] sm:$0xff]
    %v247 = vld [vmem:[#allocation2 + $0x560] sm:$0xff]
    %v248 = vld [vmem:[#allocation2 + $0x568] sm:$0xff]
    %v249 = vld [vmem:[#allocation2 + $0x570] sm:$0xff]
    %v250 = vld [vmem:[#allocation2 + $0x578] sm:$0xff]
    %v251 = vld [vmem:[#allocation2 + $0x580] sm:$0xff]
    %v252 = vld [vmem:[#allocation2 + $0x588] sm:$0xff]
    %v253 = vld [vmem:[#allocation2 + $0x590] sm:$0xff]
    %v254 = vld [vmem:[#allocation2 + $0x598] sm:$0xff]
    %v255 = vld [vmem:[#allocation2 + $0x5a0] sm:$0xff]
    %v256 = vld [vmem:[#allocation2 + $0x5a8] sm:$0xff]
    %v257 = vld [vmem:[#allocation2 + $0x5b0] sm:$0xff]
    %v258 = vld [vmem:[#allocation2 + $0x5b8] sm:$0xff]
    %v259 = vld [vmem:[#allocation2 + $0x5c0] sm:$0xff]
    %v260 = vld [vmem:[#allocation2 + $0x5c8] sm:$0xff]
    %v261 = vld [vmem:[#allocation2 + $0x5d0] sm:$0xff]
    %v262 = vld [vmem:[#allocation2 + $0x5d8] sm:$0xff]
    %v263 = vld [vmem:[#allocation2 + $0x5e0] sm:$0xff]
    %v264 = vld [vmem:[#allocation2 + $0x5e8] sm:$0xff]
    %v265 = vld [vmem:[#allocation2 + $0x5f0] sm:$0xff]
    %v266 = vld [vmem:[#allocation2 + $0x5f8] sm:$0xff]
    %v267 = vld [vmem:[#allocation2 + $0x600] sm:$0xff]
    %v268 = vld [vmem:[#allocation2 + $0x608] sm:$0xff]
    %v269 = vld [vmem:[#allocation2 + $0x610] sm:$0xff]
    %v270 = vld [vmem:[#allocation2 + $0x618] sm:$0xff]
    %v271 = vld [vmem:[#allocation2 + $0x620] sm:$0xff]
    %v272 = vld [vmem:[#allocation2 + $0x628] sm:$0xff]
    %v273 = vld [vmem:[#allocation2 + $0x630] sm:$0xff]
    %v274 = vld [vmem:[#allocation2 + $0x638] sm:$0xff]
    %v275 = vld [vmem:[#allocation2 + $0x640] sm:$0xff]
    %v276 = vld [vmem:[#allocation2 + $0x648] sm:$0xff]
    %v277 = vld [vmem:[#allocation2 + $0x650] sm:$0xff]
    %v278 = vld [vmem:[#allocation2 + $0x658] sm:$0xff]
    %v279 = vld [vmem:[#allocation2 + $0x660] sm:$0xff]
    %v280 = vld [vmem:[#allocation2 + $0x668] sm:$0xff]
    %v281 = vld [vmem:[#allocation2 + $0x670] sm:$0xff]
    %v282 = vld [vmem:[#allocation2 + $0x678] sm:$0xff]
    %v283 = vld [vmem:[#allocation2 + $0x680] sm:$0xff]
    %v284 = vld [vmem:[#allocation2 + $0x688] sm:$0xff]
    %v285 = vld [vmem:[#allocation2 + $0x690] sm:$0xff]
    %v286 = vld [vmem:[#allocation2 + $0x698] sm:$0xff]
    %v287 = vld [vmem:[#allocation2 + $0x6a0] sm:$0xff]
    %v288 = vld [vmem:[#allocation2 + $0x6a8] sm:$0xff]
    %v289 = vld [vmem:[#allocation2 + $0x6b0] sm:$0xff]
    %v290 = vld [vmem:[#allocation2 + $0x6b8] sm:$0xff]
    %v291 = vld [vmem:[#allocation2 + $0x6c0] sm:$0xff]
    %v292 = vld [vmem:[#allocation2 + $0x6c8] sm:$0xff]
    %v293 = vld [vmem:[#allocation2 + $0x6d0] sm:$0xff]
    %v294 = vld [vmem:[#allocation2 + $0x6d8] sm:$0xff]
    %v295 = vld [vmem:[#allocation2 + $0x6e0] sm:$0xff]
    %v296 = vld [vmem:[#allocation2 + $0x6e8] sm:$0xff]
    %v297 = vld [vmem:[#allocation2 + $0x6f0] sm:$0xff]
    %v298 = vld [vmem:[#allocation2 + $0x6f8] sm:$0xff]
    %v299 = vld [vmem:[#allocation2 + $0x700] sm:$0xff]
    %v300 = vld [vmem:[#allocation2 + $0x708] sm:$0xff]
    %v301 = vld [vmem:[#allocation2 + $0x710] sm:$0xff]
    %v302 = vld [vmem:[#allocation2 + $0x718] sm:$0xff]
    %v303 = vld [vmem:[#allocation2 + $0x720] sm:$0xff]
    %v304 = vld [vmem:[#allocation2 + $0x728] sm:$0xff]
    %v305 = vld [vmem:[#allocation2 + $0x730] sm:$0xff]
    %v306 = vld [vmem:[#allocation2 + $0x738] sm:$0xff]
    %v307 = vld [vmem:[#allocation2 + $0x740] sm:$0xff]
    %v308 = vld [vmem:[#allocation2 + $0x748] sm:$0xff]
    %v309 = vld [vmem:[#allocation2 + $0x750] sm:$0xff]
    %v310 = vld [vmem:[#allocation2 + $0x758] sm:$0xff]
    %v311 = vld [vmem:[#allocation2 + $0x760] sm:$0xff]
    %v312 = vld [vmem:[#allocation2 + $0x768] sm:$0xff]
    %v313 = vld [vmem:[#allocation2 + $0x770] sm:$0xff]
    %v314 = vld [vmem:[#allocation2 + $0x778] sm:$0xff]
    %v315 = vld [vmem:[#allocation2 + $0x780] sm:$0xff]
    %v316 = vld [vmem:[#allocation2 + $0x788] sm:$0xff]
    %v317 = vld [vmem:[#allocation2 + $0x790] sm:$0xff]
    %v318 = vld [vmem:[#allocation2 + $0x798] sm:$0xff]
    %v319 = vld [vmem:[#allocation2 + $0x7a0] sm:$0xff]
    %v320 = vld [vmem:[#allocation2 + $0x7a8] sm:$0xff]
    %v321 = vld [vmem:[#allocation2 + $0x7b0] sm:$0xff]
    %v322 = vld [vmem:[#allocation2 + $0x7b8] sm:$0xff]
    %v323 = vld [vmem:[#allocation2 + $0x7c0] sm:$0xff]
    %v324 = vld [vmem:[#allocation2 + $0x7c8] sm:$0xff]
    %v325 = vld [vmem:[#allocation2 + $0x7d0] sm:$0xff]
    %v326 = vld [vmem:[#allocation2 + $0x7d8] sm:$0xff]
    %v327 = vld [vmem:[#allocation2 + $0x7e0] sm:$0xff]
    %v328 = vld [vmem:[#allocation2 + $0x7e8] sm:$0xff]
    %v329 = vld [vmem:[#allocation2 + $0x7f0] sm:$0xff]
    %v330 = vld [vmem:[#allocation2 + $0x7f8] sm:$0xff]
    %v331 = vld [vmem:[#allocation5] sm:$0xff]
    %v333 = vlaneseq
    %v334 = vshrl.u32 %v333, 7
    %v335 = vsub.s32 0, %v334
    %v336 = vrot.slane %v331, %v335
    %v337 = vlaneseq
    %v338 = vshrl.u32 %v337, 7
    %v339 = vsub.s32 1, %v338
    %v340 = vrot.slane %v331, %v339
    %v341 = vlaneseq
    %v342 = vshrl.u32 %v341, 7
    %v343 = vsub.s32 2, %v342
    %v344 = vrot.slane %v331, %v343
    %v345 = vlaneseq
    %v346 = vshrl.u32 %v345, 7
    %v347 = vsub.s32 3, %v346
    %v348 = vrot.slane %v331, %v347
    %v349 = vlaneseq
    %v350 = vshrl.u32 %v349, 7
    %v351 = vsub.s32 4, %v350
    %v352 = vrot.slane %v331, %v351
    %v353 = vlaneseq
    %v354 = vshrl.u32 %v353, 7
    %v355 = vsub.s32 5, %v354
    %v356 = vrot.slane %v331, %v355
    %v357 = vlaneseq
    %v358 = vshrl.u32 %v357, 7
    %v359 = vsub.s32 6, %v358
    %v360 = vrot.slane %v331, %v359
    %v361 = vlaneseq
    %v362 = vshrl.u32 %v361, 7
    %v363 = vsub.s32 7, %v362
    %v364 = vrot.slane %v331, %v363
    %v375 = vunpack.c.l.b16 %v73
    %v376 = vunpack.c.h.b16 %v73
    %v377 = vunpack.c.l.b16 %v74
    %v378 = vunpack.c.h.b16 %v74
    %v379 = vpack.c.b16 %v375, %v375
    %v380 = vpack.c.b16 %v376, %v376
    %v381 = vpack.c.b16 %v377, %v377
    %v382 = vpack.c.b16 %v378, %v378
    %v643 = vunpack.c.l.b16 %v75
    %v644 = vunpack.c.h.b16 %v75
    %v645 = vunpack.c.l.b16 %v76
    %v646 = vunpack.c.h.b16 %v76
    %v647 = vunpack.c.l.b16 %v77
    %v648 = vunpack.c.h.b16 %v77
    %v649 = vunpack.c.l.b16 %v78
    %v650 = vunpack.c.h.b16 %v78
    %v651 = vunpack.c.l.b16 %v79
    %v652 = vunpack.c.h.b16 %v79
    %v653 = vunpack.c.l.b16 %v80
    %v654 = vunpack.c.h.b16 %v80
    %v655 = vunpack.c.l.b16 %v81
    %v656 = vunpack.c.h.b16 %v81
    %v657 = vunpack.c.l.b16 %v82
    %v658 = vunpack.c.h.b16 %v82
    %v659 = vunpack.c.l.b16 %v83
    %v660 = vunpack.c.h.b16 %v83
    %v661 = vunpack.c.l.b16 %v84
    %v662 = vunpack.c.h.b16 %v84
    %v663 = vunpack.c.l.b16 %v85
    %v664 = vunpack.c.h.b16 %v85
    %v665 = vunpack.c.l.b16 %v86
    %v666 = vunpack.c.h.b16 %v86
    %v667 = vunpack.c.l.b16 %v87
    %v668 = vunpack.c.h.b16 %v87
    %v669 = vunpack.c.l.b16 %v88
    %v670 = vunpack.c.h.b16 %v88
    %v671 = vunpack.c.l.b16 %v89
    %v672 = vunpack.c.h.b16 %v89
    %v673 = vunpack.c.l.b16 %v90
    %v674 = vunpack.c.h.b16 %v90
    %v675 = vunpack.c.l.b16 %v91
    %v676 = vunpack.c.h.b16 %v91
    %v677 = vunpack.c.l.b16 %v92
    %v678 = vunpack.c.h.b16 %v92
    %v679 = vunpack.c.l.b16 %v93
    %v680 = vunpack.c.h.b16 %v93
    %v681 = vunpack.c.l.b16 %v94
    %v682 = vunpack.c.h.b16 %v94
    %v683 = vunpack.c.l.b16 %v95
    %v684 = vunpack.c.h.b16 %v95
    %v685 = vunpack.c.l.b16 %v96
    %v686 = vunpack.c.h.b16 %v96
    %v687 = vunpack.c.l.b16 %v97
    %v688 = vunpack.c.h.b16 %v97
    %v689 = vunpack.c.l.b16 %v98
    %v690 = vunpack.c.h.b16 %v98
    %v691 = vunpack.c.l.b16 %v99
    %v692 = vunpack.c.h.b16 %v99
    %v693 = vunpack.c.l.b16 %v100
    %v694 = vunpack.c.h.b16 %v100
    %v695 = vunpack.c.l.b16 %v101
    %v696 = vunpack.c.h.b16 %v101
    %v697 = vunpack.c.l.b16 %v102
    %v698 = vunpack.c.h.b16 %v102
    %v699 = vunpack.c.l.b16 %v103
    %v700 = vunpack.c.h.b16 %v103
    %v701 = vunpack.c.l.b16 %v104
    %v702 = vunpack.c.h.b16 %v104
    %v703 = vunpack.c.l.b16 %v105
    %v704 = vunpack.c.h.b16 %v105
    %v705 = vunpack.c.l.b16 %v106
    %v706 = vunpack.c.h.b16 %v106
    %v707 = vunpack.c.l.b16 %v107
    %v708 = vunpack.c.h.b16 %v107
    %v709 = vunpack.c.l.b16 %v108
    %v710 = vunpack.c.h.b16 %v108
    %v711 = vunpack.c.l.b16 %v109
    %v712 = vunpack.c.h.b16 %v109
    %v713 = vunpack.c.l.b16 %v110
    %v714 = vunpack.c.h.b16 %v110
    %v715 = vunpack.c.l.b16 %v111
    %v716 = vunpack.c.h.b16 %v111
    %v717 = vunpack.c.l.b16 %v112
    %v718 = vunpack.c.h.b16 %v112
    %v719 = vunpack.c.l.b16 %v113
    %v720 = vunpack.c.h.b16 %v113
    %v721 = vunpack.c.l.b16 %v114
    %v722 = vunpack.c.h.b16 %v114
    %v723 = vunpack.c.l.b16 %v115
    %v724 = vunpack.c.h.b16 %v115
    %v725 = vunpack.c.l.b16 %v116
    %v726 = vunpack.c.h.b16 %v116
    %v727 = vunpack.c.l.b16 %v117
    %v728 = vunpack.c.h.b16 %v117
    %v729 = vunpack.c.l.b16 %v118
    %v730 = vunpack.c.h.b16 %v118
    %v731 = vunpack.c.l.b16 %v119
    %v732 = vunpack.c.h.b16 %v119
    %v733 = vunpack.c.l.b16 %v120
    %v734 = vunpack.c.h.b16 %v120
    %v735 = vunpack.c.l.b16 %v121
    %v736 = vunpack.c.h.b16 %v121
    %v737 = vunpack.c.l.b16 %v122
    %v738 = vunpack.c.h.b16 %v122
    %v739 = vunpack.c.l.b16 %v123
    %v740 = vunpack.c.h.b16 %v123
    %v741 = vunpack.c.l.b16 %v124
    %v742 = vunpack.c.h.b16 %v124
    %v743 = vunpack.c.l.b16 %v125
    %v744 = vunpack.c.h.b16 %v125
    %v745 = vunpack.c.l.b16 %v126
    %v746 = vunpack.c.h.b16 %v126
    %v747 = vunpack.c.l.b16 %v127
    %v748 = vunpack.c.h.b16 %v127
    %v749 = vunpack.c.l.b16 %v128
    %v750 = vunpack.c.h.b16 %v128
    %v751 = vunpack.c.l.b16 %v129
    %v752 = vunpack.c.h.b16 %v129
    %v753 = vunpack.c.l.b16 %v130
    %v754 = vunpack.c.h.b16 %v130
    %v755 = vunpack.c.l.b16 %v131
    %v756 = vunpack.c.h.b16 %v131
    %v757 = vunpack.c.l.b16 %v132
    %v758 = vunpack.c.h.b16 %v132
    %v759 = vunpack.c.l.b16 %v133
    %v760 = vunpack.c.h.b16 %v133
    %v761 = vunpack.c.l.b16 %v134
    %v762 = vunpack.c.h.b16 %v134
    %v763 = vunpack.c.l.b16 %v135
    %v764 = vunpack.c.h.b16 %v135
    %v765 = vunpack.c.l.b16 %v136
    %v766 = vunpack.c.h.b16 %v136
    %v767 = vunpack.c.l.b16 %v137
    %v768 = vunpack.c.h.b16 %v137
    %v769 = vunpack.c.l.b16 %v138
    %v770 = vunpack.c.h.b16 %v138
    %v771 = vunpack.c.l.b16 %v139
    %v772 = vunpack.c.h.b16 %v139
    %v773 = vunpack.c.l.b16 %v140
    %v774 = vunpack.c.h.b16 %v140
    %v775 = vunpack.c.l.b16 %v141
    %v776 = vunpack.c.h.b16 %v141
    %v777 = vunpack.c.l.b16 %v142
    %v778 = vunpack.c.h.b16 %v142
    %v779 = vunpack.c.l.b16 %v143
    %v780 = vunpack.c.h.b16 %v143
    %v781 = vunpack.c.l.b16 %v144
    %v782 = vunpack.c.h.b16 %v144
    %v783 = vunpack.c.l.b16 %v145
    %v784 = vunpack.c.h.b16 %v145
    %v785 = vunpack.c.l.b16 %v146
    %v786 = vunpack.c.h.b16 %v146
    %v787 = vunpack.c.l.b16 %v147
    %v788 = vunpack.c.h.b16 %v147
    %v789 = vunpack.c.l.b16 %v148
    %v790 = vunpack.c.h.b16 %v148
    %v791 = vunpack.c.l.b16 %v149
    %v792 = vunpack.c.h.b16 %v149
    %v793 = vunpack.c.l.b16 %v150
    %v794 = vunpack.c.h.b16 %v150
    %v795 = vunpack.c.l.b16 %v151
    %v796 = vunpack.c.h.b16 %v151
    %v797 = vunpack.c.l.b16 %v152
    %v798 = vunpack.c.h.b16 %v152
    %v799 = vunpack.c.l.b16 %v153
    %v800 = vunpack.c.h.b16 %v153
    %v801 = vunpack.c.l.b16 %v154
    %v802 = vunpack.c.h.b16 %v154
    %v803 = vunpack.c.l.b16 %v155
    %v804 = vunpack.c.h.b16 %v155
    %v805 = vunpack.c.l.b16 %v156
    %v806 = vunpack.c.h.b16 %v156
    %v807 = vunpack.c.l.b16 %v157
    %v808 = vunpack.c.h.b16 %v157
    %v809 = vunpack.c.l.b16 %v158
    %v810 = vunpack.c.h.b16 %v158
    %v811 = vunpack.c.l.b16 %v159
    %v812 = vunpack.c.h.b16 %v159
    %v813 = vunpack.c.l.b16 %v160
    %v814 = vunpack.c.h.b16 %v160
    %v815 = vunpack.c.l.b16 %v161
    %v816 = vunpack.c.h.b16 %v161
    %v817 = vunpack.c.l.b16 %v162
    %v818 = vunpack.c.h.b16 %v162
    %v819 = vunpack.c.l.b16 %v163
    %v820 = vunpack.c.h.b16 %v163
    %v821 = vunpack.c.l.b16 %v164
    %v822 = vunpack.c.h.b16 %v164
    %v823 = vunpack.c.l.b16 %v165
    %v824 = vunpack.c.h.b16 %v165
    %v825 = vunpack.c.l.b16 %v166
    %v826 = vunpack.c.h.b16 %v166
    %v827 = vunpack.c.l.b16 %v167
    %v828 = vunpack.c.h.b16 %v167
    %v829 = vunpack.c.l.b16 %v168
    %v830 = vunpack.c.h.b16 %v168
    %v831 = vunpack.c.l.b16 %v169
    %v832 = vunpack.c.h.b16 %v169
    %v833 = vunpack.c.l.b16 %v170
    %v834 = vunpack.c.h.b16 %v170
    %v835 = vunpack.c.l.b16 %v171
    %v836 = vunpack.c.h.b16 %v171
    %v837 = vunpack.c.l.b16 %v172
    %v838 = vunpack.c.h.b16 %v172
    %v839 = vunpack.c.l.b16 %v173
    %v840 = vunpack.c.h.b16 %v173
    %v841 = vunpack.c.l.b16 %v174
    %v842 = vunpack.c.h.b16 %v174
    %v843 = vunpack.c.l.b16 %v175
    %v844 = vunpack.c.h.b16 %v175
    %v845 = vunpack.c.l.b16 %v176
    %v846 = vunpack.c.h.b16 %v176
    %v847 = vunpack.c.l.b16 %v177
    %v848 = vunpack.c.h.b16 %v177
    %v849 = vunpack.c.l.b16 %v178
    %v850 = vunpack.c.h.b16 %v178
    %v851 = vunpack.c.l.b16 %v179
    %v852 = vunpack.c.h.b16 %v179
    %v853 = vunpack.c.l.b16 %v180
    %v854 = vunpack.c.h.b16 %v180
    %v855 = vunpack.c.l.b16 %v181
    %v856 = vunpack.c.h.b16 %v181
    %v857 = vunpack.c.l.b16 %v182
    %v858 = vunpack.c.h.b16 %v182
    %v859 = vunpack.c.l.b16 %v183
    %v860 = vunpack.c.h.b16 %v183
    %v861 = vunpack.c.l.b16 %v184
    %v862 = vunpack.c.h.b16 %v184
    %v863 = vunpack.c.l.b16 %v185
    %v864 = vunpack.c.h.b16 %v185
    %v865 = vunpack.c.l.b16 %v186
    %v866 = vunpack.c.h.b16 %v186
    %v867 = vunpack.c.l.b16 %v187
    %v868 = vunpack.c.h.b16 %v187
    %v869 = vunpack.c.l.b16 %v188
    %v870 = vunpack.c.h.b16 %v188
    %v871 = vunpack.c.l.b16 %v189
    %v872 = vunpack.c.h.b16 %v189
    %v873 = vunpack.c.l.b16 %v190
    %v874 = vunpack.c.h.b16 %v190
    %v875 = vunpack.c.l.b16 %v191
    %v876 = vunpack.c.h.b16 %v191
    %v877 = vunpack.c.l.b16 %v192
    %v878 = vunpack.c.h.b16 %v192
    %v879 = vunpack.c.l.b16 %v193
    %v880 = vunpack.c.h.b16 %v193
    %v881 = vunpack.c.l.b16 %v194
    %v882 = vunpack.c.h.b16 %v194
    %v883 = vunpack.c.l.b16 %v195
    %v884 = vunpack.c.h.b16 %v195
    %v885 = vunpack.c.l.b16 %v196
    %v886 = vunpack.c.h.b16 %v196
    %v887 = vunpack.c.l.b16 %v197
    %v888 = vunpack.c.h.b16 %v197
    %v889 = vunpack.c.l.b16 %v198
    %v890 = vunpack.c.h.b16 %v198
    %v891 = vunpack.c.l.b16 %v199
    %v892 = vunpack.c.h.b16 %v199
    %v893 = vunpack.c.l.b16 %v200
    %v894 = vunpack.c.h.b16 %v200
    %v895 = vunpack.c.l.b16 %v201
    %v896 = vunpack.c.h.b16 %v201
    %v897 = vunpack.c.l.b16 %v202
    %v898 = vunpack.c.h.b16 %v202
    %v899 = vunpack.c.l.b16 %v203
    %v900 = vunpack.c.h.b16 %v203
    %v901 = vunpack.c.l.b16 %v204
    %v902 = vunpack.c.h.b16 %v204
    %v903 = vunpack.c.l.b16 %v205
    %v904 = vunpack.c.h.b16 %v205
    %v905 = vunpack.c.l.b16 %v206
    %v906 = vunpack.c.h.b16 %v206
    %v907 = vunpack.c.l.b16 %v207
    %v908 = vunpack.c.h.b16 %v207
    %v909 = vunpack.c.l.b16 %v208
    %v910 = vunpack.c.h.b16 %v208
    %v911 = vunpack.c.l.b16 %v209
    %v912 = vunpack.c.h.b16 %v209
    %v913 = vunpack.c.l.b16 %v210
    %v914 = vunpack.c.h.b16 %v210
    %v915 = vunpack.c.l.b16 %v211
    %v916 = vunpack.c.h.b16 %v211
    %v917 = vunpack.c.l.b16 %v212
    %v918 = vunpack.c.h.b16 %v212
    %v919 = vunpack.c.l.b16 %v213
    %v920 = vunpack.c.h.b16 %v213
    %v921 = vunpack.c.l.b16 %v214
    %v922 = vunpack.c.h.b16 %v214
    %v923 = vunpack.c.l.b16 %v215
    %v924 = vunpack.c.h.b16 %v215
    %v925 = vunpack.c.l.b16 %v216
    %v926 = vunpack.c.h.b16 %v216
    %v927 = vunpack.c.l.b16 %v217
    %v928 = vunpack.c.h.b16 %v217
    %v929 = vunpack.c.l.b16 %v218
    %v930 = vunpack.c.h.b16 %v218
    %v931 = vunpack.c.l.b16 %v219
    %v932 = vunpack.c.h.b16 %v219
    %v933 = vunpack.c.l.b16 %v220
    %v934 = vunpack.c.h.b16 %v220
    %v935 = vunpack.c.l.b16 %v221
    %v936 = vunpack.c.h.b16 %v221
    %v937 = vunpack.c.l.b16 %v222
    %v938 = vunpack.c.h.b16 %v222
    %v939 = vunpack.c.l.b16 %v223
    %v940 = vunpack.c.h.b16 %v223
    %v941 = vunpack.c.l.b16 %v224
    %v942 = vunpack.c.h.b16 %v224
    %v943 = vunpack.c.l.b16 %v225
    %v944 = vunpack.c.h.b16 %v225
    %v945 = vunpack.c.l.b16 %v226
    %v946 = vunpack.c.h.b16 %v226
    %v947 = vunpack.c.l.b16 %v227
    %v948 = vunpack.c.h.b16 %v227
    %v949 = vunpack.c.l.b16 %v228
    %v950 = vunpack.c.h.b16 %v228
    %v951 = vunpack.c.l.b16 %v229
    %v952 = vunpack.c.h.b16 %v229
    %v953 = vunpack.c.l.b16 %v230
    %v954 = vunpack.c.h.b16 %v230
    %v955 = vunpack.c.l.b16 %v231
    %v956 = vunpack.c.h.b16 %v231
    %v957 = vunpack.c.l.b16 %v232
    %v958 = vunpack.c.h.b16 %v232
    %v959 = vunpack.c.l.b16 %v233
    %v960 = vunpack.c.h.b16 %v233
    %v961 = vunpack.c.l.b16 %v234
    %v962 = vunpack.c.h.b16 %v234
    %v963 = vunpack.c.l.b16 %v235
    %v964 = vunpack.c.h.b16 %v235
    %v965 = vunpack.c.l.b16 %v236
    %v966 = vunpack.c.h.b16 %v236
    %v967 = vunpack.c.l.b16 %v237
    %v968 = vunpack.c.h.b16 %v237
    %v969 = vunpack.c.l.b16 %v238
    %v970 = vunpack.c.h.b16 %v238
    %v971 = vunpack.c.l.b16 %v239
    %v972 = vunpack.c.h.b16 %v239
    %v973 = vunpack.c.l.b16 %v240
    %v974 = vunpack.c.h.b16 %v240
    %v975 = vunpack.c.l.b16 %v241
    %v976 = vunpack.c.h.b16 %v241
    %v977 = vunpack.c.l.b16 %v242
    %v978 = vunpack.c.h.b16 %v242
    %v979 = vunpack.c.l.b16 %v243
    %v980 = vunpack.c.h.b16 %v243
    %v981 = vunpack.c.l.b16 %v244
    %v982 = vunpack.c.h.b16 %v244
    %v983 = vunpack.c.l.b16 %v245
    %v984 = vunpack.c.h.b16 %v245
    %v985 = vunpack.c.l.b16 %v246
    %v986 = vunpack.c.h.b16 %v246
    %v987 = vunpack.c.l.b16 %v247
    %v988 = vunpack.c.h.b16 %v247
    %v989 = vunpack.c.l.b16 %v248
    %v990 = vunpack.c.h.b16 %v248
    %v991 = vunpack.c.l.b16 %v249
    %v992 = vunpack.c.h.b16 %v249
    %v993 = vunpack.c.l.b16 %v250
    %v994 = vunpack.c.h.b16 %v250
    %v995 = vunpack.c.l.b16 %v251
    %v996 = vunpack.c.h.b16 %v251
    %v997 = vunpack.c.l.b16 %v252
    %v998 = vunpack.c.h.b16 %v252
    %v999 = vunpack.c.l.b16 %v253
    %v1000 = vunpack.c.h.b16 %v253
    %v1001 = vunpack.c.l.b16 %v254
    %v1002 = vunpack.c.h.b16 %v254
    %v1003 = vunpack.c.l.b16 %v255
    %v1004 = vunpack.c.h.b16 %v255
    %v1005 = vunpack.c.l.b16 %v256
    %v1006 = vunpack.c.h.b16 %v256
    %v1007 = vunpack.c.l.b16 %v257
    %v1008 = vunpack.c.h.b16 %v257
    %v1009 = vunpack.c.l.b16 %v258
    %v1010 = vunpack.c.h.b16 %v258
    %v1011 = vunpack.c.l.b16 %v259
    %v1012 = vunpack.c.h.b16 %v259
    %v1013 = vunpack.c.l.b16 %v260
    %v1014 = vunpack.c.h.b16 %v260
    %v1015 = vunpack.c.l.b16 %v261
    %v1016 = vunpack.c.h.b16 %v261
    %v1017 = vunpack.c.l.b16 %v262
    %v1018 = vunpack.c.h.b16 %v262
    %v1019 = vunpack.c.l.b16 %v263
    %v1020 = vunpack.c.h.b16 %v263
    %v1021 = vunpack.c.l.b16 %v264
    %v1022 = vunpack.c.h.b16 %v264
    %v1023 = vunpack.c.l.b16 %v265
    %v1024 = vunpack.c.h.b16 %v265
    %v1025 = vunpack.c.l.b16 %v266
    %v1026 = vunpack.c.h.b16 %v266
    %v1027 = vunpack.c.l.b16 %v267
    %v1028 = vunpack.c.h.b16 %v267
    %v1029 = vunpack.c.l.b16 %v268
    %v1030 = vunpack.c.h.b16 %v268
    %v1031 = vunpack.c.l.b16 %v269
    %v1032 = vunpack.c.h.b16 %v269
    %v1033 = vunpack.c.l.b16 %v270
    %v1034 = vunpack.c.h.b16 %v270
    %v1035 = vunpack.c.l.b16 %v271
    %v1036 = vunpack.c.h.b16 %v271
    %v1037 = vunpack.c.l.b16 %v272
    %v1038 = vunpack.c.h.b16 %v272
    %v1039 = vunpack.c.l.b16 %v273
    %v1040 = vunpack.c.h.b16 %v273
    %v1041 = vunpack.c.l.b16 %v274
    %v1042 = vunpack.c.h.b16 %v274
    %v1043 = vunpack.c.l.b16 %v275
    %v1044 = vunpack.c.h.b16 %v275
    %v1045 = vunpack.c.l.b16 %v276
    %v1046 = vunpack.c.h.b16 %v276
    %v1047 = vunpack.c.l.b16 %v277
    %v1048 = vunpack.c.h.b16 %v277
    %v1049 = vunpack.c.l.b16 %v278
    %v1050 = vunpack.c.h.b16 %v278
    %v1051 = vunpack.c.l.b16 %v279
    %v1052 = vunpack.c.h.b16 %v279
    %v1053 = vunpack.c.l.b16 %v280
    %v1054 = vunpack.c.h.b16 %v280
    %v1055 = vunpack.c.l.b16 %v281
    %v1056 = vunpack.c.h.b16 %v281
    %v1057 = vunpack.c.l.b16 %v282
    %v1058 = vunpack.c.h.b16 %v282
    %v1059 = vunpack.c.l.b16 %v283
    %v1060 = vunpack.c.h.b16 %v283
    %v1061 = vunpack.c.l.b16 %v284
    %v1062 = vunpack.c.h.b16 %v284
    %v1063 = vunpack.c.l.b16 %v285
    %v1064 = vunpack.c.h.b16 %v285
    %v1065 = vunpack.c.l.b16 %v286
    %v1066 = vunpack.c.h.b16 %v286
    %v1067 = vunpack.c.l.b16 %v287
    %v1068 = vunpack.c.h.b16 %v287
    %v1069 = vunpack.c.l.b16 %v288
    %v1070 = vunpack.c.h.b16 %v288
    %v1071 = vunpack.c.l.b16 %v289
    %v1072 = vunpack.c.h.b16 %v289
    %v1073 = vunpack.c.l.b16 %v290
    %v1074 = vunpack.c.h.b16 %v290
    %v1075 = vunpack.c.l.b16 %v291
    %v1076 = vunpack.c.h.b16 %v291
    %v1077 = vunpack.c.l.b16 %v292
    %v1078 = vunpack.c.h.b16 %v292
    %v1079 = vunpack.c.l.b16 %v293
    %v1080 = vunpack.c.h.b16 %v293
    %v1081 = vunpack.c.l.b16 %v294
    %v1082 = vunpack.c.h.b16 %v294
    %v1083 = vunpack.c.l.b16 %v295
    %v1084 = vunpack.c.h.b16 %v295
    %v1085 = vunpack.c.l.b16 %v296
    %v1086 = vunpack.c.h.b16 %v296
    %v1087 = vunpack.c.l.b16 %v297
    %v1088 = vunpack.c.h.b16 %v297
    %v1089 = vunpack.c.l.b16 %v298
    %v1090 = vunpack.c.h.b16 %v298
    %v1091 = vunpack.c.l.b16 %v299
    %v1092 = vunpack.c.h.b16 %v299
    %v1093 = vunpack.c.l.b16 %v300
    %v1094 = vunpack.c.h.b16 %v300
    %v1095 = vunpack.c.l.b16 %v301
    %v1096 = vunpack.c.h.b16 %v301
    %v1097 = vunpack.c.l.b16 %v302
    %v1098 = vunpack.c.h.b16 %v302
    %v1099 = vunpack.c.l.b16 %v303
    %v1100 = vunpack.c.h.b16 %v303
    %v1101 = vunpack.c.l.b16 %v304
    %v1102 = vunpack.c.h.b16 %v304
    %v1103 = vunpack.c.l.b16 %v305
    %v1104 = vunpack.c.h.b16 %v305
    %v1105 = vunpack.c.l.b16 %v306
    %v1106 = vunpack.c.h.b16 %v306
    %v1107 = vunpack.c.l.b16 %v307
    %v1108 = vunpack.c.h.b16 %v307
    %v1109 = vunpack.c.l.b16 %v308
    %v1110 = vunpack.c.h.b16 %v308
    %v1111 = vunpack.c.l.b16 %v309
    %v1112 = vunpack.c.h.b16 %v309
    %v1113 = vunpack.c.l.b16 %v310
    %v1114 = vunpack.c.h.b16 %v310
    %v1115 = vunpack.c.l.b16 %v311
    %v1116 = vunpack.c.h.b16 %v311
    %v1117 = vunpack.c.l.b16 %v312
    %v1118 = vunpack.c.h.b16 %v312
    %v1119 = vunpack.c.l.b16 %v313
    %v1120 = vunpack.c.h.b16 %v313
    %v1121 = vunpack.c.l.b16 %v314
    %v1122 = vunpack.c.h.b16 %v314
    %v1123 = vunpack.c.l.b16 %v315
    %v1124 = vunpack.c.h.b16 %v315
    %v1125 = vunpack.c.l.b16 %v316
    %v1126 = vunpack.c.h.b16 %v316
    %v1127 = vunpack.c.l.b16 %v317
    %v1128 = vunpack.c.h.b16 %v317
    %v1129 = vunpack.c.l.b16 %v318
    %v1130 = vunpack.c.h.b16 %v318
    %v1131 = vunpack.c.l.b16 %v319
    %v1132 = vunpack.c.h.b16 %v319
    %v1133 = vunpack.c.l.b16 %v320
    %v1134 = vunpack.c.h.b16 %v320
    %v1135 = vunpack.c.l.b16 %v321
    %v1136 = vunpack.c.h.b16 %v321
    %v1137 = vunpack.c.l.b16 %v322
    %v1138 = vunpack.c.h.b16 %v322
    %v1139 = vunpack.c.l.b16 %v323
    %v1140 = vunpack.c.h.b16 %v323
    %v1141 = vunpack.c.l.b16 %v324
    %v1142 = vunpack.c.h.b16 %v324
    %v1143 = vunpack.c.l.b16 %v325
    %v1144 = vunpack.c.h.b16 %v325
    %v1145 = vunpack.c.l.b16 %v326
    %v1146 = vunpack.c.h.b16 %v326
    %v1147 = vunpack.c.l.b16 %v327
    %v1148 = vunpack.c.h.b16 %v327
    %v1149 = vunpack.c.l.b16 %v328
    %v1150 = vunpack.c.h.b16 %v328
    %v1151 = vunpack.c.l.b16 %v329
    %v1152 = vunpack.c.h.b16 %v329
    %v1153 = vunpack.c.l.b16 %v330
    %v1154 = vunpack.c.h.b16 %v330
    %v1155 = vpack.c.b16 %v651, %v643
    %v1156 = vpack.c.b16 %v652, %v644
    %v1157 = vpack.c.b16 %v653, %v645
    %v1158 = vpack.c.b16 %v654, %v646
    %v1159 = vpack.c.b16 %v655, %v647
    %v1160 = vpack.c.b16 %v656, %v648
    %v1161 = vpack.c.b16 %v657, %v649
    %v1162 = vpack.c.b16 %v658, %v650
    %v1163 = vpack.c.b16 %v667, %v659
    %v1164 = vpack.c.b16 %v668, %v660
    %v1165 = vpack.c.b16 %v669, %v661
    %v1166 = vpack.c.b16 %v670, %v662
    %v1167 = vpack.c.b16 %v671, %v663
    %v1168 = vpack.c.b16 %v672, %v664
    %v1169 = vpack.c.b16 %v673, %v665
    %v1170 = vpack.c.b16 %v674, %v666
    %v1171 = vpack.c.b16 %v683, %v675
    %v1172 = vpack.c.b16 %v684, %v676
    %v1173 = vpack.c.b16 %v685, %v677
    %v1174 = vpack.c.b16 %v686, %v678
    %v1175 = vpack.c.b16 %v687, %v679
    %v1176 = vpack.c.b16 %v688, %v680
    %v1177 = vpack.c.b16 %v689, %v681
    %v1178 = vpack.c.b16 %v690, %v682
    %v1179 = vpack.c.b16 %v699, %v691
    %v1180 = vpack.c.b16 %v700, %v692
    %v1181 = vpack.c.b16 %v701, %v693
    %v1182 = vpack.c.b16 %v702, %v694
    %v1183 = vpack.c.b16 %v703, %v695
    %v1184 = vpack.c.b16 %v704, %v696
    %v1185 = vpack.c.b16 %v705, %v697
    %v1186 = vpack.c.b16 %v706, %v698
    %v1187 = vpack.c.b16 %v715, %v707
    %v1188 = vpack.c.b16 %v716, %v708
    %v1189 = vpack.c.b16 %v717, %v709
    %v1190 = vpack.c.b16 %v718, %v710
    %v1191 = vpack.c.b16 %v719, %v711
    %v1192 = vpack.c.b16 %v720, %v712
    %v1193 = vpack.c.b16 %v721, %v713
    %v1194 = vpack.c.b16 %v722, %v714
    %v1195 = vpack.c.b16 %v731, %v723
    %v1196 = vpack.c.b16 %v732, %v724
    %v1197 = vpack.c.b16 %v733, %v725
    %v1198 = vpack.c.b16 %v734, %v726
    %v1199 = vpack.c.b16 %v735, %v727
    %v1200 = vpack.c.b16 %v736, %v728
    %v1201 = vpack.c.b16 %v737, %v729
    %v1202 = vpack.c.b16 %v738, %v730
    %v1203 = vpack.c.b16 %v747, %v739
    %v1204 = vpack.c.b16 %v748, %v740
    %v1205 = vpack.c.b16 %v749, %v741
    %v1206 = vpack.c.b16 %v750, %v742
    %v1207 = vpack.c.b16 %v751, %v743
    %v1208 = vpack.c.b16 %v752, %v744
    %v1209 = vpack.c.b16 %v753, %v745
    %v1210 = vpack.c.b16 %v754, %v746
    %v1211 = vpack.c.b16 %v763, %v755
    %v1212 = vpack.c.b16 %v764, %v756
    %v1213 = vpack.c.b16 %v765, %v757
    %v1214 = vpack.c.b16 %v766, %v758
    %v1215 = vpack.c.b16 %v767, %v759
    %v1216 = vpack.c.b16 %v768, %v760
    %v1217 = vpack.c.b16 %v769, %v761
    %v1218 = vpack.c.b16 %v770, %v762
    %v1219 = vpack.c.b16 %v779, %v771
    %v1220 = vpack.c.b16 %v780, %v772
    %v1221 = vpack.c.b16 %v781, %v773
    %v1222 = vpack.c.b16 %v782, %v774
    %v1223 = vpack.c.b16 %v783, %v775
    %v1224 = vpack.c.b16 %v784, %v776
    %v1225 = vpack.c.b16 %v785, %v777
    %v1226 = vpack.c.b16 %v786, %v778
    %v1227 = vpack.c.b16 %v795, %v787
    %v1228 = vpack.c.b16 %v796, %v788
    %v1229 = vpack.c.b16 %v797, %v789
    %v1230 = vpack.c.b16 %v798, %v790
    %v1231 = vpack.c.b16 %v799, %v791
    %v1232 = vpack.c.b16 %v800, %v792
    %v1233 = vpack.c.b16 %v801, %v793
    %v1234 = vpack.c.b16 %v802, %v794
    %v1235 = vpack.c.b16 %v811, %v803
    %v1236 = vpack.c.b16 %v812, %v804
    %v1237 = vpack.c.b16 %v813, %v805
    %v1238 = vpack.c.b16 %v814, %v806
    %v1239 = vpack.c.b16 %v815, %v807
    %v1240 = vpack.c.b16 %v816, %v808
    %v1241 = vpack.c.b16 %v817, %v809
    %v1242 = vpack.c.b16 %v818, %v810
    %v1243 = vpack.c.b16 %v827, %v819
    %v1244 = vpack.c.b16 %v828, %v820
    %v1245 = vpack.c.b16 %v829, %v821
    %v1246 = vpack.c.b16 %v830, %v822
    %v1247 = vpack.c.b16 %v831, %v823
    %v1248 = vpack.c.b16 %v832, %v824
    %v1249 = vpack.c.b16 %v833, %v825
    %v1250 = vpack.c.b16 %v834, %v826
    %v1251 = vpack.c.b16 %v843, %v835
    %v1252 = vpack.c.b16 %v844, %v836
    %v1253 = vpack.c.b16 %v845, %v837
    %v1254 = vpack.c.b16 %v846, %v838
    %v1255 = vpack.c.b16 %v847, %v839
    %v1256 = vpack.c.b16 %v848, %v840
    %v1257 = vpack.c.b16 %v849, %v841
    %v1258 = vpack.c.b16 %v850, %v842
    %v1259 = vpack.c.b16 %v859, %v851
    %v1260 = vpack.c.b16 %v860, %v852
    %v1261 = vpack.c.b16 %v861, %v853
    %v1262 = vpack.c.b16 %v862, %v854
    %v1263 = vpack.c.b16 %v863, %v855
    %v1264 = vpack.c.b16 %v864, %v856
    %v1265 = vpack.c.b16 %v865, %v857
    %v1266 = vpack.c.b16 %v866, %v858
    %v1267 = vpack.c.b16 %v875, %v867
    %v1268 = vpack.c.b16 %v876, %v868
    %v1269 = vpack.c.b16 %v877, %v869
    %v1270 = vpack.c.b16 %v878, %v870
    %v1271 = vpack.c.b16 %v879, %v871
    %v1272 = vpack.c.b16 %v880, %v872
    %v1273 = vpack.c.b16 %v881, %v873
    %v1274 = vpack.c.b16 %v882, %v874
    %v1275 = vpack.c.b16 %v891, %v883
    %v1276 = vpack.c.b16 %v892, %v884
    %v1277 = vpack.c.b16 %v893, %v885
    %v1278 = vpack.c.b16 %v894, %v886
    %v1279 = vpack.c.b16 %v895, %v887
    %v1280 = vpack.c.b16 %v896, %v888
    %v1281 = vpack.c.b16 %v897, %v889
    %v1282 = vpack.c.b16 %v898, %v890
    %v1283 = vpack.c.b16 %v907, %v899
    %v1284 = vpack.c.b16 %v908, %v900
    %v1285 = vpack.c.b16 %v909, %v901
    %v1286 = vpack.c.b16 %v910, %v902
    %v1287 = vpack.c.b16 %v911, %v903
    %v1288 = vpack.c.b16 %v912, %v904
    %v1289 = vpack.c.b16 %v913, %v905
    %v1290 = vpack.c.b16 %v914, %v906
    %v1291 = vpack.c.b16 %v923, %v915
    %v1292 = vpack.c.b16 %v924, %v916
    %v1293 = vpack.c.b16 %v925, %v917
    %v1294 = vpack.c.b16 %v926, %v918
    %v1295 = vpack.c.b16 %v927, %v919
    %v1296 = vpack.c.b16 %v928, %v920
    %v1297 = vpack.c.b16 %v929, %v921
    %v1298 = vpack.c.b16 %v930, %v922
    %v1299 = vpack.c.b16 %v939, %v931
    %v1300 = vpack.c.b16 %v940, %v932
    %v1301 = vpack.c.b16 %v941, %v933
    %v1302 = vpack.c.b16 %v942, %v934
    %v1303 = vpack.c.b16 %v943, %v935
    %v1304 = vpack.c.b16 %v944, %v936
    %v1305 = vpack.c.b16 %v945, %v937
    %v1306 = vpack.c.b16 %v946, %v938
    %v1307 = vpack.c.b16 %v955, %v947
    %v1308 = vpack.c.b16 %v956, %v948
    %v1309 = vpack.c.b16 %v957, %v949
    %v1310 = vpack.c.b16 %v958, %v950
    %v1311 = vpack.c.b16 %v959, %v951
    %v1312 = vpack.c.b16 %v960, %v952
    %v1313 = vpack.c.b16 %v961, %v953
    %v1314 = vpack.c.b16 %v962, %v954
    %v1315 = vpack.c.b16 %v971, %v963
    %v1316 = vpack.c.b16 %v972, %v964
    %v1317 = vpack.c.b16 %v973, %v965
    %v1318 = vpack.c.b16 %v974, %v966
    %v1319 = vpack.c.b16 %v975, %v967
    %v1320 = vpack.c.b16 %v976, %v968
    %v1321 = vpack.c.b16 %v977, %v969
    %v1322 = vpack.c.b16 %v978, %v970
    %v1323 = vpack.c.b16 %v987, %v979
    %v1324 = vpack.c.b16 %v988, %v980
    %v1325 = vpack.c.b16 %v989, %v981
    %v1326 = vpack.c.b16 %v990, %v982
    %v1327 = vpack.c.b16 %v991, %v983
    %v1328 = vpack.c.b16 %v992, %v984
    %v1329 = vpack.c.b16 %v993, %v985
    %v1330 = vpack.c.b16 %v994, %v986
    %v1331 = vpack.c.b16 %v1003, %v995
    %v1332 = vpack.c.b16 %v1004, %v996
    %v1333 = vpack.c.b16 %v1005, %v997
    %v1334 = vpack.c.b16 %v1006, %v998
    %v1335 = vpack.c.b16 %v1007, %v999
    %v1336 = vpack.c.b16 %v1008, %v1000
    %v1337 = vpack.c.b16 %v1009, %v1001
    %v1338 = vpack.c.b16 %v1010, %v1002
    %v1339 = vpack.c.b16 %v1019, %v1011
    %v1340 = vpack.c.b16 %v1020, %v1012
    %v1341 = vpack.c.b16 %v1021, %v1013
    %v1342 = vpack.c.b16 %v1022, %v1014
    %v1343 = vpack.c.b16 %v1023, %v1015
    %v1344 = vpack.c.b16 %v1024, %v1016
    %v1345 = vpack.c.b16 %v1025, %v1017
    %v1346 = vpack.c.b16 %v1026, %v1018
    %v1347 = vpack.c.b16 %v1035, %v1027
    %v1348 = vpack.c.b16 %v1036, %v1028
    %v1349 = vpack.c.b16 %v1037, %v1029
    %v1350 = vpack.c.b16 %v1038, %v1030
    %v1351 = vpack.c.b16 %v1039, %v1031
    %v1352 = vpack.c.b16 %v1040, %v1032
    %v1353 = vpack.c.b16 %v1041, %v1033
    %v1354 = vpack.c.b16 %v1042, %v1034
    %v1355 = vpack.c.b16 %v1051, %v1043
    %v1356 = vpack.c.b16 %v1052, %v1044
    %v1357 = vpack.c.b16 %v1053, %v1045
    %v1358 = vpack.c.b16 %v1054, %v1046
    %v1359 = vpack.c.b16 %v1055, %v1047
    %v1360 = vpack.c.b16 %v1056, %v1048
    %v1361 = vpack.c.b16 %v1057, %v1049
    %v1362 = vpack.c.b16 %v1058, %v1050
    %v1363 = vpack.c.b16 %v1067, %v1059
    %v1364 = vpack.c.b16 %v1068, %v1060
    %v1365 = vpack.c.b16 %v1069, %v1061
    %v1366 = vpack.c.b16 %v1070, %v1062
    %v1367 = vpack.c.b16 %v1071, %v1063
    %v1368 = vpack.c.b16 %v1072, %v1064
    %v1369 = vpack.c.b16 %v1073, %v1065
    %v1370 = vpack.c.b16 %v1074, %v1066
    %v1371 = vpack.c.b16 %v1083, %v1075
    %v1372 = vpack.c.b16 %v1084, %v1076
    %v1373 = vpack.c.b16 %v1085, %v1077
    %v1374 = vpack.c.b16 %v1086, %v1078
    %v1375 = vpack.c.b16 %v1087, %v1079
    %v1376 = vpack.c.b16 %v1088, %v1080
    %v1377 = vpack.c.b16 %v1089, %v1081
    %v1378 = vpack.c.b16 %v1090, %v1082
    %v1379 = vpack.c.b16 %v1099, %v1091
    %v1380 = vpack.c.b16 %v1100, %v1092
    %v1381 = vpack.c.b16 %v1101, %v1093
    %v1382 = vpack.c.b16 %v1102, %v1094
    %v1383 = vpack.c.b16 %v1103, %v1095
    %v1384 = vpack.c.b16 %v1104, %v1096
    %v1385 = vpack.c.b16 %v1105, %v1097
    %v1386 = vpack.c.b16 %v1106, %v1098
    %v1387 = vpack.c.b16 %v1115, %v1107
    %v1388 = vpack.c.b16 %v1116, %v1108
    %v1389 = vpack.c.b16 %v1117, %v1109
    %v1390 = vpack.c.b16 %v1118, %v1110
    %v1391 = vpack.c.b16 %v1119, %v1111
    %v1392 = vpack.c.b16 %v1120, %v1112
    %v1393 = vpack.c.b16 %v1121, %v1113
    %v1394 = vpack.c.b16 %v1122, %v1114
    %v1395 = vpack.c.b16 %v1131, %v1123
    %v1396 = vpack.c.b16 %v1132, %v1124
    %v1397 = vpack.c.b16 %v1133, %v1125
    %v1398 = vpack.c.b16 %v1134, %v1126
    %v1399 = vpack.c.b16 %v1135, %v1127
    %v1400 = vpack.c.b16 %v1136, %v1128
    %v1401 = vpack.c.b16 %v1137, %v1129
    %v1402 = vpack.c.b16 %v1138, %v1130
    %v1403 = vpack.c.b16 %v1147, %v1139
    %v1404 = vpack.c.b16 %v1148, %v1140
    %v1405 = vpack.c.b16 %v1149, %v1141
    %v1406 = vpack.c.b16 %v1150, %v1142
    %v1407 = vpack.c.b16 %v1151, %v1143
    %v1408 = vpack.c.b16 %v1152, %v1144
    %v1409 = vpack.c.b16 %v1153, %v1145
    %v1410 = vpack.c.b16 %v1154, %v1146
    %1667 = vmatprep.subr.bf16.mxu0 %v1156
    %1668 = vmatpush1.bf16.msra.mxu0 %v1155
    %1669 = vmatprep.subr.bf16.mxu0 %v1164
    %1670 = vmatpush1.bf16.msra.mxu0 %v1163
    %1671 = vmatprep.subr.bf16.mxu0 %v1172
    %1672 = vmatpush1.bf16.msra.mxu0 %v1171
    %1673 = vmatprep.subr.bf16.mxu0 %v1180
    %1674 = vmatpush1.bf16.msra.mxu0 %v1179
    %1675 = vmatprep.subr.bf16.mxu0 %v1188
    %1676 = vmatpush1.bf16.msra.mxu0 %v1187
    %1677 = vmatprep.subr.bf16.mxu0 %v1196
    %1678 = vmatpush1.bf16.msra.mxu0 %v1195
    %1679 = vmatprep.subr.bf16.mxu0 %v1204
    %1680 = vmatpush1.bf16.msra.mxu0 %v1203
    %1681 = vmatprep.subr.bf16.mxu0 %v1212
    %1682 = vmatpush1.bf16.msra.mxu0 %v1211
    %1683 = vmatprep.subr.bf16.mxu0 %v1220
    %1684 = vmatpush1.bf16.msra.mxu0 %v1219
    %1685 = vmatprep.subr.bf16.mxu0 %v1228
    %1686 = vmatpush1.bf16.msra.mxu0 %v1227
    %1687 = vmatprep.subr.bf16.mxu0 %v1236
    %1688 = vmatpush1.bf16.msra.mxu0 %v1235
    %1689 = vmatprep.subr.bf16.mxu0 %v1244
    %1690 = vmatpush1.bf16.msra.mxu0 %v1243
    %1691 = vmatprep.subr.bf16.mxu0 %v1252
    %1692 = vmatpush1.bf16.msra.mxu0 %v1251
    %1693 = vmatprep.subr.bf16.mxu0 %v1260
    %1694 = vmatpush1.bf16.msra.mxu0 %v1259
    %1695 = vmatprep.subr.bf16.mxu0 %v1268
    %1696 = vmatpush1.bf16.msra.mxu0 %v1267
    %1697 = vmatprep.subr.bf16.mxu0 %v1276
    %1698 = vmatpush1.bf16.msra.mxu0 %v1275
    %1699 = vmatprep.mubr.bf16.mxu0 %v380
    %1700 = vmatmul.mubr.bf16.gmra.mrb[0].mxu0 %v379
    %v1701 = vpop.f32.mrb[0].mxu0
    %v1702 = vadd.f32 %v336, %v1701
    %v1703 = vpop.f32.mrb[0].mxu0
    %v1704 = vadd.f32 %v340, %v1703
    %v1705 = vpop.f32.mrb[0].mxu0
    %v1706 = vpop.f32.mrb[0].mxu0
    %1707 = vdwg.mxu0
    %1708 = vmatprep.subr.bf16.mxu0 %v1284
    %1709 = vmatpush1.bf16.msra.mxu0 %v1283
    %1710 = vmatprep.subr.bf16.mxu0 %v1292
    %1711 = vmatpush1.bf16.msra.mxu0 %v1291
    %1712 = vmatprep.subr.bf16.mxu0 %v1300
    %1713 = vmatpush1.bf16.msra.mxu0 %v1299
    %1714 = vmatprep.subr.bf16.mxu0 %v1308
    %1715 = vmatpush1.bf16.msra.mxu0 %v1307
    %1716 = vmatprep.subr.bf16.mxu0 %v1316
    %1717 = vmatpush1.bf16.msra.mxu0 %v1315
    %1718 = vmatprep.subr.bf16.mxu0 %v1324
    %1719 = vmatpush1.bf16.msra.mxu0 %v1323
    %1720 = vmatprep.subr.bf16.mxu0 %v1332
    %1721 = vmatpush1.bf16.msra.mxu0 %v1331
    %1722 = vmatprep.subr.bf16.mxu0 %v1340
    %1723 = vmatpush1.bf16.msra.mxu0 %v1339
    %1724 = vmatprep.subr.bf16.mxu0 %v1348
    %1725 = vmatpush1.bf16.msra.mxu0 %v1347
    %1726 = vmatprep.subr.bf16.mxu0 %v1356
    %1727 = vmatpush1.bf16.msra.mxu0 %v1355
    %1728 = vmatprep.subr.bf16.mxu0 %v1364
    %1729 = vmatpush1.bf16.msra.mxu0 %v1363
    %1730 = vmatprep.subr.bf16.mxu0 %v1372
    %1731 = vmatpush1.bf16.msra.mxu0 %v1371
    %1732 = vmatprep.subr.bf16.mxu0 %v1380
    %1733 = vmatpush1.bf16.msra.mxu0 %v1379
    %1734 = vmatprep.subr.bf16.mxu0 %v1388
    %1735 = vmatpush1.bf16.msra.mxu0 %v1387
    %1736 = vmatprep.subr.bf16.mxu0 %v1396
    %1737 = vmatpush1.bf16.msra.mxu0 %v1395
    %1738 = vmatprep.subr.bf16.mxu0 %v1404
    %1739 = vmatpush1.bf16.msra.mxu0 %v1403
    %1740 = vmatprep.mubr.bf16.mxu0 %v382
    %1741 = vmatmul.mubr.bf16.gmra.mrb[0].mxu0 %v381
    %v1742 = vpop.f32.mrb[0].mxu0
    %v1743 = vadd.f32 %v1702, %v1742
    %v1744 = vpop.f32.mrb[0].mxu0
    %v1745 = vadd.f32 %v1704, %v1744
    %v1746 = vpop.f32.mrb[0].mxu0
    %v1747 = vpop.f32.mrb[0].mxu0
    %1748 = vdwg.mxu0
    %1749 = vmatprep.subr.bf16.mxu0 %v1158
    %1750 = vmatpush1.bf16.msra.mxu0 %v1157
    %1751 = vmatprep.subr.bf16.mxu0 %v1166
    %1752 = vmatpush1.bf16.msra.mxu0 %v1165
    %1753 = vmatprep.subr.bf16.mxu0 %v1174
    %1754 = vmatpush1.bf16.msra.mxu0 %v1173
    %1755 = vmatprep.subr.bf16.mxu0 %v1182
    %1756 = vmatpush1.bf16.msra.mxu0 %v1181
    %1757 = vmatprep.subr.bf16.mxu0 %v1190
    %1758 = vmatpush1.bf16.msra.mxu0 %v1189
    %1759 = vmatprep.subr.bf16.mxu0 %v1198
    %1760 = vmatpush1.bf16.msra.mxu0 %v1197
    %1761 = vmatprep.subr.bf16.mxu0 %v1206
    %1762 = vmatpush1.bf16.msra.mxu0 %v1205
    %1763 = vmatprep.subr.bf16.mxu0 %v1214
    %1764 = vmatpush1.bf16.msra.mxu0 %v1213
    %1765 = vmatprep.subr.bf16.mxu0 %v1222
    %1766 = vmatpush1.bf16.msra.mxu0 %v1221
    %1767 = vmatprep.subr.bf16.mxu0 %v1230
    %1768 = vmatpush1.bf16.msra.mxu0 %v1229
    %1769 = vmatprep.subr.bf16.mxu0 %v1238
    %1770 = vmatpush1.bf16.msra.mxu0 %v1237
    %1771 = vmatprep.subr.bf16.mxu0 %v1246
    %1772 = vmatpush1.bf16.msra.mxu0 %v1245
    %1773 = vmatprep.subr.bf16.mxu0 %v1254
    %1774 = vmatpush1.bf16.msra.mxu0 %v1253
    %1775 = vmatprep.subr.bf16.mxu0 %v1262
    %1776 = vmatpush1.bf16.msra.mxu0 %v1261
    %1777 = vmatprep.subr.bf16.mxu0 %v1270
    %1778 = vmatpush1.bf16.msra.mxu0 %v1269
    %1779 = vmatprep.subr.bf16.mxu0 %v1278
    %1780 = vmatpush1.bf16.msra.mxu0 %v1277
    %1781 = vmatprep.mubr.bf16.mxu0 %v380
    %1782 = vmatmul.mubr.bf16.gmra.mrb[0].mxu0 %v379
    %v1783 = vpop.f32.mrb[0].mxu0
    %v1784 = vadd.f32 %v344, %v1783
    %v1785 = vpop.f32.mrb[0].mxu0
    %v1786 = vadd.f32 %v348, %v1785
    %v1787 = vpop.f32.mrb[0].mxu0
    %v1788 = vpop.f32.mrb[0].mxu0
    %1789 = vdwg.mxu0
    %1790 = vmatprep.subr.bf16.mxu0 %v1286
    %1791 = vmatpush1.bf16.msra.mxu0 %v1285
    %1792 = vmatprep.subr.bf16.mxu0 %v1294
    %1793 = vmatpush1.bf16.msra.mxu0 %v1293
    %1794 = vmatprep.subr.bf16.mxu0 %v1302
    %1795 = vmatpush1.bf16.msra.mxu0 %v1301
    %1796 = vmatprep.subr.bf16.mxu0 %v1310
    %1797 = vmatpush1.bf16.msra.mxu0 %v1309
    %1798 = vmatprep.subr.bf16.mxu0 %v1318
    %1799 = vmatpush1.bf16.msra.mxu0 %v1317
    %1800 = vmatprep.subr.bf16.mxu0 %v1326
    %1801 = vmatpush1.bf16.msra.mxu0 %v1325
    %1802 = vmatprep.subr.bf16.mxu0 %v1334
    %1803 = vmatpush1.bf16.msra.mxu0 %v1333
    %1804 = vmatprep.subr.bf16.mxu0 %v1342
    %1805 = vmatpush1.bf16.msra.mxu0 %v1341
    %1806 = vmatprep.subr.bf16.mxu0 %v1350
    %1807 = vmatpush1.bf16.msra.mxu0 %v1349
    %1808 = vmatprep.subr.bf16.mxu0 %v1358
    %1809 = vmatpush1.bf16.msra.mxu0 %v1357
    %1810 = vmatprep.subr.bf16.mxu0 %v1366
    %1811 = vmatpush1.bf16.msra.mxu0 %v1365
    %1812 = vmatprep.subr.bf16.mxu0 %v1374
    %1813 = vmatpush1.bf16.msra.mxu0 %v1373
    %1814 = vmatprep.subr.bf16.mxu0 %v1382
    %1815 = vmatpush1.bf16.msra.mxu0 %v1381
    %1816 = vmatprep.subr.bf16.mxu0 %v1390
    %1817 = vmatpush1.bf16.msra.mxu0 %v1389
    %1818 = vmatprep.subr.bf16.mxu0 %v1398
    %1819 = vmatpush1.bf16.msra.mxu0 %v1397
    %1820 = vmatprep.subr.bf16.mxu0 %v1406
    %1821 = vmatpush1.bf16.msra.mxu0 %v1405
    %1822 = vmatprep.mubr.bf16.mxu0 %v382
    %1823 = vmatmul.mubr.bf16.gmra.mrb[0].mxu0 %v381
    %v1824 = vpop.f32.mrb[0].mxu0
    %v1825 = vadd.f32 %v1784, %v1824
    %v1826 = vpop.f32.mrb[0].mxu0
    %v1827 = vadd.f32 %v1786, %v1826
    %v1828 = vpop.f32.mrb[0].mxu0
    %v1829 = vpop.f32.mrb[0].mxu0
    %1830 = vdwg.mxu0
    %1831 = vmatprep.subr.bf16.mxu0 %v1160
    %1832 = vmatpush1.bf16.msra.mxu0 %v1159
    %1833 = vmatprep.subr.bf16.mxu0 %v1168
    %1834 = vmatpush1.bf16.msra.mxu0 %v1167
    %1835 = vmatprep.subr.bf16.mxu0 %v1176
    %1836 = vmatpush1.bf16.msra.mxu0 %v1175
    %1837 = vmatprep.subr.bf16.mxu0 %v1184
    %1838 = vmatpush1.bf16.msra.mxu0 %v1183
    %1839 = vmatprep.subr.bf16.mxu0 %v1192
    %1840 = vmatpush1.bf16.msra.mxu0 %v1191
    %1841 = vmatprep.subr.bf16.mxu0 %v1200
    %1842 = vmatpush1.bf16.msra.mxu0 %v1199
    %1843 = vmatprep.subr.bf16.mxu0 %v1208
    %1844 = vmatpush1.bf16.msra.mxu0 %v1207
    %1845 = vmatprep.subr.bf16.mxu0 %v1216
    %1846 = vmatpush1.bf16.msra.mxu0 %v1215
    %1847 = vmatprep.subr.bf16.mxu0 %v1224
    %1848 = vmatpush1.bf16.msra.mxu0 %v1223
    %1849 = vmatprep.subr.bf16.mxu0 %v1232
    %1850 = vmatpush1.bf16.msra.mxu0 %v1231
    %1851 = vmatprep.subr.bf16.mxu0 %v1240
    %1852 = vmatpush1.bf16.msra.mxu0 %v1239
    %1853 = vmatprep.subr.bf16.mxu0 %v1248
    %1854 = vmatpush1.bf16.msra.mxu0 %v1247
    %1855 = vmatprep.subr.bf16.mxu0 %v1256
    %1856 = vmatpush1.bf16.msra.mxu0 %v1255
    %1857 = vmatprep.subr.bf16.mxu0 %v1264
    %1858 = vmatpush1.bf16.msra.mxu0 %v1263
    %1859 = vmatprep.subr.bf16.mxu0 %v1272
    %1860 = vmatpush1.bf16.msra.mxu0 %v1271
    %1861 = vmatprep.subr.bf16.mxu0 %v1280
    %1862 = vmatpush1.bf16.msra.mxu0 %v1279
    %1863 = vmatprep.mubr.bf16.mxu0 %v380
    %1864 = vmatmul.mubr.bf16.gmra.mrb[0].mxu0 %v379
    %v1865 = vpop.f32.mrb[0].mxu0
    %v1866 = vadd.f32 %v352, %v1865
    %v1867 = vpop.f32.mrb[0].mxu0
    %v1868 = vadd.f32 %v356, %v1867
    %v1869 = vpop.f32.mrb[0].mxu0
    %v1870 = vpop.f32.mrb[0].mxu0
    %1871 = vdwg.mxu0
    %1872 = vmatprep.subr.bf16.mxu0 %v1288
    %1873 = vmatpush1.bf16.msra.mxu0 %v1287
    %1874 = vmatprep.subr.bf16.mxu0 %v1296
    %1875 = vmatpush1.bf16.msra.mxu0 %v1295
    %1876 = vmatprep.subr.bf16.mxu0 %v1304
    %1877 = vmatpush1.bf16.msra.mxu0 %v1303
    %1878 = vmatprep.subr.bf16.mxu0 %v1312
    %1879 = vmatpush1.bf16.msra.mxu0 %v1311
    %1880 = vmatprep.subr.bf16.mxu0 %v1320
    %1881 = vmatpush1.bf16.msra.mxu0 %v1319
    %1882 = vmatprep.subr.bf16.mxu0 %v1328
    %1883 = vmatpush1.bf16.msra.mxu0 %v1327
    %1884 = vmatprep.subr.bf16.mxu0 %v1336
    %1885 = vmatpush1.bf16.msra.mxu0 %v1335
    %1886 = vmatprep.subr.bf16.mxu0 %v1344
    %1887 = vmatpush1.bf16.msra.mxu0 %v1343
    %1888 = vmatprep.subr.bf16.mxu0 %v1352
    %1889 = vmatpush1.bf16.msra.mxu0 %v1351
    %1890 = vmatprep.subr.bf16.mxu0 %v1360
    %1891 = vmatpush1.bf16.msra.mxu0 %v1359
    %1892 = vmatprep.subr.bf16.mxu0 %v1368
    %1893 = vmatpush1.bf16.msra.mxu0 %v1367
    %1894 = vmatprep.subr.bf16.mxu0 %v1376
    %1895 = vmatpush1.bf16.msra.mxu0 %v1375
    %1896 = vmatprep.subr.bf16.mxu0 %v1384
    %1897 = vmatpush1.bf16.msra.mxu0 %v1383
    %1898 = vmatprep.subr.bf16.mxu0 %v1392
    %1899 = vmatpush1.bf16.msra.mxu0 %v1391
    %1900 = vmatprep.subr.bf16.mxu0 %v1400
    %1901 = vmatpush1.bf16.msra.mxu0 %v1399
    %1902 = vmatprep.subr.bf16.mxu0 %v1408
    %1903 = vmatpush1.bf16.msra.mxu0 %v1407
    %1904 = vmatprep.mubr.bf16.mxu0 %v382
    %1905 = vmatmul.mubr.bf16.gmra.mrb[0].mxu0 %v381
    %v1906 = vpop.f32.mrb[0].mxu0
    %v1907 = vadd.f32 %v1866, %v1906
    %v1908 = vpop.f32.mrb[0].mxu0
    %v1909 = vadd.f32 %v1868, %v1908
    %v1910 = vpop.f32.mrb[0].mxu0
    %v1911 = vpop.f32.mrb[0].mxu0
    %1912 = vdwg.mxu0
    %1913 = vmatprep.subr.bf16.mxu0 %v1162
    %1914 = vmatpush1.bf16.msra.mxu0 %v1161
    %1915 = vmatprep.subr.bf16.mxu0 %v1170
    %1916 = vmatpush1.bf16.msra.mxu0 %v1169
    %1917 = vmatprep.subr.bf16.mxu0 %v1178
    %1918 = vmatpush1.bf16.msra.mxu0 %v1177
    %1919 = vmatprep.subr.bf16.mxu0 %v1186
    %1920 = vmatpush1.bf16.msra.mxu0 %v1185
    %1921 = vmatprep.subr.bf16.mxu0 %v1194
    %1922 = vmatpush1.bf16.msra.mxu0 %v1193
    %1923 = vmatprep.subr.bf16.mxu0 %v1202
    %1924 = vmatpush1.bf16.msra.mxu0 %v1201
    %1925 = vmatprep.subr.bf16.mxu0 %v1210
    %1926 = vmatpush1.bf16.msra.mxu0 %v1209
    %1927 = vmatprep.subr.bf16.mxu0 %v1218
    %1928 = vmatpush1.bf16.msra.mxu0 %v1217
    %1929 = vmatprep.subr.bf16.mxu0 %v1226
    %1930 = vmatpush1.bf16.msra.mxu0 %v1225
    %1931 = vmatprep.subr.bf16.mxu0 %v1234
    %1932 = vmatpush1.bf16.msra.mxu0 %v1233
    %1933 = vmatprep.subr.bf16.mxu0 %v1242
    %1934 = vmatpush1.bf16.msra.mxu0 %v1241
    %1935 = vmatprep.subr.bf16.mxu0 %v1250
    %1936 = vmatpush1.bf16.msra.mxu0 %v1249
    %1937 = vmatprep.subr.bf16.mxu0 %v1258
    %1938 = vmatpush1.bf16.msra.mxu0 %v1257
    %1939 = vmatprep.subr.bf16.mxu0 %v1266
    %1940 = vmatpush1.bf16.msra.mxu0 %v1265
    %1941 = vmatprep.subr.bf16.mxu0 %v1274
    %1942 = vmatpush1.bf16.msra.mxu0 %v1273
    %1943 = vmatprep.subr.bf16.mxu0 %v1282
    %1944 = vmatpush1.bf16.msra.mxu0 %v1281
    %1945 = vmatprep.mubr.bf16.mxu0 %v380
    %1946 = vmatmul.mubr.bf16.gmra.mrb[0].mxu0 %v379
    %v1947 = vpop.f32.mrb[0].mxu0
    %v1948 = vadd.f32 %v360, %v1947
    %v1949 = vpop.f32.mrb[0].mxu0
    %v1950 = vadd.f32 %v364, %v1949
    %v1951 = vpop.f32.mrb[0].mxu0
    %v1952 = vpop.f32.mrb[0].mxu0
    %1953 = vdwg.mxu0
    %1954 = vmatprep.subr.bf16.mxu0 %v1290
    %1955 = vmatpush1.bf16.msra.mxu0 %v1289
    %1956 = vmatprep.subr.bf16.mxu0 %v1298
    %1957 = vmatpush1.bf16.msra.mxu0 %v1297
    %1958 = vmatprep.subr.bf16.mxu0 %v1306
    %1959 = vmatpush1.bf16.msra.mxu0 %v1305
    %1960 = vmatprep.subr.bf16.mxu0 %v1314
    %1961 = vmatpush1.bf16.msra.mxu0 %v1313
    %1962 = vmatprep.subr.bf16.mxu0 %v1322
    %1963 = vmatpush1.bf16.msra.mxu0 %v1321
    %1964 = vmatprep.subr.bf16.mxu0 %v1330
    %1965 = vmatpush1.bf16.msra.mxu0 %v1329
    %1966 = vmatprep.subr.bf16.mxu0 %v1338
    %1967 = vmatpush1.bf16.msra.mxu0 %v1337
    %1968 = vmatprep.subr.bf16.mxu0 %v1346
    %1969 = vmatpush1.bf16.msra.mxu0 %v1345
    %1970 = vmatprep.subr.bf16.mxu0 %v1354
    %1971 = vmatpush1.bf16.msra.mxu0 %v1353
    %1972 = vmatprep.subr.bf16.mxu0 %v1362
    %1973 = vmatpush1.bf16.msra.mxu0 %v1361
    %1974 = vmatprep.subr.bf16.mxu0 %v1370
    %1975 = vmatpush1.bf16.msra.mxu0 %v1369
    %1976 = vmatprep.subr.bf16.mxu0 %v1378
    %1977 = vmatpush1.bf16.msra.mxu0 %v1377
    %1978 = vmatprep.subr.bf16.mxu0 %v1386
    %1979 = vmatpush1.bf16.msra.mxu0 %v1385
    %1980 = vmatprep.subr.bf16.mxu0 %v1394
    %1981 = vmatpush1.bf16.msra.mxu0 %v1393
    %1982 = vmatprep.subr.bf16.mxu0 %v1402
    %1983 = vmatpush1.bf16.msra.mxu0 %v1401
    %1984 = vmatprep.subr.bf16.mxu0 %v1410
    %1985 = vmatpush1.bf16.msra.mxu0 %v1409
    %1986 = vmatprep.mubr.bf16.mxu0 %v382
    %1987 = vmatmul.mubr.bf16.gmra.mrb[0].mxu0 %v381
    %v1988 = vpop.f32.mrb[0].mxu0
    %v1989 = vadd.f32 %v1948, %v1988
    %v1990 = vpop.f32.mrb[0].mxu0
    %v1991 = vadd.f32 %v1950, %v1990
    %v1992 = vpop.f32.mrb[0].mxu0
    %v1993 = vpop.f32.mrb[0].mxu0
    %1994 = vdwg.mxu0
    %v1995 = vmax.f32 %v1743, 0.0
    %v1996 = vmax.f32 %v1745, 0.0
    %v1997 = vmax.f32 %v1825, 0.0
    %v1998 = vmax.f32 %v1827, 0.0
    %v1999 = vmax.f32 %v1907, 0.0
    %v2000 = vmax.f32 %v1909, 0.0
    %v2001 = vmax.f32 %v1989, 0.0
    %v2002 = vmax.f32 %v1991, 0.0
    %v2003 = vpack.c.bf16 %v1995, %v1995
    %v2004 = vpack.c.bf16 %v1996, %v1996
    %v2005 = vpack.c.bf16 %v1997, %v1997
    %v2006 = vpack.c.bf16 %v1998, %v1998
    %v2007 = vpack.c.bf16 %v1999, %v1999
    %v2008 = vpack.c.bf16 %v2000, %v2000
    %v2009 = vpack.c.bf16 %v2001, %v2001
    %v2010 = vpack.c.bf16 %v2002, %v2002
    %v2011 = vld [vmem:[#allocation7] sm:$0xff]
    %v2012 = vld [vmem:[#allocation7 + $0x8] sm:$0xff]
    %v2013 = vld [vmem:[#allocation7 + $0x10] sm:$0xff]
    %v2014 = vld [vmem:[#allocation7 + $0x18] sm:$0xf]
    %v2015 = vld [vmem:[#allocation7 + $0x1c] sm:$0xff]
    %v2016 = vld [vmem:[#allocation7 + $0x24] sm:$0xff]
    %v2017 = vld [vmem:[#allocation7 + $0x2c] sm:$0xff]
    %v2018 = vld [vmem:[#allocation7 + $0x34] sm:$0xf]
    %v2019 = vld [vmem:[#allocation7 + $0x38] sm:$0xff]
    %v2020 = vld [vmem:[#allocation7 + $0x40] sm:$0xff]
    %v2021 = vld [vmem:[#allocation7 + $0x48] sm:$0xff]
    %v2022 = vld [vmem:[#allocation7 + $0x50] sm:$0xf]
    %v2023 = vld [vmem:[#allocation7 + $0x54] sm:$0xff]
    %v2024 = vld [vmem:[#allocation7 + $0x5c] sm:$0xff]
    %v2025 = vld [vmem:[#allocation7 + $0x64] sm:$0xff]
    %v2026 = vld [vmem:[#allocation7 + $0x6c] sm:$0xf]
    %v2027 = vld [vmem:[#allocation7 + $0x70] sm:$0xff]
    %v2028 = vld [vmem:[#allocation7 + $0x78] sm:$0xff]
    %v2029 = vld [vmem:[#allocation7 + $0x80] sm:$0xff]
    %v2030 = vld [vmem:[#allocation7 + $0x88] sm:$0xf]
    %v2031 = vld [vmem:[#allocation7 + $0x8c] sm:$0xff]
    %v2032 = vld [vmem:[#allocation7 + $0x94] sm:$0xff]
    %v2033 = vld [vmem:[#allocation7 + $0x9c] sm:$0xff]
    %v2034 = vld [vmem:[#allocation7 + $0xa4] sm:$0xf]
    %v2035 = vld [vmem:[#allocation7 + $0xa8] sm:$0xff]
    %v2036 = vld [vmem:[#allocation7 + $0xb0] sm:$0xff]
    %v2037 = vld [vmem:[#allocation7 + $0xb8] sm:$0xff]
    %v2038 = vld [vmem:[#allocation7 + $0xc0] sm:$0xf]
    %v2039 = vld [vmem:[#allocation7 + $0xc4] sm:$0xff]
    %v2040 = vld [vmem:[#allocation7 + $0xcc] sm:$0xff]
    %v2041 = vld [vmem:[#allocation7 + $0xd4] sm:$0xff]
    %v2042 = vld [vmem:[#allocation7 + $0xdc] sm:$0xf]
    %v2043 = vld [vmem:[#allocation7 + $0xe0] sm:$0xff]
    %v2044 = vld [vmem:[#allocation7 + $0xe8] sm:$0xff]
    %v2045 = vld [vmem:[#allocation7 + $0xf0] sm:$0xff]
    %v2046 = vld [vmem:[#allocation7 + $0xf8] sm:$0xf]
    %v2047 = vld [vmem:[#allocation7 + $0xfc] sm:$0xff]
    %v2048 = vld [vmem:[#allocation7 + $0x104] sm:$0xff]
    %v2049 = vld [vmem:[#allocation7 + $0x10c] sm:$0xff]
    %v2050 = vld [vmem:[#allocation7 + $0x114] sm:$0xf]
    %v2051 = vld [vmem:[#allocation7 + $0x118] sm:$0xff]
    %v2052 = vld [vmem:[#allocation7 + $0x120] sm:$0xff]
    %v2053 = vld [vmem:[#allocation7 + $0x128] sm:$0xff]
    %v2054 = vld [vmem:[#allocation7 + $0x130] sm:$0xf]
    %v2055 = vld [vmem:[#allocation7 + $0x134] sm:$0xff]
    %v2056 = vld [vmem:[#allocation7 + $0x13c] sm:$0xff]
    %v2057 = vld [vmem:[#allocation7 + $0x144] sm:$0xff]
    %v2058 = vld [vmem:[#allocation7 + $0x14c] sm:$0xf]
    %v2059 = vld [vmem:[#allocation7 + $0x150] sm:$0xff]
    %v2060 = vld [vmem:[#allocation7 + $0x158] sm:$0xff]
    %v2061 = vld [vmem:[#allocation7 + $0x160] sm:$0xff]
    %v2062 = vld [vmem:[#allocation7 + $0x168] sm:$0xf]
    %v2063 = vld [vmem:[#allocation7 + $0x16c] sm:$0xff]
    %v2064 = vld [vmem:[#allocation7 + $0x174] sm:$0xff]
    %v2065 = vld [vmem:[#allocation7 + $0x17c] sm:$0xff]
    %v2066 = vld [vmem:[#allocation7 + $0x184] sm:$0xf]
    %v2067 = vld [vmem:[#allocation7 + $0x188] sm:$0xff]
    %v2068 = vld [vmem:[#allocation7 + $0x190] sm:$0xff]
    %v2069 = vld [vmem:[#allocation7 + $0x198] sm:$0xff]
    %v2070 = vld [vmem:[#allocation7 + $0x1a0] sm:$0xf]
    %v2071 = vld [vmem:[#allocation7 + $0x1a4] sm:$0xff]
    %v2072 = vld [vmem:[#allocation7 + $0x1ac] sm:$0xff]
    %v2073 = vld [vmem:[#allocation7 + $0x1b4] sm:$0xff]
    %v2074 = vld [vmem:[#allocation7 + $0x1bc] sm:$0xf]
    %v2075 = vld [vmem:[#allocation7 + $0x1c0] sm:$0xff]
    %v2076 = vld [vmem:[#allocation7 + $0x1c8] sm:$0xff]
    %v2077 = vld [vmem:[#allocation7 + $0x1d0] sm:$0xff]
    %v2078 = vld [vmem:[#allocation7 + $0x1d8] sm:$0xf]
    %v2079 = vld [vmem:[#allocation7 + $0x1dc] sm:$0xff]
    %v2080 = vld [vmem:[#allocation7 + $0x1e4] sm:$0xff]
    %v2081 = vld [vmem:[#allocation7 + $0x1ec] sm:$0xff]
    %v2082 = vld [vmem:[#allocation7 + $0x1f4] sm:$0xf]
    %v2083 = vld [vmem:[#allocation7 + $0x1f8] sm:$0xff]
    %v2084 = vld [vmem:[#allocation7 + $0x200] sm:$0xff]
    %v2085 = vld [vmem:[#allocation7 + $0x208] sm:$0xff]
    %v2086 = vld [vmem:[#allocation7 + $0x210] sm:$0xf]
    %v2087 = vld [vmem:[#allocation7 + $0x214] sm:$0xff]
    %v2088 = vld [vmem:[#allocation7 + $0x21c] sm:$0xff]
    %v2089 = vld [vmem:[#allocation7 + $0x224] sm:$0xff]
    %v2090 = vld [vmem:[#allocation7 + $0x22c] sm:$0xf]
    %v2091 = vld [vmem:[#allocation7 + $0x230] sm:$0xff]
    %v2092 = vld [vmem:[#allocation7 + $0x238] sm:$0xff]
    %v2093 = vld [vmem:[#allocation7 + $0x240] sm:$0xff]
    %v2094 = vld [vmem:[#allocation7 + $0x248] sm:$0xf]
    %v2095 = vld [vmem:[#allocation7 + $0x24c] sm:$0xff]
    %v2096 = vld [vmem:[#allocation7 + $0x254] sm:$0xff]
    %v2097 = vld [vmem:[#allocation7 + $0x25c] sm:$0xff]
    %v2098 = vld [vmem:[#allocation7 + $0x264] sm:$0xf]
    %v2099 = vld [vmem:[#allocation7 + $0x268] sm:$0xff]
    %v2100 = vld [vmem:[#allocation7 + $0x270] sm:$0xff]
    %v2101 = vld [vmem:[#allocation7 + $0x278] sm:$0xff]
    %v2102 = vld [vmem:[#allocation7 + $0x280] sm:$0xf]
    %v2103 = vld [vmem:[#allocation7 + $0x284] sm:$0xff]
    %v2104 = vld [vmem:[#allocation7 + $0x28c] sm:$0xff]
    %v2105 = vld [vmem:[#allocation7 + $0x294] sm:$0xff]
    %v2106 = vld [vmem:[#allocation7 + $0x29c] sm:$0xf]
    %v2107 = vld [vmem:[#allocation7 + $0x2a0] sm:$0xff]
    %v2108 = vld [vmem:[#allocation7 + $0x2a8] sm:$0xff]
    %v2109 = vld [vmem:[#allocation7 + $0x2b0] sm:$0xff]
    %v2110 = vld [vmem:[#allocation7 + $0x2b8] sm:$0xf]
    %v2111 = vld [vmem:[#allocation7 + $0x2bc] sm:$0xff]
    %v2112 = vld [vmem:[#allocation7 + $0x2c4] sm:$0xff]
    %v2113 = vld [vmem:[#allocation7 + $0x2cc] sm:$0xff]
    %v2114 = vld [vmem:[#allocation7 + $0x2d4] sm:$0xf]
    %v2115 = vld [vmem:[#allocation7 + $0x2d8] sm:$0xff]
    %v2116 = vld [vmem:[#allocation7 + $0x2e0] sm:$0xff]
    %v2117 = vld [vmem:[#allocation7 + $0x2e8] sm:$0xff]
    %v2118 = vld [vmem:[#allocation7 + $0x2f0] sm:$0xf]
    %v2119 = vld [vmem:[#allocation7 + $0x2f4] sm:$0xff]
    %v2120 = vld [vmem:[#allocation7 + $0x2fc] sm:$0xff]
    %v2121 = vld [vmem:[#allocation7 + $0x304] sm:$0xff]
    %v2122 = vld [vmem:[#allocation7 + $0x30c] sm:$0xf]
    %v2123 = vld [vmem:[#allocation7 + $0x310] sm:$0xff]
    %v2124 = vld [vmem:[#allocation7 + $0x318] sm:$0xff]
    %v2125 = vld [vmem:[#allocation7 + $0x320] sm:$0xff]
    %v2126 = vld [vmem:[#allocation7 + $0x328] sm:$0xf]
    %v2127 = vld [vmem:[#allocation7 + $0x32c] sm:$0xff]
    %v2128 = vld [vmem:[#allocation7 + $0x334] sm:$0xff]
    %v2129 = vld [vmem:[#allocation7 + $0x33c] sm:$0xff]
    %v2130 = vld [vmem:[#allocation7 + $0x344] sm:$0xf]
    %v2131 = vld [vmem:[#allocation7 + $0x348] sm:$0xff]
    %v2132 = vld [vmem:[#allocation7 + $0x350] sm:$0xff]
    %v2133 = vld [vmem:[#allocation7 + $0x358] sm:$0xff]
    %v2134 = vld [vmem:[#allocation7 + $0x360] sm:$0xf]
    %v2135 = vld [vmem:[#allocation7 + $0x364] sm:$0xff]
    %v2136 = vld [vmem:[#allocation7 + $0x36c] sm:$0xff]
    %v2137 = vld [vmem:[#allocation7 + $0x374] sm:$0xff]
    %v2138 = vld [vmem:[#allocation7 + $0x37c] sm:$0xf]
    %v2139 = vld [vmem:[#allocation7 + $0x380] sm:$0xff]
    %v2140 = vld [vmem:[#allocation7 + $0x388] sm:$0xff]
    %v2141 = vld [vmem:[#allocation7 + $0x390] sm:$0xff]
    %v2142 = vld [vmem:[#allocation7 + $0x398] sm:$0xf]
    %v2143 = vld [vmem:[#allocation7 + $0x39c] sm:$0xff]
    %v2144 = vld [vmem:[#allocation7 + $0x3a4] sm:$0xff]
    %v2145 = vld [vmem:[#allocation7 + $0x3ac] sm:$0xff]
    %v2146 = vld [vmem:[#allocation7 + $0x3b4] sm:$0xf]
    %v2147 = vld [vmem:[#allocation7 + $0x3b8] sm:$0xff]
    %v2148 = vld [vmem:[#allocation7 + $0x3c0] sm:$0xff]
    %v2149 = vld [vmem:[#allocation7 + $0x3c8] sm:$0xff]
    %v2150 = vld [vmem:[#allocation7 + $0x3d0] sm:$0xf]
    %v2151 = vld [vmem:[#allocation7 + $0x3d4] sm:$0xff]
    %v2152 = vld [vmem:[#allocation7 + $0x3dc] sm:$0xff]
    %v2153 = vld [vmem:[#allocation7 + $0x3e4] sm:$0xff]
    %v2154 = vld [vmem:[#allocation7 + $0x3ec] sm:$0xf]
    %v2155 = vld [vmem:[#allocation7 + $0x3f0] sm:$0xff]
    %v2156 = vld [vmem:[#allocation7 + $0x3f8] sm:$0xff]
    %v2157 = vld [vmem:[#allocation7 + $0x400] sm:$0xff]
    %v2158 = vld [vmem:[#allocation7 + $0x408] sm:$0xf]
    %v2159 = vld [vmem:[#allocation7 + $0x40c] sm:$0xff]
    %v2160 = vld [vmem:[#allocation7 + $0x414] sm:$0xff]
    %v2161 = vld [vmem:[#allocation7 + $0x41c] sm:$0xff]
    %v2162 = vld [vmem:[#allocation7 + $0x424] sm:$0xf]
    %v2163 = vld [vmem:[#allocation7 + $0x428] sm:$0xff]
    %v2164 = vld [vmem:[#allocation7 + $0x430] sm:$0xff]
    %v2165 = vld [vmem:[#allocation7 + $0x438] sm:$0xff]
    %v2166 = vld [vmem:[#allocation7 + $0x440] sm:$0xf]
    %v2167 = vld [vmem:[#allocation7 + $0x444] sm:$0xff]
    %v2168 = vld [vmem:[#allocation7 + $0x44c] sm:$0xff]
    %v2169 = vld [vmem:[#allocation7 + $0x454] sm:$0xff]
    %v2170 = vld [vmem:[#allocation7 + $0x45c] sm:$0xf]
    %v2171 = vld [vmem:[#allocation7 + $0x460] sm:$0xff]
    %v2172 = vld [vmem:[#allocation7 + $0x468] sm:$0xff]
    %v2173 = vld [vmem:[#allocation7 + $0x470] sm:$0xff]
    %v2174 = vld [vmem:[#allocation7 + $0x478] sm:$0xf]
    %v2175 = vld [vmem:[#allocation7 + $0x47c] sm:$0xff]
    %v2176 = vld [vmem:[#allocation7 + $0x484] sm:$0xff]
    %v2177 = vld [vmem:[#allocation7 + $0x48c] sm:$0xff]
    %v2178 = vld [vmem:[#allocation7 + $0x494] sm:$0xf]
    %v2179 = vld [vmem:[#allocation7 + $0x498] sm:$0xff]
    %v2180 = vld [vmem:[#allocation7 + $0x4a0] sm:$0xff]
    %v2181 = vld [vmem:[#allocation7 + $0x4a8] sm:$0xff]
    %v2182 = vld [vmem:[#allocation7 + $0x4b0] sm:$0xf]
    %v2183 = vld [vmem:[#allocation7 + $0x4b4] sm:$0xff]
    %v2184 = vld [vmem:[#allocation7 + $0x4bc] sm:$0xff]
    %v2185 = vld [vmem:[#allocation7 + $0x4c4] sm:$0xff]
    %v2186 = vld [vmem:[#allocation7 + $0x4cc] sm:$0xf]
    %v2187 = vld [vmem:[#allocation7 + $0x4d0] sm:$0xff]
    %v2188 = vld [vmem:[#allocation7 + $0x4d8] sm:$0xff]
    %v2189 = vld [vmem:[#allocation7 + $0x4e0] sm:$0xff]
    %v2190 = vld [vmem:[#allocation7 + $0x4e8] sm:$0xf]
    %v2191 = vld [vmem:[#allocation7 + $0x4ec] sm:$0xff]
    %v2192 = vld [vmem:[#allocation7 + $0x4f4] sm:$0xff]
    %v2193 = vld [vmem:[#allocation7 + $0x4fc] sm:$0xff]
    %v2194 = vld [vmem:[#allocation7 + $0x504] sm:$0xf]
    %v2195 = vld [vmem:[#allocation7 + $0x508] sm:$0xff]
    %v2196 = vld [vmem:[#allocation7 + $0x510] sm:$0xff]
    %v2197 = vld [vmem:[#allocation7 + $0x518] sm:$0xff]
    %v2198 = vld [vmem:[#allocation7 + $0x520] sm:$0xf]
    %v2199 = vld [vmem:[#allocation7 + $0x524] sm:$0xff]
    %v2200 = vld [vmem:[#allocation7 + $0x52c] sm:$0xff]
    %v2201 = vld [vmem:[#allocation7 + $0x534] sm:$0xff]
    %v2202 = vld [vmem:[#allocation7 + $0x53c] sm:$0xf]
    %v2203 = vld [vmem:[#allocation7 + $0x540] sm:$0xff]
    %v2204 = vld [vmem:[#allocation7 + $0x548] sm:$0xff]
    %v2205 = vld [vmem:[#allocation7 + $0x550] sm:$0xff]
    %v2206 = vld [vmem:[#allocation7 + $0x558] sm:$0xf]
    %v2207 = vld [vmem:[#allocation7 + $0x55c] sm:$0xff]
    %v2208 = vld [vmem:[#allocation7 + $0x564] sm:$0xff]
    %v2209 = vld [vmem:[#allocation7 + $0x56c] sm:$0xff]
    %v2210 = vld [vmem:[#allocation7 + $0x574] sm:$0xf]
    %v2211 = vld [vmem:[#allocation7 + $0x578] sm:$0xff]
    %v2212 = vld [vmem:[#allocation7 + $0x580] sm:$0xff]
    %v2213 = vld [vmem:[#allocation7 + $0x588] sm:$0xff]
    %v2214 = vld [vmem:[#allocation7 + $0x590] sm:$0xf]
    %v2215 = vld [vmem:[#allocation7 + $0x594] sm:$0xff]
    %v2216 = vld [vmem:[#allocation7 + $0x59c] sm:$0xff]
    %v2217 = vld [vmem:[#allocation7 + $0x5a4] sm:$0xff]
    %v2218 = vld [vmem:[#allocation7 + $0x5ac] sm:$0xf]
    %v2219 = vld [vmem:[#allocation7 + $0x5b0] sm:$0xff]
    %v2220 = vld [vmem:[#allocation7 + $0x5b8] sm:$0xff]
    %v2221 = vld [vmem:[#allocation7 + $0x5c0] sm:$0xff]
    %v2222 = vld [vmem:[#allocation7 + $0x5c8] sm:$0xf]
    %v2223 = vld [vmem:[#allocation7 + $0x5cc] sm:$0xff]
    %v2224 = vld [vmem:[#allocation7 + $0x5d4] sm:$0xff]
    %v2225 = vld [vmem:[#allocation7 + $0x5dc] sm:$0xff]
    %v2226 = vld [vmem:[#allocation7 + $0x5e4] sm:$0xf]
    %v2227 = vld [vmem:[#allocation7 + $0x5e8] sm:$0xff]
    %v2228 = vld [vmem:[#allocation7 + $0x5f0] sm:$0xff]
    %v2229 = vld [vmem:[#allocation7 + $0x5f8] sm:$0xff]
    %v2230 = vld [vmem:[#allocation7 + $0x600] sm:$0xf]
    %v2231 = vld [vmem:[#allocation7 + $0x604] sm:$0xff]
    %v2232 = vld [vmem:[#allocation7 + $0x60c] sm:$0xff]
    %v2233 = vld [vmem:[#allocation7 + $0x614] sm:$0xff]
    %v2234 = vld [vmem:[#allocation7 + $0x61c] sm:$0xf]
    %v2235 = vld [vmem:[#allocation7 + $0x620] sm:$0xff]
    %v2236 = vld [vmem:[#allocation7 + $0x628] sm:$0xff]
    %v2237 = vld [vmem:[#allocation7 + $0x630] sm:$0xff]
    %v2238 = vld [vmem:[#allocation7 + $0x638] sm:$0xf]
    %v2239 = vld [vmem:[#allocation7 + $0x63c] sm:$0xff]
    %v2240 = vld [vmem:[#allocation7 + $0x644] sm:$0xff]
    %v2241 = vld [vmem:[#allocation7 + $0x64c] sm:$0xff]
    %v2242 = vld [vmem:[#allocation7 + $0x654] sm:$0xf]
    %v2243 = vld [vmem:[#allocation7 + $0x658] sm:$0xff]
    %v2244 = vld [vmem:[#allocation7 + $0x660] sm:$0xff]
    %v2245 = vld [vmem:[#allocation7 + $0x668] sm:$0xff]
    %v2246 = vld [vmem:[#allocation7 + $0x670] sm:$0xf]
    %v2247 = vld [vmem:[#allocation7 + $0x674] sm:$0xff]
    %v2248 = vld [vmem:[#allocation7 + $0x67c] sm:$0xff]
    %v2249 = vld [vmem:[#allocation7 + $0x684] sm:$0xff]
    %v2250 = vld [vmem:[#allocation7 + $0x68c] sm:$0xf]
    %v2251 = vld [vmem:[#allocation7 + $0x690] sm:$0xff]
    %v2252 = vld [vmem:[#allocation7 + $0x698] sm:$0xff]
    %v2253 = vld [vmem:[#allocation7 + $0x6a0] sm:$0xff]
    %v2254 = vld [vmem:[#allocation7 + $0x6a8] sm:$0xf]
    %v2255 = vld [vmem:[#allocation7 + $0x6ac] sm:$0xff]
    %v2256 = vld [vmem:[#allocation7 + $0x6b4] sm:$0xff]
    %v2257 = vld [vmem:[#allocation7 + $0x6bc] sm:$0xff]
    %v2258 = vld [vmem:[#allocation7 + $0x6c4] sm:$0xf]
    %v2259 = vld [vmem:[#allocation7 + $0x6c8] sm:$0xff]
    %v2260 = vld [vmem:[#allocation7 + $0x6d0] sm:$0xff]
    %v2261 = vld [vmem:[#allocation7 + $0x6d8] sm:$0xff]
    %v2262 = vld [vmem:[#allocation7 + $0x6e0] sm:$0xf]
    %v2263 = vld [vmem:[#allocation7 + $0x6e4] sm:$0xff]
    %v2264 = vld [vmem:[#allocation7 + $0x6ec] sm:$0xff]
    %v2265 = vld [vmem:[#allocation7 + $0x6f4] sm:$0xff]
    %v2266 = vld [vmem:[#allocation7 + $0x6fc] sm:$0xf]
    %v2267 = vld [vmem:[#allocation7 + $0x700] sm:$0xff]
    %v2268 = vld [vmem:[#allocation7 + $0x708] sm:$0xff]
    %v2269 = vld [vmem:[#allocation7 + $0x710] sm:$0xff]
    %v2270 = vld [vmem:[#allocation7 + $0x718] sm:$0xf]
    %v2271 = vld [vmem:[#allocation7 + $0x71c] sm:$0xff]
    %v2272 = vld [vmem:[#allocation7 + $0x724] sm:$0xff]
    %v2273 = vld [vmem:[#allocation7 + $0x72c] sm:$0xff]
    %v2274 = vld [vmem:[#allocation7 + $0x734] sm:$0xf]
    %v2275 = vld [vmem:[#allocation7 + $0x738] sm:$0xff]
    %v2276 = vld [vmem:[#allocation7 + $0x740] sm:$0xff]
    %v2277 = vld [vmem:[#allocation7 + $0x748] sm:$0xff]
    %v2278 = vld [vmem:[#allocation7 + $0x750] sm:$0xf]
    %v2279 = vld [vmem:[#allocation7 + $0x754] sm:$0xff]
    %v2280 = vld [vmem:[#allocation7 + $0x75c] sm:$0xff]
    %v2281 = vld [vmem:[#allocation7 + $0x764] sm:$0xff]
    %v2282 = vld [vmem:[#allocation7 + $0x76c] sm:$0xf]
    %v2283 = vld [vmem:[#allocation7 + $0x770] sm:$0xff]
    %v2284 = vld [vmem:[#allocation7 + $0x778] sm:$0xff]
    %v2285 = vld [vmem:[#allocation7 + $0x780] sm:$0xff]
    %v2286 = vld [vmem:[#allocation7 + $0x788] sm:$0xf]
    %v2287 = vld [vmem:[#allocation7 + $0x78c] sm:$0xff]
    %v2288 = vld [vmem:[#allocation7 + $0x794] sm:$0xff]
    %v2289 = vld [vmem:[#allocation7 + $0x79c] sm:$0xff]
    %v2290 = vld [vmem:[#allocation7 + $0x7a4] sm:$0xf]
    %v2291 = vld [vmem:[#allocation7 + $0x7a8] sm:$0xff]
    %v2292 = vld [vmem:[#allocation7 + $0x7b0] sm:$0xff]
    %v2293 = vld [vmem:[#allocation7 + $0x7b8] sm:$0xff]
    %v2294 = vld [vmem:[#allocation7 + $0x7c0] sm:$0xf]
    %v2295 = vld [vmem:[#allocation7 + $0x7c4] sm:$0xff]
    %v2296 = vld [vmem:[#allocation7 + $0x7cc] sm:$0xff]
    %v2297 = vld [vmem:[#allocation7 + $0x7d4] sm:$0xff]
    %v2298 = vld [vmem:[#allocation7 + $0x7dc] sm:$0xf]
    %v2299 = vld [vmem:[#allocation7 + $0x7e0] sm:$0xff]
    %v2300 = vld [vmem:[#allocation7 + $0x7e8] sm:$0xff]
    %v2301 = vld [vmem:[#allocation7 + $0x7f0] sm:$0xff]
    %v2302 = vld [vmem:[#allocation7 + $0x7f8] sm:$0xf]
    %v2303 = vld [vmem:[#allocation7 + $0x7fc] sm:$0xff]
    %v2304 = vld [vmem:[#allocation7 + $0x804] sm:$0xff]
    %v2305 = vld [vmem:[#allocation7 + $0x80c] sm:$0xff]
    %v2306 = vld [vmem:[#allocation7 + $0x814] sm:$0xf]
    %v2307 = vld [vmem:[#allocation7 + $0x818] sm:$0xff]
    %v2308 = vld [vmem:[#allocation7 + $0x820] sm:$0xff]
    %v2309 = vld [vmem:[#allocation7 + $0x828] sm:$0xff]
    %v2310 = vld [vmem:[#allocation7 + $0x830] sm:$0xf]
    %v2311 = vld [vmem:[#allocation7 + $0x834] sm:$0xff]
    %v2312 = vld [vmem:[#allocation7 + $0x83c] sm:$0xff]
    %v2313 = vld [vmem:[#allocation7 + $0x844] sm:$0xff]
    %v2314 = vld [vmem:[#allocation7 + $0x84c] sm:$0xf]
    %v2315 = vld [vmem:[#allocation7 + $0x850] sm:$0xff]
    %v2316 = vld [vmem:[#allocation7 + $0x858] sm:$0xff]
    %v2317 = vld [vmem:[#allocation7 + $0x860] sm:$0xff]
    %v2318 = vld [vmem:[#allocation7 + $0x868] sm:$0xf]
    %v2319 = vld [vmem:[#allocation7 + $0x86c] sm:$0xff]
    %v2320 = vld [vmem:[#allocation7 + $0x874] sm:$0xff]
    %v2321 = vld [vmem:[#allocation7 + $0x87c] sm:$0xff]
    %v2322 = vld [vmem:[#allocation7 + $0x884] sm:$0xf]
    %v2323 = vld [vmem:[#allocation7 + $0x888] sm:$0xff]
    %v2324 = vld [vmem:[#allocation7 + $0x890] sm:$0xff]
    %v2325 = vld [vmem:[#allocation7 + $0x898] sm:$0xff]
    %v2326 = vld [vmem:[#allocation7 + $0x8a0] sm:$0xf]
    %v2327 = vld [vmem:[#allocation7 + $0x8a4] sm:$0xff]
    %v2328 = vld [vmem:[#allocation7 + $0x8ac] sm:$0xff]
    %v2329 = vld [vmem:[#allocation7 + $0x8b4] sm:$0xff]
    %v2330 = vld [vmem:[#allocation7 + $0x8bc] sm:$0xf]
    %v2331 = vld [vmem:[#allocation7 + $0x8c0] sm:$0xff]
    %v2332 = vld [vmem:[#allocation7 + $0x8c8] sm:$0xff]
    %v2333 = vld [vmem:[#allocation7 + $0x8d0] sm:$0xff]
    %v2334 = vld [vmem:[#allocation7 + $0x8d8] sm:$0xf]
    %v2335 = vld [vmem:[#allocation7 + $0x8dc] sm:$0xff]
    %v2336 = vld [vmem:[#allocation7 + $0x8e4] sm:$0xff]
    %v2337 = vld [vmem:[#allocation7 + $0x8ec] sm:$0xff]
    %v2338 = vld [vmem:[#allocation7 + $0x8f4] sm:$0xf]
    %v2339 = vld [vmem:[#allocation7 + $0x8f8] sm:$0xff]
    %v2340 = vld [vmem:[#allocation7 + $0x900] sm:$0xff]
    %v2341 = vld [vmem:[#allocation7 + $0x908] sm:$0xff]
    %v2342 = vld [vmem:[#allocation7 + $0x910] sm:$0xf]
    %v2343 = vld [vmem:[#allocation7 + $0x914] sm:$0xff]
    %v2344 = vld [vmem:[#allocation7 + $0x91c] sm:$0xff]
    %v2345 = vld [vmem:[#allocation7 + $0x924] sm:$0xff]
    %v2346 = vld [vmem:[#allocation7 + $0x92c] sm:$0xf]
    %v2347 = vld [vmem:[#allocation7 + $0x930] sm:$0xff]
    %v2348 = vld [vmem:[#allocation7 + $0x938] sm:$0xff]
    %v2349 = vld [vmem:[#allocation7 + $0x940] sm:$0xff]
    %v2350 = vld [vmem:[#allocation7 + $0x948] sm:$0xf]
    %v2351 = vld [vmem:[#allocation7 + $0x94c] sm:$0xff]
    %v2352 = vld [vmem:[#allocation7 + $0x954] sm:$0xff]
    %v2353 = vld [vmem:[#allocation7 + $0x95c] sm:$0xff]
    %v2354 = vld [vmem:[#allocation7 + $0x964] sm:$0xf]
    %v2355 = vld [vmem:[#allocation7 + $0x968] sm:$0xff]
    %v2356 = vld [vmem:[#allocation7 + $0x970] sm:$0xff]
    %v2357 = vld [vmem:[#allocation7 + $0x978] sm:$0xff]
    %v2358 = vld [vmem:[#allocation7 + $0x980] sm:$0xf]
    %v2359 = vld [vmem:[#allocation7 + $0x984] sm:$0xff]
    %v2360 = vld [vmem:[#allocation7 + $0x98c] sm:$0xff]
    %v2361 = vld [vmem:[#allocation7 + $0x994] sm:$0xff]
    %v2362 = vld [vmem:[#allocation7 + $0x99c] sm:$0xf]
    %v2363 = vld [vmem:[#allocation7 + $0x9a0] sm:$0xff]
    %v2364 = vld [vmem:[#allocation7 + $0x9a8] sm:$0xff]
    %v2365 = vld [vmem:[#allocation7 + $0x9b0] sm:$0xff]
    %v2366 = vld [vmem:[#allocation7 + $0x9b8] sm:$0xf]
    %v2367 = vld [vmem:[#allocation7 + $0x9bc] sm:$0xff]
    %v2368 = vld [vmem:[#allocation7 + $0x9c4] sm:$0xff]
    %v2369 = vld [vmem:[#allocation7 + $0x9cc] sm:$0xff]
    %v2370 = vld [vmem:[#allocation7 + $0x9d4] sm:$0xf]
    %v2371 = vld [vmem:[#allocation7 + $0x9d8] sm:$0xff]
    %v2372 = vld [vmem:[#allocation7 + $0x9e0] sm:$0xff]
    %v2373 = vld [vmem:[#allocation7 + $0x9e8] sm:$0xff]
    %v2374 = vld [vmem:[#allocation7 + $0x9f0] sm:$0xf]
    %v2375 = vld [vmem:[#allocation7 + $0x9f4] sm:$0xff]
    %v2376 = vld [vmem:[#allocation7 + $0x9fc] sm:$0xff]
    %v2377 = vld [vmem:[#allocation7 + $0xa04] sm:$0xff]
    %v2378 = vld [vmem:[#allocation7 + $0xa0c] sm:$0xf]
    %v2379 = vld [vmem:[#allocation7 + $0xa10] sm:$0xff]
    %v2380 = vld [vmem:[#allocation7 + $0xa18] sm:$0xff]
    %v2381 = vld [vmem:[#allocation7 + $0xa20] sm:$0xff]
    %v2382 = vld [vmem:[#allocation7 + $0xa28] sm:$0xf]
    %v2383 = vld [vmem:[#allocation7 + $0xa2c] sm:$0xff]
    %v2384 = vld [vmem:[#allocation7 + $0xa34] sm:$0xff]
    %v2385 = vld [vmem:[#allocation7 + $0xa3c] sm:$0xff]
    %v2386 = vld [vmem:[#allocation7 + $0xa44] sm:$0xf]
    %v2387 = vld [vmem:[#allocation7 + $0xa48] sm:$0xff]
    %v2388 = vld [vmem:[#allocation7 + $0xa50] sm:$0xff]
    %v2389 = vld [vmem:[#allocation7 + $0xa58] sm:$0xff]
    %v2390 = vld [vmem:[#allocation7 + $0xa60] sm:$0xf]
    %v2391 = vld [vmem:[#allocation7 + $0xa64] sm:$0xff]
    %v2392 = vld [vmem:[#allocation7 + $0xa6c] sm:$0xff]
    %v2393 = vld [vmem:[#allocation7 + $0xa74] sm:$0xff]
    %v2394 = vld [vmem:[#allocation7 + $0xa7c] sm:$0xf]
    %v2395 = vld [vmem:[#allocation7 + $0xa80] sm:$0xff]
    %v2396 = vld [vmem:[#allocation7 + $0xa88] sm:$0xff]
    %v2397 = vld [vmem:[#allocation7 + $0xa90] sm:$0xff]
    %v2398 = vld [vmem:[#allocation7 + $0xa98] sm:$0xf]
    %v2399 = vld [vmem:[#allocation7 + $0xa9c] sm:$0xff]
    %v2400 = vld [vmem:[#allocation7 + $0xaa4] sm:$0xff]
    %v2401 = vld [vmem:[#allocation7 + $0xaac] sm:$0xff]
    %v2402 = vld [vmem:[#allocation7 + $0xab4] sm:$0xf]
    %v2403 = vld [vmem:[#allocation7 + $0xab8] sm:$0xff]
    %v2404 = vld [vmem:[#allocation7 + $0xac0] sm:$0xff]
    %v2405 = vld [vmem:[#allocation7 + $0xac8] sm:$0xff]
    %v2406 = vld [vmem:[#allocation7 + $0xad0] sm:$0xf]
    %v2407 = vld [vmem:[#allocation7 + $0xad4] sm:$0xff]
    %v2408 = vld [vmem:[#allocation7 + $0xadc] sm:$0xff]
    %v2409 = vld [vmem:[#allocation7 + $0xae4] sm:$0xff]
    %v2410 = vld [vmem:[#allocation7 + $0xaec] sm:$0xf]
    %v2411 = vld [vmem:[#allocation7 + $0xaf0] sm:$0xff]
    %v2412 = vld [vmem:[#allocation7 + $0xaf8] sm:$0xff]
    %v2413 = vld [vmem:[#allocation7 + $0xb00] sm:$0xff]
    %v2414 = vld [vmem:[#allocation7 + $0xb08] sm:$0xf]
    %v2415 = vld [vmem:[#allocation7 + $0xb0c] sm:$0xff]
    %v2416 = vld [vmem:[#allocation7 + $0xb14] sm:$0xff]
    %v2417 = vld [vmem:[#allocation7 + $0xb1c] sm:$0xff]
    %v2418 = vld [vmem:[#allocation7 + $0xb24] sm:$0xf]
    %v2419 = vld [vmem:[#allocation7 + $0xb28] sm:$0xff]
    %v2420 = vld [vmem:[#allocation7 + $0xb30] sm:$0xff]
    %v2421 = vld [vmem:[#allocation7 + $0xb38] sm:$0xff]
    %v2422 = vld [vmem:[#allocation7 + $0xb40] sm:$0xf]
    %v2423 = vld [vmem:[#allocation7 + $0xb44] sm:$0xff]
    %v2424 = vld [vmem:[#allocation7 + $0xb4c] sm:$0xff]
    %v2425 = vld [vmem:[#allocation7 + $0xb54] sm:$0xff]
    %v2426 = vld [vmem:[#allocation7 + $0xb5c] sm:$0xf]
    %v2427 = vld [vmem:[#allocation7 + $0xb60] sm:$0xff]
    %v2428 = vld [vmem:[#allocation7 + $0xb68] sm:$0xff]
    %v2429 = vld [vmem:[#allocation7 + $0xb70] sm:$0xff]
    %v2430 = vld [vmem:[#allocation7 + $0xb78] sm:$0xf]
    %v2431 = vld [vmem:[#allocation7 + $0xb7c] sm:$0xff]
    %v2432 = vld [vmem:[#allocation7 + $0xb84] sm:$0xff]
    %v2433 = vld [vmem:[#allocation7 + $0xb8c] sm:$0xff]
    %v2434 = vld [vmem:[#allocation7 + $0xb94] sm:$0xf]
    %v2435 = vld [vmem:[#allocation7 + $0xb98] sm:$0xff]
    %v2436 = vld [vmem:[#allocation7 + $0xba0] sm:$0xff]
    %v2437 = vld [vmem:[#allocation7 + $0xba8] sm:$0xff]
    %v2438 = vld [vmem:[#allocation7 + $0xbb0] sm:$0xf]
    %v2439 = vld [vmem:[#allocation7 + $0xbb4] sm:$0xff]
    %v2440 = vld [vmem:[#allocation7 + $0xbbc] sm:$0xff]
    %v2441 = vld [vmem:[#allocation7 + $0xbc4] sm:$0xff]
    %v2442 = vld [vmem:[#allocation7 + $0xbcc] sm:$0xf]
    %v2443 = vld [vmem:[#allocation7 + $0xbd0] sm:$0xff]
    %v2444 = vld [vmem:[#allocation7 + $0xbd8] sm:$0xff]
    %v2445 = vld [vmem:[#allocation7 + $0xbe0] sm:$0xff]
    %v2446 = vld [vmem:[#allocation7 + $0xbe8] sm:$0xf]
    %v2447 = vld [vmem:[#allocation7 + $0xbec] sm:$0xff]
    %v2448 = vld [vmem:[#allocation7 + $0xbf4] sm:$0xff]
    %v2449 = vld [vmem:[#allocation7 + $0xbfc] sm:$0xff]
    %v2450 = vld [vmem:[#allocation7 + $0xc04] sm:$0xf]
    %v2451 = vld [vmem:[#allocation7 + $0xc08] sm:$0xff]
    %v2452 = vld [vmem:[#allocation7 + $0xc10] sm:$0xff]
    %v2453 = vld [vmem:[#allocation7 + $0xc18] sm:$0xff]
    %v2454 = vld [vmem:[#allocation7 + $0xc20] sm:$0xf]
    %v2455 = vld [vmem:[#allocation7 + $0xc24] sm:$0xff]
    %v2456 = vld [vmem:[#allocation7 + $0xc2c] sm:$0xff]
    %v2457 = vld [vmem:[#allocation7 + $0xc34] sm:$0xff]
    %v2458 = vld [vmem:[#allocation7 + $0xc3c] sm:$0xf]
    %v2459 = vld [vmem:[#allocation7 + $0xc40] sm:$0xff]
    %v2460 = vld [vmem:[#allocation7 + $0xc48] sm:$0xff]
    %v2461 = vld [vmem:[#allocation7 + $0xc50] sm:$0xff]
    %v2462 = vld [vmem:[#allocation7 + $0xc58] sm:$0xf]
    %v2463 = vld [vmem:[#allocation7 + $0xc5c] sm:$0xff]
    %v2464 = vld [vmem:[#allocation7 + $0xc64] sm:$0xff]
    %v2465 = vld [vmem:[#allocation7 + $0xc6c] sm:$0xff]
    %v2466 = vld [vmem:[#allocation7 + $0xc74] sm:$0xf]
    %v2467 = vld [vmem:[#allocation7 + $0xc78] sm:$0xff]
    %v2468 = vld [vmem:[#allocation7 + $0xc80] sm:$0xff]
    %v2469 = vld [vmem:[#allocation7 + $0xc88] sm:$0xff]
    %v2470 = vld [vmem:[#allocation7 + $0xc90] sm:$0xf]
    %v2471 = vld [vmem:[#allocation7 + $0xc94] sm:$0xff]
    %v2472 = vld [vmem:[#allocation7 + $0xc9c] sm:$0xff]
    %v2473 = vld [vmem:[#allocation7 + $0xca4] sm:$0xff]
    %v2474 = vld [vmem:[#allocation7 + $0xcac] sm:$0xf]
    %v2475 = vld [vmem:[#allocation7 + $0xcb0] sm:$0xff]
    %v2476 = vld [vmem:[#allocation7 + $0xcb8] sm:$0xff]
    %v2477 = vld [vmem:[#allocation7 + $0xcc0] sm:$0xff]
    %v2478 = vld [vmem:[#allocation7 + $0xcc8] sm:$0xf]
    %v2479 = vld [vmem:[#allocation7 + $0xccc] sm:$0xff]
    %v2480 = vld [vmem:[#allocation7 + $0xcd4] sm:$0xff]
    %v2481 = vld [vmem:[#allocation7 + $0xcdc] sm:$0xff]
    %v2482 = vld [vmem:[#allocation7 + $0xce4] sm:$0xf]
    %v2483 = vld [vmem:[#allocation7 + $0xce8] sm:$0xff]
    %v2484 = vld [vmem:[#allocation7 + $0xcf0] sm:$0xff]
    %v2485 = vld [vmem:[#allocation7 + $0xcf8] sm:$0xff]
    %v2486 = vld [vmem:[#allocation7 + $0xd00] sm:$0xf]
    %v2487 = vld [vmem:[#allocation7 + $0xd04] sm:$0xff]
    %v2488 = vld [vmem:[#allocation7 + $0xd0c] sm:$0xff]
    %v2489 = vld [vmem:[#allocation7 + $0xd14] sm:$0xff]
    %v2490 = vld [vmem:[#allocation7 + $0xd1c] sm:$0xf]
    %v2491 = vld [vmem:[#allocation7 + $0xd20] sm:$0xff]
    %v2492 = vld [vmem:[#allocation7 + $0xd28] sm:$0xff]
    %v2493 = vld [vmem:[#allocation7 + $0xd30] sm:$0xff]
    %v2494 = vld [vmem:[#allocation7 + $0xd38] sm:$0xf]
    %v2495 = vld [vmem:[#allocation7 + $0xd3c] sm:$0xff]
    %v2496 = vld [vmem:[#allocation7 + $0xd44] sm:$0xff]
    %v2497 = vld [vmem:[#allocation7 + $0xd4c] sm:$0xff]
    %v2498 = vld [vmem:[#allocation7 + $0xd54] sm:$0xf]
    %v2499 = vld [vmem:[#allocation7 + $0xd58] sm:$0xff]
    %v2500 = vld [vmem:[#allocation7 + $0xd60] sm:$0xff]
    %v2501 = vld [vmem:[#allocation7 + $0xd68] sm:$0xff]
    %v2502 = vld [vmem:[#allocation7 + $0xd70] sm:$0xf]
    %v2503 = vld [vmem:[#allocation7 + $0xd74] sm:$0xff]
    %v2504 = vld [vmem:[#allocation7 + $0xd7c] sm:$0xff]
    %v2505 = vld [vmem:[#allocation7 + $0xd84] sm:$0xff]
    %v2506 = vld [vmem:[#allocation7 + $0xd8c] sm:$0xf]
    %v2507 = vld [vmem:[#allocation7 + $0xd90] sm:$0xff]
    %v2508 = vld [vmem:[#allocation7 + $0xd98] sm:$0xff]
    %v2509 = vld [vmem:[#allocation7 + $0xda0] sm:$0xff]
    %v2510 = vld [vmem:[#allocation7 + $0xda8] sm:$0xf]
    %v2511 = vld [vmem:[#allocation7 + $0xdac] sm:$0xff]
    %v2512 = vld [vmem:[#allocation7 + $0xdb4] sm:$0xff]
    %v2513 = vld [vmem:[#allocation7 + $0xdbc] sm:$0xff]
    %v2514 = vld [vmem:[#allocation7 + $0xdc4] sm:$0xf]
    %v2515 = vld [vmem:[#allocation7 + $0xdc8] sm:$0xff]
    %v2516 = vld [vmem:[#allocation7 + $0xdd0] sm:$0xff]
    %v2517 = vld [vmem:[#allocation7 + $0xdd8] sm:$0xff]
    %v2518 = vld [vmem:[#allocation7 + $0xde0] sm:$0xf]
    %v2519 = vld [vmem:[#allocation7 + $0xde4] sm:$0xff]
    %v2520 = vld [vmem:[#allocation7 + $0xdec] sm:$0xff]
    %v2521 = vld [vmem:[#allocation7 + $0xdf4] sm:$0xff]
    %v2522 = vld [vmem:[#allocation7 + $0xdfc] sm:$0xf]
    %v2523 = vld [vmem:[#allocation8] sm:$0xff]
    %v2525 = vlaneseq
    %v2526 = vshrl.u32 %v2525, 7
    %v2527 = vsub.s32 0, %v2526
    %v2528 = vrot.slane %v2523, %v2527
    %v2529 = vlaneseq
    %v2530 = vshrl.u32 %v2529, 7
    %v2531 = vsub.s32 1, %v2530
    %v2532 = vrot.slane %v2523, %v2531
    %v2533 = vlaneseq
    %v2534 = vshrl.u32 %v2533, 7
    %v2535 = vsub.s32 2, %v2534
    %v2536 = vrot.slane %v2523, %v2535
    %v2537 = vlaneseq
    %v2538 = vshrl.u32 %v2537, 7
    %v2539 = vsub.s32 3, %v2538
    %v2540 = vrot.slane %v2523, %v2539
    %v2541 = vlaneseq
    %v2542 = vshrl.u32 %v2541, 7
    %v2543 = vsub.s32 4, %v2542
    %v2544 = vrot.slane %v2523, %v2543
    %v2545 = vlaneseq
    %v2546 = vshrl.u32 %v2545, 7
    %v2547 = vsub.s32 5, %v2546
    %v2548 = vrot.slane %v2523, %v2547
    %v2549 = vlaneseq
    %v2550 = vshrl.u32 %v2549, 7
    %v2551 = vsub.s32 6, %v2550
    %v2552 = vrot.slane %v2523, %v2551
    %v3072 = vunpack.c.l.b16 %v2011
    %v3073 = vunpack.c.h.b16 %v2011
    %v3074 = vunpack.c.l.b16 %v2012
    %v3075 = vunpack.c.h.b16 %v2012
    %v3076 = vunpack.c.l.b16 %v2013
    %v3077 = vunpack.c.h.b16 %v2013
    %v3078 = vunpack.c.l.b16 %v2014
    %v3079 = vunpack.c.l.b16 %v2015
    %v3080 = vunpack.c.h.b16 %v2015
    %v3081 = vunpack.c.l.b16 %v2016
    %v3082 = vunpack.c.h.b16 %v2016
    %v3083 = vunpack.c.l.b16 %v2017
    %v3084 = vunpack.c.h.b16 %v2017
    %v3085 = vunpack.c.l.b16 %v2018
    %v3086 = vunpack.c.l.b16 %v2019
    %v3087 = vunpack.c.h.b16 %v2019
    %v3088 = vunpack.c.l.b16 %v2020
    %v3089 = vunpack.c.h.b16 %v2020
    %v3090 = vunpack.c.l.b16 %v2021
    %v3091 = vunpack.c.h.b16 %v2021
    %v3092 = vunpack.c.l.b16 %v2022
    %v3093 = vunpack.c.l.b16 %v2023
    %v3094 = vunpack.c.h.b16 %v2023
    %v3095 = vunpack.c.l.b16 %v2024
    %v3096 = vunpack.c.h.b16 %v2024
    %v3097 = vunpack.c.l.b16 %v2025
    %v3098 = vunpack.c.h.b16 %v2025
    %v3099 = vunpack.c.l.b16 %v2026
    %v3100 = vunpack.c.l.b16 %v2027
    %v3101 = vunpack.c.h.b16 %v2027
    %v3102 = vunpack.c.l.b16 %v2028
    %v3103 = vunpack.c.h.b16 %v2028
    %v3104 = vunpack.c.l.b16 %v2029
    %v3105 = vunpack.c.h.b16 %v2029
    %v3106 = vunpack.c.l.b16 %v2030
    %v3107 = vunpack.c.l.b16 %v2031
    %v3108 = vunpack.c.h.b16 %v2031
    %v3109 = vunpack.c.l.b16 %v2032
    %v3110 = vunpack.c.h.b16 %v2032
    %v3111 = vunpack.c.l.b16 %v2033
    %v3112 = vunpack.c.h.b16 %v2033
    %v3113 = vunpack.c.l.b16 %v2034
    %v3114 = vunpack.c.l.b16 %v2035
    %v3115 = vunpack.c.h.b16 %v2035
    %v3116 = vunpack.c.l.b16 %v2036
    %v3117 = vunpack.c.h.b16 %v2036
    %v3118 = vunpack.c.l.b16 %v2037
    %v3119 = vunpack.c.h.b16 %v2037
    %v3120 = vunpack.c.l.b16 %v2038
    %v3121 = vunpack.c.l.b16 %v2039
    %v3122 = vunpack.c.h.b16 %v2039
    %v3123 = vunpack.c.l.b16 %v2040
    %v3124 = vunpack.c.h.b16 %v2040
    %v3125 = vunpack.c.l.b16 %v2041
    %v3126 = vunpack.c.h.b16 %v2041
    %v3127 = vunpack.c.l.b16 %v2042
    %v3128 = vunpack.c.l.b16 %v2043
    %v3129 = vunpack.c.h.b16 %v2043
    %v3130 = vunpack.c.l.b16 %v2044
    %v3131 = vunpack.c.h.b16 %v2044
    %v3132 = vunpack.c.l.b16 %v2045
    %v3133 = vunpack.c.h.b16 %v2045
    %v3134 = vunpack.c.l.b16 %v2046
    %v3135 = vunpack.c.l.b16 %v2047
    %v3136 = vunpack.c.h.b16 %v2047
    %v3137 = vunpack.c.l.b16 %v2048
    %v3138 = vunpack.c.h.b16 %v2048
    %v3139 = vunpack.c.l.b16 %v2049
    %v3140 = vunpack.c.h.b16 %v2049
    %v3141 = vunpack.c.l.b16 %v2050
    %v3142 = vunpack.c.l.b16 %v2051
    %v3143 = vunpack.c.h.b16 %v2051
    %v3144 = vunpack.c.l.b16 %v2052
    %v3145 = vunpack.c.h.b16 %v2052
    %v3146 = vunpack.c.l.b16 %v2053
    %v3147 = vunpack.c.h.b16 %v2053
    %v3148 = vunpack.c.l.b16 %v2054
    %v3149 = vunpack.c.l.b16 %v2055
    %v3150 = vunpack.c.h.b16 %v2055
    %v3151 = vunpack.c.l.b16 %v2056
    %v3152 = vunpack.c.h.b16 %v2056
    %v3153 = vunpack.c.l.b16 %v2057
    %v3154 = vunpack.c.h.b16 %v2057
    %v3155 = vunpack.c.l.b16 %v2058
    %v3156 = vunpack.c.l.b16 %v2059
    %v3157 = vunpack.c.h.b16 %v2059
    %v3158 = vunpack.c.l.b16 %v2060
    %v3159 = vunpack.c.h.b16 %v2060
    %v3160 = vunpack.c.l.b16 %v2061
    %v3161 = vunpack.c.h.b16 %v2061
    %v3162 = vunpack.c.l.b16 %v2062
    %v3163 = vunpack.c.l.b16 %v2063
    %v3164 = vunpack.c.h.b16 %v2063
    %v3165 = vunpack.c.l.b16 %v2064
    %v3166 = vunpack.c.h.b16 %v2064
    %v3167 = vunpack.c.l.b16 %v2065
    %v3168 = vunpack.c.h.b16 %v2065
    %v3169 = vunpack.c.l.b16 %v2066
    %v3170 = vunpack.c.l.b16 %v2067
    %v3171 = vunpack.c.h.b16 %v2067
    %v3172 = vunpack.c.l.b16 %v2068
    %v3173 = vunpack.c.h.b16 %v2068
    %v3174 = vunpack.c.l.b16 %v2069
    %v3175 = vunpack.c.h.b16 %v2069
    %v3176 = vunpack.c.l.b16 %v2070
    %v3177 = vunpack.c.l.b16 %v2071
    %v3178 = vunpack.c.h.b16 %v2071
    %v3179 = vunpack.c.l.b16 %v2072
    %v3180 = vunpack.c.h.b16 %v2072
    %v3181 = vunpack.c.l.b16 %v2073
    %v3182 = vunpack.c.h.b16 %v2073
    %v3183 = vunpack.c.l.b16 %v2074
    %v3184 = vunpack.c.l.b16 %v2075
    %v3185 = vunpack.c.h.b16 %v2075
    %v3186 = vunpack.c.l.b16 %v2076
    %v3187 = vunpack.c.h.b16 %v2076
    %v3188 = vunpack.c.l.b16 %v2077
    %v3189 = vunpack.c.h.b16 %v2077
    %v3190 = vunpack.c.l.b16 %v2078
    %v3191 = vunpack.c.l.b16 %v2079
    %v3192 = vunpack.c.h.b16 %v2079
    %v3193 = vunpack.c.l.b16 %v2080
    %v3194 = vunpack.c.h.b16 %v2080
    %v3195 = vunpack.c.l.b16 %v2081
    %v3196 = vunpack.c.h.b16 %v2081
    %v3197 = vunpack.c.l.b16 %v2082
    %v3198 = vunpack.c.l.b16 %v2083
    %v3199 = vunpack.c.h.b16 %v2083
    %v3200 = vunpack.c.l.b16 %v2084
    %v3201 = vunpack.c.h.b16 %v2084
    %v3202 = vunpack.c.l.b16 %v2085
    %v3203 = vunpack.c.h.b16 %v2085
    %v3204 = vunpack.c.l.b16 %v2086
    %v3205 = vunpack.c.l.b16 %v2087
    %v3206 = vunpack.c.h.b16 %v2087
    %v3207 = vunpack.c.l.b16 %v2088
    %v3208 = vunpack.c.h.b16 %v2088
    %v3209 = vunpack.c.l.b16 %v2089
    %v3210 = vunpack.c.h.b16 %v2089
    %v3211 = vunpack.c.l.b16 %v2090
    %v3212 = vunpack.c.l.b16 %v2091
    %v3213 = vunpack.c.h.b16 %v2091
    %v3214 = vunpack.c.l.b16 %v2092
    %v3215 = vunpack.c.h.b16 %v2092
    %v3216 = vunpack.c.l.b16 %v2093
    %v3217 = vunpack.c.h.b16 %v2093
    %v3218 = vunpack.c.l.b16 %v2094
    %v3219 = vunpack.c.l.b16 %v2095
    %v3220 = vunpack.c.h.b16 %v2095
    %v3221 = vunpack.c.l.b16 %v2096
    %v3222 = vunpack.c.h.b16 %v2096
    %v3223 = vunpack.c.l.b16 %v2097
    %v3224 = vunpack.c.h.b16 %v2097
    %v3225 = vunpack.c.l.b16 %v2098
    %v3226 = vunpack.c.l.b16 %v2099
    %v3227 = vunpack.c.h.b16 %v2099
    %v3228 = vunpack.c.l.b16 %v2100
    %v3229 = vunpack.c.h.b16 %v2100
    %v3230 = vunpack.c.l.b16 %v2101
    %v3231 = vunpack.c.h.b16 %v2101
    %v3232 = vunpack.c.l.b16 %v2102
    %v3233 = vunpack.c.l.b16 %v2103
    %v3234 = vunpack.c.h.b16 %v2103
    %v3235 = vunpack.c.l.b16 %v2104
    %v3236 = vunpack.c.h.b16 %v2104
    %v3237 = vunpack.c.l.b16 %v2105
    %v3238 = vunpack.c.h.b16 %v2105
    %v3239 = vunpack.c.l.b16 %v2106
    %v3240 = vunpack.c.l.b16 %v2107
    %v3241 = vunpack.c.h.b16 %v2107
    %v3242 = vunpack.c.l.b16 %v2108
    %v3243 = vunpack.c.h.b16 %v2108
    %v3244 = vunpack.c.l.b16 %v2109
    %v3245 = vunpack.c.h.b16 %v2109
    %v3246 = vunpack.c.l.b16 %v2110
    %v3247 = vunpack.c.l.b16 %v2111
    %v3248 = vunpack.c.h.b16 %v2111
    %v3249 = vunpack.c.l.b16 %v2112
    %v3250 = vunpack.c.h.b16 %v2112
    %v3251 = vunpack.c.l.b16 %v2113
    %v3252 = vunpack.c.h.b16 %v2113
    %v3253 = vunpack.c.l.b16 %v2114
    %v3254 = vunpack.c.l.b16 %v2115
    %v3255 = vunpack.c.h.b16 %v2115
    %v3256 = vunpack.c.l.b16 %v2116
    %v3257 = vunpack.c.h.b16 %v2116
    %v3258 = vunpack.c.l.b16 %v2117
    %v3259 = vunpack.c.h.b16 %v2117
    %v3260 = vunpack.c.l.b16 %v2118
    %v3261 = vunpack.c.l.b16 %v2119
    %v3262 = vunpack.c.h.b16 %v2119
    %v3263 = vunpack.c.l.b16 %v2120
    %v3264 = vunpack.c.h.b16 %v2120
    %v3265 = vunpack.c.l.b16 %v2121
    %v3266 = vunpack.c.h.b16 %v2121
    %v3267 = vunpack.c.l.b16 %v2122
    %v3268 = vunpack.c.l.b16 %v2123
    %v3269 = vunpack.c.h.b16 %v2123
    %v3270 = vunpack.c.l.b16 %v2124
    %v3271 = vunpack.c.h.b16 %v2124
    %v3272 = vunpack.c.l.b16 %v2125
    %v3273 = vunpack.c.h.b16 %v2125
    %v3274 = vunpack.c.l.b16 %v2126
    %v3275 = vunpack.c.l.b16 %v2127
    %v3276 = vunpack.c.h.b16 %v2127
    %v3277 = vunpack.c.l.b16 %v2128
    %v3278 = vunpack.c.h.b16 %v2128
    %v3279 = vunpack.c.l.b16 %v2129
    %v3280 = vunpack.c.h.b16 %v2129
    %v3281 = vunpack.c.l.b16 %v2130
    %v3282 = vunpack.c.l.b16 %v2131
    %v3283 = vunpack.c.h.b16 %v2131
    %v3284 = vunpack.c.l.b16 %v2132
    %v3285 = vunpack.c.h.b16 %v2132
    %v3286 = vunpack.c.l.b16 %v2133
    %v3287 = vunpack.c.h.b16 %v2133
    %v3288 = vunpack.c.l.b16 %v2134
    %v3289 = vunpack.c.l.b16 %v2135
    %v3290 = vunpack.c.h.b16 %v2135
    %v3291 = vunpack.c.l.b16 %v2136
    %v3292 = vunpack.c.h.b16 %v2136
    %v3293 = vunpack.c.l.b16 %v2137
    %v3294 = vunpack.c.h.b16 %v2137
    %v3295 = vunpack.c.l.b16 %v2138
    %v3296 = vunpack.c.l.b16 %v2139
    %v3297 = vunpack.c.h.b16 %v2139
    %v3298 = vunpack.c.l.b16 %v2140
    %v3299 = vunpack.c.h.b16 %v2140
    %v3300 = vunpack.c.l.b16 %v2141
    %v3301 = vunpack.c.h.b16 %v2141
    %v3302 = vunpack.c.l.b16 %v2142
    %v3303 = vunpack.c.l.b16 %v2143
    %v3304 = vunpack.c.h.b16 %v2143
    %v3305 = vunpack.c.l.b16 %v2144
    %v3306 = vunpack.c.h.b16 %v2144
    %v3307 = vunpack.c.l.b16 %v2145
    %v3308 = vunpack.c.h.b16 %v2145
    %v3309 = vunpack.c.l.b16 %v2146
    %v3310 = vunpack.c.l.b16 %v2147
    %v3311 = vunpack.c.h.b16 %v2147
    %v3312 = vunpack.c.l.b16 %v2148
    %v3313 = vunpack.c.h.b16 %v2148
    %v3314 = vunpack.c.l.b16 %v2149
    %v3315 = vunpack.c.h.b16 %v2149
    %v3316 = vunpack.c.l.b16 %v2150
    %v3317 = vunpack.c.l.b16 %v2151
    %v3318 = vunpack.c.h.b16 %v2151
    %v3319 = vunpack.c.l.b16 %v2152
    %v3320 = vunpack.c.h.b16 %v2152
    %v3321 = vunpack.c.l.b16 %v2153
    %v3322 = vunpack.c.h.b16 %v2153
    %v3323 = vunpack.c.l.b16 %v2154
    %v3324 = vunpack.c.l.b16 %v2155
    %v3325 = vunpack.c.h.b16 %v2155
    %v3326 = vunpack.c.l.b16 %v2156
    %v3327 = vunpack.c.h.b16 %v2156
    %v3328 = vunpack.c.l.b16 %v2157
    %v3329 = vunpack.c.h.b16 %v2157
    %v3330 = vunpack.c.l.b16 %v2158
    %v3331 = vunpack.c.l.b16 %v2159
    %v3332 = vunpack.c.h.b16 %v2159
    %v3333 = vunpack.c.l.b16 %v2160
    %v3334 = vunpack.c.h.b16 %v2160
    %v3335 = vunpack.c.l.b16 %v2161
    %v3336 = vunpack.c.h.b16 %v2161
    %v3337 = vunpack.c.l.b16 %v2162
    %v3338 = vunpack.c.l.b16 %v2163
    %v3339 = vunpack.c.h.b16 %v2163
    %v3340 = vunpack.c.l.b16 %v2164
    %v3341 = vunpack.c.h.b16 %v2164
    %v3342 = vunpack.c.l.b16 %v2165
    %v3343 = vunpack.c.h.b16 %v2165
    %v3344 = vunpack.c.l.b16 %v2166
    %v3345 = vunpack.c.l.b16 %v2167
    %v3346 = vunpack.c.h.b16 %v2167
    %v3347 = vunpack.c.l.b16 %v2168
    %v3348 = vunpack.c.h.b16 %v2168
    %v3349 = vunpack.c.l.b16 %v2169
    %v3350 = vunpack.c.h.b16 %v2169
    %v3351 = vunpack.c.l.b16 %v2170
    %v3352 = vunpack.c.l.b16 %v2171
    %v3353 = vunpack.c.h.b16 %v2171
    %v3354 = vunpack.c.l.b16 %v2172
    %v3355 = vunpack.c.h.b16 %v2172
    %v3356 = vunpack.c.l.b16 %v2173
    %v3357 = vunpack.c.h.b16 %v2173
    %v3358 = vunpack.c.l.b16 %v2174
    %v3359 = vunpack.c.l.b16 %v2175
    %v3360 = vunpack.c.h.b16 %v2175
    %v3361 = vunpack.c.l.b16 %v2176
    %v3362 = vunpack.c.h.b16 %v2176
    %v3363 = vunpack.c.l.b16 %v2177
    %v3364 = vunpack.c.h.b16 %v2177
    %v3365 = vunpack.c.l.b16 %v2178
    %v3366 = vunpack.c.l.b16 %v2179
    %v3367 = vunpack.c.h.b16 %v2179
    %v3368 = vunpack.c.l.b16 %v2180
    %v3369 = vunpack.c.h.b16 %v2180
    %v3370 = vunpack.c.l.b16 %v2181
    %v3371 = vunpack.c.h.b16 %v2181
    %v3372 = vunpack.c.l.b16 %v2182
    %v3373 = vunpack.c.l.b16 %v2183
    %v3374 = vunpack.c.h.b16 %v2183
    %v3375 = vunpack.c.l.b16 %v2184
    %v3376 = vunpack.c.h.b16 %v2184
    %v3377 = vunpack.c.l.b16 %v2185
    %v3378 = vunpack.c.h.b16 %v2185
    %v3379 = vunpack.c.l.b16 %v2186
    %v3380 = vunpack.c.l.b16 %v2187
    %v3381 = vunpack.c.h.b16 %v2187
    %v3382 = vunpack.c.l.b16 %v2188
    %v3383 = vunpack.c.h.b16 %v2188
    %v3384 = vunpack.c.l.b16 %v2189
    %v3385 = vunpack.c.h.b16 %v2189
    %v3386 = vunpack.c.l.b16 %v2190
    %v3387 = vunpack.c.l.b16 %v2191
    %v3388 = vunpack.c.h.b16 %v2191
    %v3389 = vunpack.c.l.b16 %v2192
    %v3390 = vunpack.c.h.b16 %v2192
    %v3391 = vunpack.c.l.b16 %v2193
    %v3392 = vunpack.c.h.b16 %v2193
    %v3393 = vunpack.c.l.b16 %v2194
    %v3394 = vunpack.c.l.b16 %v2195
    %v3395 = vunpack.c.h.b16 %v2195
    %v3396 = vunpack.c.l.b16 %v2196
    %v3397 = vunpack.c.h.b16 %v2196
    %v3398 = vunpack.c.l.b16 %v2197
    %v3399 = vunpack.c.h.b16 %v2197
    %v3400 = vunpack.c.l.b16 %v2198
    %v3401 = vunpack.c.l.b16 %v2199
    %v3402 = vunpack.c.h.b16 %v2199
    %v3403 = vunpack.c.l.b16 %v2200
    %v3404 = vunpack.c.h.b16 %v2200
    %v3405 = vunpack.c.l.b16 %v2201
    %v3406 = vunpack.c.h.b16 %v2201
    %v3407 = vunpack.c.l.b16 %v2202
    %v3408 = vunpack.c.l.b16 %v2203
    %v3409 = vunpack.c.h.b16 %v2203
    %v3410 = vunpack.c.l.b16 %v2204
    %v3411 = vunpack.c.h.b16 %v2204
    %v3412 = vunpack.c.l.b16 %v2205
    %v3413 = vunpack.c.h.b16 %v2205
    %v3414 = vunpack.c.l.b16 %v2206
    %v3415 = vunpack.c.l.b16 %v2207
    %v3416 = vunpack.c.h.b16 %v2207
    %v3417 = vunpack.c.l.b16 %v2208
    %v3418 = vunpack.c.h.b16 %v2208
    %v3419 = vunpack.c.l.b16 %v2209
    %v3420 = vunpack.c.h.b16 %v2209
    %v3421 = vunpack.c.l.b16 %v2210
    %v3422 = vunpack.c.l.b16 %v2211
    %v3423 = vunpack.c.h.b16 %v2211
    %v3424 = vunpack.c.l.b16 %v2212
    %v3425 = vunpack.c.h.b16 %v2212
    %v3426 = vunpack.c.l.b16 %v2213
    %v3427 = vunpack.c.h.b16 %v2213
    %v3428 = vunpack.c.l.b16 %v2214
    %v3429 = vunpack.c.l.b16 %v2215
    %v3430 = vunpack.c.h.b16 %v2215
    %v3431 = vunpack.c.l.b16 %v2216
    %v3432 = vunpack.c.h.b16 %v2216
    %v3433 = vunpack.c.l.b16 %v2217
    %v3434 = vunpack.c.h.b16 %v2217
    %v3435 = vunpack.c.l.b16 %v2218
    %v3436 = vunpack.c.l.b16 %v2219
    %v3437 = vunpack.c.h.b16 %v2219
    %v3438 = vunpack.c.l.b16 %v2220
    %v3439 = vunpack.c.h.b16 %v2220
    %v3440 = vunpack.c.l.b16 %v2221
    %v3441 = vunpack.c.h.b16 %v2221
    %v3442 = vunpack.c.l.b16 %v2222
    %v3443 = vunpack.c.l.b16 %v2223
    %v3444 = vunpack.c.h.b16 %v2223
    %v3445 = vunpack.c.l.b16 %v2224
    %v3446 = vunpack.c.h.b16 %v2224
    %v3447 = vunpack.c.l.b16 %v2225
    %v3448 = vunpack.c.h.b16 %v2225
    %v3449 = vunpack.c.l.b16 %v2226
    %v3450 = vunpack.c.l.b16 %v2227
    %v3451 = vunpack.c.h.b16 %v2227
    %v3452 = vunpack.c.l.b16 %v2228
    %v3453 = vunpack.c.h.b16 %v2228
    %v3454 = vunpack.c.l.b16 %v2229
    %v3455 = vunpack.c.h.b16 %v2229
    %v3456 = vunpack.c.l.b16 %v2230
    %v3457 = vunpack.c.l.b16 %v2231
    %v3458 = vunpack.c.h.b16 %v2231
    %v3459 = vunpack.c.l.b16 %v2232
    %v3460 = vunpack.c.h.b16 %v2232
    %v3461 = vunpack.c.l.b16 %v2233
    %v3462 = vunpack.c.h.b16 %v2233
    %v3463 = vunpack.c.l.b16 %v2234
    %v3464 = vunpack.c.l.b16 %v2235
    %v3465 = vunpack.c.h.b16 %v2235
    %v3466 = vunpack.c.l.b16 %v2236
    %v3467 = vunpack.c.h.b16 %v2236
    %v3468 = vunpack.c.l.b16 %v2237
    %v3469 = vunpack.c.h.b16 %v2237
    %v3470 = vunpack.c.l.b16 %v2238
    %v3471 = vunpack.c.l.b16 %v2239
    %v3472 = vunpack.c.h.b16 %v2239
    %v3473 = vunpack.c.l.b16 %v2240
    %v3474 = vunpack.c.h.b16 %v2240
    %v3475 = vunpack.c.l.b16 %v2241
    %v3476 = vunpack.c.h.b16 %v2241
    %v3477 = vunpack.c.l.b16 %v2242
    %v3478 = vunpack.c.l.b16 %v2243
    %v3479 = vunpack.c.h.b16 %v2243
    %v3480 = vunpack.c.l.b16 %v2244
    %v3481 = vunpack.c.h.b16 %v2244
    %v3482 = vunpack.c.l.b16 %v2245
    %v3483 = vunpack.c.h.b16 %v2245
    %v3484 = vunpack.c.l.b16 %v2246
    %v3485 = vunpack.c.l.b16 %v2247
    %v3486 = vunpack.c.h.b16 %v2247
    %v3487 = vunpack.c.l.b16 %v2248
    %v3488 = vunpack.c.h.b16 %v2248
    %v3489 = vunpack.c.l.b16 %v2249
    %v3490 = vunpack.c.h.b16 %v2249
    %v3491 = vunpack.c.l.b16 %v2250
    %v3492 = vunpack.c.l.b16 %v2251
    %v3493 = vunpack.c.h.b16 %v2251
    %v3494 = vunpack.c.l.b16 %v2252
    %v3495 = vunpack.c.h.b16 %v2252
    %v3496 = vunpack.c.l.b16 %v2253
    %v3497 = vunpack.c.h.b16 %v2253
    %v3498 = vunpack.c.l.b16 %v2254
    %v3499 = vunpack.c.l.b16 %v2255
    %v3500 = vunpack.c.h.b16 %v2255
    %v3501 = vunpack.c.l.b16 %v2256
    %v3502 = vunpack.c.h.b16 %v2256
    %v3503 = vunpack.c.l.b16 %v2257
    %v3504 = vunpack.c.h.b16 %v2257
    %v3505 = vunpack.c.l.b16 %v2258
    %v3506 = vunpack.c.l.b16 %v2259
    %v3507 = vunpack.c.h.b16 %v2259
    %v3508 = vunpack.c.l.b16 %v2260
    %v3509 = vunpack.c.h.b16 %v2260
    %v3510 = vunpack.c.l.b16 %v2261
    %v3511 = vunpack.c.h.b16 %v2261
    %v3512 = vunpack.c.l.b16 %v2262
    %v3513 = vunpack.c.l.b16 %v2263
    %v3514 = vunpack.c.h.b16 %v2263
    %v3515 = vunpack.c.l.b16 %v2264
    %v3516 = vunpack.c.h.b16 %v2264
    %v3517 = vunpack.c.l.b16 %v2265
    %v3518 = vunpack.c.h.b16 %v2265
    %v3519 = vunpack.c.l.b16 %v2266
    %v3520 = vunpack.c.l.b16 %v2267
    %v3521 = vunpack.c.h.b16 %v2267
    %v3522 = vunpack.c.l.b16 %v2268
    %v3523 = vunpack.c.h.b16 %v2268
    %v3524 = vunpack.c.l.b16 %v2269
    %v3525 = vunpack.c.h.b16 %v2269
    %v3526 = vunpack.c.l.b16 %v2270
    %v3527 = vunpack.c.l.b16 %v2271
    %v3528 = vunpack.c.h.b16 %v2271
    %v3529 = vunpack.c.l.b16 %v2272
    %v3530 = vunpack.c.h.b16 %v2272
    %v3531 = vunpack.c.l.b16 %v2273
    %v3532 = vunpack.c.h.b16 %v2273
    %v3533 = vunpack.c.l.b16 %v2274
    %v3534 = vunpack.c.l.b16 %v2275
    %v3535 = vunpack.c.h.b16 %v2275
    %v3536 = vunpack.c.l.b16 %v2276
    %v3537 = vunpack.c.h.b16 %v2276
    %v3538 = vunpack.c.l.b16 %v2277
    %v3539 = vunpack.c.h.b16 %v2277
    %v3540 = vunpack.c.l.b16 %v2278
    %v3541 = vunpack.c.l.b16 %v2279
    %v3542 = vunpack.c.h.b16 %v2279
    %v3543 = vunpack.c.l.b16 %v2280
    %v3544 = vunpack.c.h.b16 %v2280
    %v3545 = vunpack.c.l.b16 %v2281
    %v3546 = vunpack.c.h.b16 %v2281
    %v3547 = vunpack.c.l.b16 %v2282
    %v3548 = vunpack.c.l.b16 %v2283
    %v3549 = vunpack.c.h.b16 %v2283
    %v3550 = vunpack.c.l.b16 %v2284
    %v3551 = vunpack.c.h.b16 %v2284
    %v3552 = vunpack.c.l.b16 %v2285
    %v3553 = vunpack.c.h.b16 %v2285
    %v3554 = vunpack.c.l.b16 %v2286
    %v3555 = vunpack.c.l.b16 %v2287
    %v3556 = vunpack.c.h.b16 %v2287
    %v3557 = vunpack.c.l.b16 %v2288
    %v3558 = vunpack.c.h.b16 %v2288
    %v3559 = vunpack.c.l.b16 %v2289
    %v3560 = vunpack.c.h.b16 %v2289
    %v3561 = vunpack.c.l.b16 %v2290
    %v3562 = vunpack.c.l.b16 %v2291
    %v3563 = vunpack.c.h.b16 %v2291
    %v3564 = vunpack.c.l.b16 %v2292
    %v3565 = vunpack.c.h.b16 %v2292
    %v3566 = vunpack.c.l.b16 %v2293
    %v3567 = vunpack.c.h.b16 %v2293
    %v3568 = vunpack.c.l.b16 %v2294
    %v3569 = vunpack.c.l.b16 %v2295
    %v3570 = vunpack.c.h.b16 %v2295
    %v3571 = vunpack.c.l.b16 %v2296
    %v3572 = vunpack.c.h.b16 %v2296
    %v3573 = vunpack.c.l.b16 %v2297
    %v3574 = vunpack.c.h.b16 %v2297
    %v3575 = vunpack.c.l.b16 %v2298
    %v3576 = vunpack.c.l.b16 %v2299
    %v3577 = vunpack.c.h.b16 %v2299
    %v3578 = vunpack.c.l.b16 %v2300
    %v3579 = vunpack.c.h.b16 %v2300
    %v3580 = vunpack.c.l.b16 %v2301
    %v3581 = vunpack.c.h.b16 %v2301
    %v3582 = vunpack.c.l.b16 %v2302
    %v3583 = vunpack.c.l.b16 %v2303
    %v3584 = vunpack.c.h.b16 %v2303
    %v3585 = vunpack.c.l.b16 %v2304
    %v3586 = vunpack.c.h.b16 %v2304
    %v3587 = vunpack.c.l.b16 %v2305
    %v3588 = vunpack.c.h.b16 %v2305
    %v3589 = vunpack.c.l.b16 %v2306
    %v3590 = vunpack.c.l.b16 %v2307
    %v3591 = vunpack.c.h.b16 %v2307
    %v3592 = vunpack.c.l.b16 %v2308
    %v3593 = vunpack.c.h.b16 %v2308
    %v3594 = vunpack.c.l.b16 %v2309
    %v3595 = vunpack.c.h.b16 %v2309
    %v3596 = vunpack.c.l.b16 %v2310
    %v3597 = vunpack.c.l.b16 %v2311
    %v3598 = vunpack.c.h.b16 %v2311
    %v3599 = vunpack.c.l.b16 %v2312
    %v3600 = vunpack.c.h.b16 %v2312
    %v3601 = vunpack.c.l.b16 %v2313
    %v3602 = vunpack.c.h.b16 %v2313
    %v3603 = vunpack.c.l.b16 %v2314
    %v3604 = vunpack.c.l.b16 %v2315
    %v3605 = vunpack.c.h.b16 %v2315
    %v3606 = vunpack.c.l.b16 %v2316
    %v3607 = vunpack.c.h.b16 %v2316
    %v3608 = vunpack.c.l.b16 %v2317
    %v3609 = vunpack.c.h.b16 %v2317
    %v3610 = vunpack.c.l.b16 %v2318
    %v3611 = vunpack.c.l.b16 %v2319
    %v3612 = vunpack.c.h.b16 %v2319
    %v3613 = vunpack.c.l.b16 %v2320
    %v3614 = vunpack.c.h.b16 %v2320
    %v3615 = vunpack.c.l.b16 %v2321
    %v3616 = vunpack.c.h.b16 %v2321
    %v3617 = vunpack.c.l.b16 %v2322
    %v3618 = vunpack.c.l.b16 %v2323
    %v3619 = vunpack.c.h.b16 %v2323
    %v3620 = vunpack.c.l.b16 %v2324
    %v3621 = vunpack.c.h.b16 %v2324
    %v3622 = vunpack.c.l.b16 %v2325
    %v3623 = vunpack.c.h.b16 %v2325
    %v3624 = vunpack.c.l.b16 %v2326
    %v3625 = vunpack.c.l.b16 %v2327
    %v3626 = vunpack.c.h.b16 %v2327
    %v3627 = vunpack.c.l.b16 %v2328
    %v3628 = vunpack.c.h.b16 %v2328
    %v3629 = vunpack.c.l.b16 %v2329
    %v3630 = vunpack.c.h.b16 %v2329
    %v3631 = vunpack.c.l.b16 %v2330
    %v3632 = vunpack.c.l.b16 %v2331
    %v3633 = vunpack.c.h.b16 %v2331
    %v3634 = vunpack.c.l.b16 %v2332
    %v3635 = vunpack.c.h.b16 %v2332
    %v3636 = vunpack.c.l.b16 %v2333
    %v3637 = vunpack.c.h.b16 %v2333
    %v3638 = vunpack.c.l.b16 %v2334
    %v3639 = vunpack.c.l.b16 %v2335
    %v3640 = vunpack.c.h.b16 %v2335
    %v3641 = vunpack.c.l.b16 %v2336
    %v3642 = vunpack.c.h.b16 %v2336
    %v3643 = vunpack.c.l.b16 %v2337
    %v3644 = vunpack.c.h.b16 %v2337
    %v3645 = vunpack.c.l.b16 %v2338
    %v3646 = vunpack.c.l.b16 %v2339
    %v3647 = vunpack.c.h.b16 %v2339
    %v3648 = vunpack.c.l.b16 %v2340
    %v3649 = vunpack.c.h.b16 %v2340
    %v3650 = vunpack.c.l.b16 %v2341
    %v3651 = vunpack.c.h.b16 %v2341
    %v3652 = vunpack.c.l.b16 %v2342
    %v3653 = vunpack.c.l.b16 %v2343
    %v3654 = vunpack.c.h.b16 %v2343
    %v3655 = vunpack.c.l.b16 %v2344
    %v3656 = vunpack.c.h.b16 %v2344
    %v3657 = vunpack.c.l.b16 %v2345
    %v3658 = vunpack.c.h.b16 %v2345
    %v3659 = vunpack.c.l.b16 %v2346
    %v3660 = vunpack.c.l.b16 %v2347
    %v3661 = vunpack.c.h.b16 %v2347
    %v3662 = vunpack.c.l.b16 %v2348
    %v3663 = vunpack.c.h.b16 %v2348
    %v3664 = vunpack.c.l.b16 %v2349
    %v3665 = vunpack.c.h.b16 %v2349
    %v3666 = vunpack.c.l.b16 %v2350
    %v3667 = vunpack.c.l.b16 %v2351
    %v3668 = vunpack.c.h.b16 %v2351
    %v3669 = vunpack.c.l.b16 %v2352
    %v3670 = vunpack.c.h.b16 %v2352
    %v3671 = vunpack.c.l.b16 %v2353
    %v3672 = vunpack.c.h.b16 %v2353
    %v3673 = vunpack.c.l.b16 %v2354
    %v3674 = vunpack.c.l.b16 %v2355
    %v3675 = vunpack.c.h.b16 %v2355
    %v3676 = vunpack.c.l.b16 %v2356
    %v3677 = vunpack.c.h.b16 %v2356
    %v3678 = vunpack.c.l.b16 %v2357
    %v3679 = vunpack.c.h.b16 %v2357
    %v3680 = vunpack.c.l.b16 %v2358
    %v3681 = vunpack.c.l.b16 %v2359
    %v3682 = vunpack.c.h.b16 %v2359
    %v3683 = vunpack.c.l.b16 %v2360
    %v3684 = vunpack.c.h.b16 %v2360
    %v3685 = vunpack.c.l.b16 %v2361
    %v3686 = vunpack.c.h.b16 %v2361
    %v3687 = vunpack.c.l.b16 %v2362
    %v3688 = vunpack.c.l.b16 %v2363
    %v3689 = vunpack.c.h.b16 %v2363
    %v3690 = vunpack.c.l.b16 %v2364
    %v3691 = vunpack.c.h.b16 %v2364
    %v3692 = vunpack.c.l.b16 %v2365
    %v3693 = vunpack.c.h.b16 %v2365
    %v3694 = vunpack.c.l.b16 %v2366
    %v3695 = vunpack.c.l.b16 %v2367
    %v3696 = vunpack.c.h.b16 %v2367
    %v3697 = vunpack.c.l.b16 %v2368
    %v3698 = vunpack.c.h.b16 %v2368
    %v3699 = vunpack.c.l.b16 %v2369
    %v3700 = vunpack.c.h.b16 %v2369
    %v3701 = vunpack.c.l.b16 %v2370
    %v3702 = vunpack.c.l.b16 %v2371
    %v3703 = vunpack.c.h.b16 %v2371
    %v3704 = vunpack.c.l.b16 %v2372
    %v3705 = vunpack.c.h.b16 %v2372
    %v3706 = vunpack.c.l.b16 %v2373
    %v3707 = vunpack.c.h.b16 %v2373
    %v3708 = vunpack.c.l.b16 %v2374
    %v3709 = vunpack.c.l.b16 %v2375
    %v3710 = vunpack.c.h.b16 %v2375
    %v3711 = vunpack.c.l.b16 %v2376
    %v3712 = vunpack.c.h.b16 %v2376
    %v3713 = vunpack.c.l.b16 %v2377
    %v3714 = vunpack.c.h.b16 %v2377
    %v3715 = vunpack.c.l.b16 %v2378
    %v3716 = vunpack.c.l.b16 %v2379
    %v3717 = vunpack.c.h.b16 %v2379
    %v3718 = vunpack.c.l.b16 %v2380
    %v3719 = vunpack.c.h.b16 %v2380
    %v3720 = vunpack.c.l.b16 %v2381
    %v3721 = vunpack.c.h.b16 %v2381
    %v3722 = vunpack.c.l.b16 %v2382
    %v3723 = vunpack.c.l.b16 %v2383
    %v3724 = vunpack.c.h.b16 %v2383
    %v3725 = vunpack.c.l.b16 %v2384
    %v3726 = vunpack.c.h.b16 %v2384
    %v3727 = vunpack.c.l.b16 %v2385
    %v3728 = vunpack.c.h.b16 %v2385
    %v3729 = vunpack.c.l.b16 %v2386
    %v3730 = vunpack.c.l.b16 %v2387
    %v3731 = vunpack.c.h.b16 %v2387
    %v3732 = vunpack.c.l.b16 %v2388
    %v3733 = vunpack.c.h.b16 %v2388
    %v3734 = vunpack.c.l.b16 %v2389
    %v3735 = vunpack.c.h.b16 %v2389
    %v3736 = vunpack.c.l.b16 %v2390
    %v3737 = vunpack.c.l.b16 %v2391
    %v3738 = vunpack.c.h.b16 %v2391
    %v3739 = vunpack.c.l.b16 %v2392
    %v3740 = vunpack.c.h.b16 %v2392
    %v3741 = vunpack.c.l.b16 %v2393
    %v3742 = vunpack.c.h.b16 %v2393
    %v3743 = vunpack.c.l.b16 %v2394
    %v3744 = vunpack.c.l.b16 %v2395
    %v3745 = vunpack.c.h.b16 %v2395
    %v3746 = vunpack.c.l.b16 %v2396
    %v3747 = vunpack.c.h.b16 %v2396
    %v3748 = vunpack.c.l.b16 %v2397
    %v3749 = vunpack.c.h.b16 %v2397
    %v3750 = vunpack.c.l.b16 %v2398
    %v3751 = vunpack.c.l.b16 %v2399
    %v3752 = vunpack.c.h.b16 %v2399
    %v3753 = vunpack.c.l.b16 %v2400
    %v3754 = vunpack.c.h.b16 %v2400
    %v3755 = vunpack.c.l.b16 %v2401
    %v3756 = vunpack.c.h.b16 %v2401
    %v3757 = vunpack.c.l.b16 %v2402
    %v3758 = vunpack.c.l.b16 %v2403
    %v3759 = vunpack.c.h.b16 %v2403
    %v3760 = vunpack.c.l.b16 %v2404
    %v3761 = vunpack.c.h.b16 %v2404
    %v3762 = vunpack.c.l.b16 %v2405
    %v3763 = vunpack.c.h.b16 %v2405
    %v3764 = vunpack.c.l.b16 %v2406
    %v3765 = vunpack.c.l.b16 %v2407
    %v3766 = vunpack.c.h.b16 %v2407
    %v3767 = vunpack.c.l.b16 %v2408
    %v3768 = vunpack.c.h.b16 %v2408
    %v3769 = vunpack.c.l.b16 %v2409
    %v3770 = vunpack.c.h.b16 %v2409
    %v3771 = vunpack.c.l.b16 %v2410
    %v3772 = vunpack.c.l.b16 %v2411
    %v3773 = vunpack.c.h.b16 %v2411
    %v3774 = vunpack.c.l.b16 %v2412
    %v3775 = vunpack.c.h.b16 %v2412
    %v3776 = vunpack.c.l.b16 %v2413
    %v3777 = vunpack.c.h.b16 %v2413
    %v3778 = vunpack.c.l.b16 %v2414
    %v3779 = vunpack.c.l.b16 %v2415
    %v3780 = vunpack.c.h.b16 %v2415
    %v3781 = vunpack.c.l.b16 %v2416
    %v3782 = vunpack.c.h.b16 %v2416
    %v3783 = vunpack.c.l.b16 %v2417
    %v3784 = vunpack.c.h.b16 %v2417
    %v3785 = vunpack.c.l.b16 %v2418
    %v3786 = vunpack.c.l.b16 %v2419
    %v3787 = vunpack.c.h.b16 %v2419
    %v3788 = vunpack.c.l.b16 %v2420
    %v3789 = vunpack.c.h.b16 %v2420
    %v3790 = vunpack.c.l.b16 %v2421
    %v3791 = vunpack.c.h.b16 %v2421
    %v3792 = vunpack.c.l.b16 %v2422
    %v3793 = vunpack.c.l.b16 %v2423
    %v3794 = vunpack.c.h.b16 %v2423
    %v3795 = vunpack.c.l.b16 %v2424
    %v3796 = vunpack.c.h.b16 %v2424
    %v3797 = vunpack.c.l.b16 %v2425
    %v3798 = vunpack.c.h.b16 %v2425
    %v3799 = vunpack.c.l.b16 %v2426
    %v3800 = vunpack.c.l.b16 %v2427
    %v3801 = vunpack.c.h.b16 %v2427
    %v3802 = vunpack.c.l.b16 %v2428
    %v3803 = vunpack.c.h.b16 %v2428
    %v3804 = vunpack.c.l.b16 %v2429
    %v3805 = vunpack.c.h.b16 %v2429
    %v3806 = vunpack.c.l.b16 %v2430
    %v3807 = vunpack.c.l.b16 %v2431
    %v3808 = vunpack.c.h.b16 %v2431
    %v3809 = vunpack.c.l.b16 %v2432
    %v3810 = vunpack.c.h.b16 %v2432
    %v3811 = vunpack.c.l.b16 %v2433
    %v3812 = vunpack.c.h.b16 %v2433
    %v3813 = vunpack.c.l.b16 %v2434
    %v3814 = vunpack.c.l.b16 %v2435
    %v3815 = vunpack.c.h.b16 %v2435
    %v3816 = vunpack.c.l.b16 %v2436
    %v3817 = vunpack.c.h.b16 %v2436
    %v3818 = vunpack.c.l.b16 %v2437
    %v3819 = vunpack.c.h.b16 %v2437
    %v3820 = vunpack.c.l.b16 %v2438
    %v3821 = vunpack.c.l.b16 %v2439
    %v3822 = vunpack.c.h.b16 %v2439
    %v3823 = vunpack.c.l.b16 %v2440
    %v3824 = vunpack.c.h.b16 %v2440
    %v3825 = vunpack.c.l.b16 %v2441
    %v3826 = vunpack.c.h.b16 %v2441
    %v3827 = vunpack.c.l.b16 %v2442
    %v3828 = vunpack.c.l.b16 %v2443
    %v3829 = vunpack.c.h.b16 %v2443
    %v3830 = vunpack.c.l.b16 %v2444
    %v3831 = vunpack.c.h.b16 %v2444
    %v3832 = vunpack.c.l.b16 %v2445
    %v3833 = vunpack.c.h.b16 %v2445
    %v3834 = vunpack.c.l.b16 %v2446
    %v3835 = vunpack.c.l.b16 %v2447
    %v3836 = vunpack.c.h.b16 %v2447
    %v3837 = vunpack.c.l.b16 %v2448
    %v3838 = vunpack.c.h.b16 %v2448
    %v3839 = vunpack.c.l.b16 %v2449
    %v3840 = vunpack.c.h.b16 %v2449
    %v3841 = vunpack.c.l.b16 %v2450
    %v3842 = vunpack.c.l.b16 %v2451
    %v3843 = vunpack.c.h.b16 %v2451
    %v3844 = vunpack.c.l.b16 %v2452
    %v3845 = vunpack.c.h.b16 %v2452
    %v3846 = vunpack.c.l.b16 %v2453
    %v3847 = vunpack.c.h.b16 %v2453
    %v3848 = vunpack.c.l.b16 %v2454
    %v3849 = vunpack.c.l.b16 %v2455
    %v3850 = vunpack.c.h.b16 %v2455
    %v3851 = vunpack.c.l.b16 %v2456
    %v3852 = vunpack.c.h.b16 %v2456
    %v3853 = vunpack.c.l.b16 %v2457
    %v3854 = vunpack.c.h.b16 %v2457
    %v3855 = vunpack.c.l.b16 %v2458
    %v3856 = vunpack.c.l.b16 %v2459
    %v3857 = vunpack.c.h.b16 %v2459
    %v3858 = vunpack.c.l.b16 %v2460
    %v3859 = vunpack.c.h.b16 %v2460
    %v3860 = vunpack.c.l.b16 %v2461
    %v3861 = vunpack.c.h.b16 %v2461
    %v3862 = vunpack.c.l.b16 %v2462
    %v3863 = vunpack.c.l.b16 %v2463
    %v3864 = vunpack.c.h.b16 %v2463
    %v3865 = vunpack.c.l.b16 %v2464
    %v3866 = vunpack.c.h.b16 %v2464
    %v3867 = vunpack.c.l.b16 %v2465
    %v3868 = vunpack.c.h.b16 %v2465
    %v3869 = vunpack.c.l.b16 %v2466
    %v3870 = vunpack.c.l.b16 %v2467
    %v3871 = vunpack.c.h.b16 %v2467
    %v3872 = vunpack.c.l.b16 %v2468
    %v3873 = vunpack.c.h.b16 %v2468
    %v3874 = vunpack.c.l.b16 %v2469
    %v3875 = vunpack.c.h.b16 %v2469
    %v3876 = vunpack.c.l.b16 %v2470
    %v3877 = vunpack.c.l.b16 %v2471
    %v3878 = vunpack.c.h.b16 %v2471
    %v3879 = vunpack.c.l.b16 %v2472
    %v3880 = vunpack.c.h.b16 %v2472
    %v3881 = vunpack.c.l.b16 %v2473
    %v3882 = vunpack.c.h.b16 %v2473
    %v3883 = vunpack.c.l.b16 %v2474
    %v3884 = vunpack.c.l.b16 %v2475
    %v3885 = vunpack.c.h.b16 %v2475
    %v3886 = vunpack.c.l.b16 %v2476
    %v3887 = vunpack.c.h.b16 %v2476
    %v3888 = vunpack.c.l.b16 %v2477
    %v3889 = vunpack.c.h.b16 %v2477
    %v3890 = vunpack.c.l.b16 %v2478
    %v3891 = vunpack.c.l.b16 %v2479
    %v3892 = vunpack.c.h.b16 %v2479
    %v3893 = vunpack.c.l.b16 %v2480
    %v3894 = vunpack.c.h.b16 %v2480
    %v3895 = vunpack.c.l.b16 %v2481
    %v3896 = vunpack.c.h.b16 %v2481
    %v3897 = vunpack.c.l.b16 %v2482
    %v3898 = vunpack.c.l.b16 %v2483
    %v3899 = vunpack.c.h.b16 %v2483
    %v3900 = vunpack.c.l.b16 %v2484
    %v3901 = vunpack.c.h.b16 %v2484
    %v3902 = vunpack.c.l.b16 %v2485
    %v3903 = vunpack.c.h.b16 %v2485
    %v3904 = vunpack.c.l.b16 %v2486
    %v3905 = vunpack.c.l.b16 %v2487
    %v3906 = vunpack.c.h.b16 %v2487
    %v3907 = vunpack.c.l.b16 %v2488
    %v3908 = vunpack.c.h.b16 %v2488
    %v3909 = vunpack.c.l.b16 %v2489
    %v3910 = vunpack.c.h.b16 %v2489
    %v3911 = vunpack.c.l.b16 %v2490
    %v3912 = vunpack.c.l.b16 %v2491
    %v3913 = vunpack.c.h.b16 %v2491
    %v3914 = vunpack.c.l.b16 %v2492
    %v3915 = vunpack.c.h.b16 %v2492
    %v3916 = vunpack.c.l.b16 %v2493
    %v3917 = vunpack.c.h.b16 %v2493
    %v3918 = vunpack.c.l.b16 %v2494
    %v3919 = vunpack.c.l.b16 %v2495
    %v3920 = vunpack.c.h.b16 %v2495
    %v3921 = vunpack.c.l.b16 %v2496
    %v3922 = vunpack.c.h.b16 %v2496
    %v3923 = vunpack.c.l.b16 %v2497
    %v3924 = vunpack.c.h.b16 %v2497
    %v3925 = vunpack.c.l.b16 %v2498
    %v3926 = vunpack.c.l.b16 %v2499
    %v3927 = vunpack.c.h.b16 %v2499
    %v3928 = vunpack.c.l.b16 %v2500
    %v3929 = vunpack.c.h.b16 %v2500
    %v3930 = vunpack.c.l.b16 %v2501
    %v3931 = vunpack.c.h.b16 %v2501
    %v3932 = vunpack.c.l.b16 %v2502
    %v3933 = vunpack.c.l.b16 %v2503
    %v3934 = vunpack.c.h.b16 %v2503
    %v3935 = vunpack.c.l.b16 %v2504
    %v3936 = vunpack.c.h.b16 %v2504
    %v3937 = vunpack.c.l.b16 %v2505
    %v3938 = vunpack.c.h.b16 %v2505
    %v3939 = vunpack.c.l.b16 %v2506
    %v3940 = vunpack.c.l.b16 %v2507
    %v3941 = vunpack.c.h.b16 %v2507
    %v3942 = vunpack.c.l.b16 %v2508
    %v3943 = vunpack.c.h.b16 %v2508
    %v3944 = vunpack.c.l.b16 %v2509
    %v3945 = vunpack.c.h.b16 %v2509
    %v3946 = vunpack.c.l.b16 %v2510
    %v3947 = vunpack.c.l.b16 %v2511
    %v3948 = vunpack.c.h.b16 %v2511
    %v3949 = vunpack.c.l.b16 %v2512
    %v3950 = vunpack.c.h.b16 %v2512
    %v3951 = vunpack.c.l.b16 %v2513
    %v3952 = vunpack.c.h.b16 %v2513
    %v3953 = vunpack.c.l.b16 %v2514
    %v3954 = vunpack.c.l.b16 %v2515
    %v3955 = vunpack.c.h.b16 %v2515
    %v3956 = vunpack.c.l.b16 %v2516
    %v3957 = vunpack.c.h.b16 %v2516
    %v3958 = vunpack.c.l.b16 %v2517
    %v3959 = vunpack.c.h.b16 %v2517
    %v3960 = vunpack.c.l.b16 %v2518
    %v3961 = vunpack.c.l.b16 %v2519
    %v3962 = vunpack.c.h.b16 %v2519
    %v3963 = vunpack.c.l.b16 %v2520
    %v3964 = vunpack.c.h.b16 %v2520
    %v3965 = vunpack.c.l.b16 %v2521
    %v3966 = vunpack.c.h.b16 %v2521
    %v3967 = vunpack.c.l.b16 %v2522
    %v3968 = vpack.c.b16 %v3079, %v3072
    %v3969 = vpack.c.b16 %v3080, %v3073
    %v3970 = vpack.c.b16 %v3081, %v3074
    %v3971 = vpack.c.b16 %v3082, %v3075
    %v3972 = vpack.c.b16 %v3083, %v3076
    %v3973 = vpack.c.b16 %v3084, %v3077
    %v3974 = vpack.c.b16 %v3085, %v3078
    %v3975 = vpack.c.b16 %v3093, %v3086
    %v3976 = vpack.c.b16 %v3094, %v3087
    %v3977 = vpack.c.b16 %v3095, %v3088
    %v3978 = vpack.c.b16 %v3096, %v3089
    %v3979 = vpack.c.b16 %v3097, %v3090
    %v3980 = vpack.c.b16 %v3098, %v3091
    %v3981 = vpack.c.b16 %v3099, %v3092
    %v3982 = vpack.c.b16 %v3107, %v3100
    %v3983 = vpack.c.b16 %v3108, %v3101
    %v3984 = vpack.c.b16 %v3109, %v3102
    %v3985 = vpack.c.b16 %v3110, %v3103
    %v3986 = vpack.c.b16 %v3111, %v3104
    %v3987 = vpack.c.b16 %v3112, %v3105
    %v3988 = vpack.c.b16 %v3113, %v3106
    %v3989 = vpack.c.b16 %v3121, %v3114
    %v3990 = vpack.c.b16 %v3122, %v3115
    %v3991 = vpack.c.b16 %v3123, %v3116
    %v3992 = vpack.c.b16 %v3124, %v3117
    %v3993 = vpack.c.b16 %v3125, %v3118
    %v3994 = vpack.c.b16 %v3126, %v3119
    %v3995 = vpack.c.b16 %v3127, %v3120
    %v3996 = vpack.c.b16 %v3135, %v3128
    %v3997 = vpack.c.b16 %v3136, %v3129
    %v3998 = vpack.c.b16 %v3137, %v3130
    %v3999 = vpack.c.b16 %v3138, %v3131
    %v4000 = vpack.c.b16 %v3139, %v3132
    %v4001 = vpack.c.b16 %v3140, %v3133
    %v4002 = vpack.c.b16 %v3141, %v3134
    %v4003 = vpack.c.b16 %v3149, %v3142
    %v4004 = vpack.c.b16 %v3150, %v3143
    %v4005 = vpack.c.b16 %v3151, %v3144
    %v4006 = vpack.c.b16 %v3152, %v3145
    %v4007 = vpack.c.b16 %v3153, %v3146
    %v4008 = vpack.c.b16 %v3154, %v3147
    %v4009 = vpack.c.b16 %v3155, %v3148
    %v4010 = vpack.c.b16 %v3163, %v3156
    %v4011 = vpack.c.b16 %v3164, %v3157
    %v4012 = vpack.c.b16 %v3165, %v3158
    %v4013 = vpack.c.b16 %v3166, %v3159
    %v4014 = vpack.c.b16 %v3167, %v3160
    %v4015 = vpack.c.b16 %v3168, %v3161
    %v4016 = vpack.c.b16 %v3169, %v3162
    %v4017 = vpack.c.b16 %v3177, %v3170
    %v4018 = vpack.c.b16 %v3178, %v3171
    %v4019 = vpack.c.b16 %v3179, %v3172
    %v4020 = vpack.c.b16 %v3180, %v3173
    %v4021 = vpack.c.b16 %v3181, %v3174
    %v4022 = vpack.c.b16 %v3182, %v3175
    %v4023 = vpack.c.b16 %v3183, %v3176
    %v4024 = vpack.c.b16 %v3191, %v3184
    %v4025 = vpack.c.b16 %v3192, %v3185
    %v4026 = vpack.c.b16 %v3193, %v3186
    %v4027 = vpack.c.b16 %v3194, %v3187
    %v4028 = vpack.c.b16 %v3195, %v3188
    %v4029 = vpack.c.b16 %v3196, %v3189
    %v4030 = vpack.c.b16 %v3197, %v3190
    %v4031 = vpack.c.b16 %v3205, %v3198
    %v4032 = vpack.c.b16 %v3206, %v3199
    %v4033 = vpack.c.b16 %v3207, %v3200
    %v4034 = vpack.c.b16 %v3208, %v3201
    %v4035 = vpack.c.b16 %v3209, %v3202
    %v4036 = vpack.c.b16 %v3210, %v3203
    %v4037 = vpack.c.b16 %v3211, %v3204
    %v4038 = vpack.c.b16 %v3219, %v3212
    %v4039 = vpack.c.b16 %v3220, %v3213
    %v4040 = vpack.c.b16 %v3221, %v3214
    %v4041 = vpack.c.b16 %v3222, %v3215
    %v4042 = vpack.c.b16 %v3223, %v3216
    %v4043 = vpack.c.b16 %v3224, %v3217
    %v4044 = vpack.c.b16 %v3225, %v3218
    %v4045 = vpack.c.b16 %v3233, %v3226
    %v4046 = vpack.c.b16 %v3234, %v3227
    %v4047 = vpack.c.b16 %v3235, %v3228
    %v4048 = vpack.c.b16 %v3236, %v3229
    %v4049 = vpack.c.b16 %v3237, %v3230
    %v4050 = vpack.c.b16 %v3238, %v3231
    %v4051 = vpack.c.b16 %v3239, %v3232
    %v4052 = vpack.c.b16 %v3247, %v3240
    %v4053 = vpack.c.b16 %v3248, %v3241
    %v4054 = vpack.c.b16 %v3249, %v3242
    %v4055 = vpack.c.b16 %v3250, %v3243
    %v4056 = vpack.c.b16 %v3251, %v3244
    %v4057 = vpack.c.b16 %v3252, %v3245
    %v4058 = vpack.c.b16 %v3253, %v3246
    %v4059 = vpack.c.b16 %v3261, %v3254
    %v4060 = vpack.c.b16 %v3262, %v3255
    %v4061 = vpack.c.b16 %v3263, %v3256
    %v4062 = vpack.c.b16 %v3264, %v3257
    %v4063 = vpack.c.b16 %v3265, %v3258
    %v4064 = vpack.c.b16 %v3266, %v3259
    %v4065 = vpack.c.b16 %v3267, %v3260
    %v4066 = vpack.c.b16 %v3275, %v3268
    %v4067 = vpack.c.b16 %v3276, %v3269
    %v4068 = vpack.c.b16 %v3277, %v3270
    %v4069 = vpack.c.b16 %v3278, %v3271
    %v4070 = vpack.c.b16 %v3279, %v3272
    %v4071 = vpack.c.b16 %v3280, %v3273
    %v4072 = vpack.c.b16 %v3281, %v3274
    %v4073 = vpack.c.b16 %v3289, %v3282
    %v4074 = vpack.c.b16 %v3290, %v3283
    %v4075 = vpack.c.b16 %v3291, %v3284
    %v4076 = vpack.c.b16 %v3292, %v3285
    %v4077 = vpack.c.b16 %v3293, %v3286
    %v4078 = vpack.c.b16 %v3294, %v3287
    %v4079 = vpack.c.b16 %v3295, %v3288
    %v4080 = vpack.c.b16 %v3303, %v3296
    %v4081 = vpack.c.b16 %v3304, %v3297
    %v4082 = vpack.c.b16 %v3305, %v3298
    %v4083 = vpack.c.b16 %v3306, %v3299
    %v4084 = vpack.c.b16 %v3307, %v3300
    %v4085 = vpack.c.b16 %v3308, %v3301
    %v4086 = vpack.c.b16 %v3309, %v3302
    %v4087 = vpack.c.b16 %v3317, %v3310
    %v4088 = vpack.c.b16 %v3318, %v3311
    %v4089 = vpack.c.b16 %v3319, %v3312
    %v4090 = vpack.c.b16 %v3320, %v3313
    %v4091 = vpack.c.b16 %v3321, %v3314
    %v4092 = vpack.c.b16 %v3322, %v3315
    %v4093 = vpack.c.b16 %v3323, %v3316
    %v4094 = vpack.c.b16 %v3331, %v3324
    %v4095 = vpack.c.b16 %v3332, %v3325
    %v4096 = vpack.c.b16 %v3333, %v3326
    %v4097 = vpack.c.b16 %v3334, %v3327
    %v4098 = vpack.c.b16 %v3335, %v3328
    %v4099 = vpack.c.b16 %v3336, %v3329
    %v4100 = vpack.c.b16 %v3337, %v3330
    %v4101 = vpack.c.b16 %v3345, %v3338
    %v4102 = vpack.c.b16 %v3346, %v3339
    %v4103 = vpack.c.b16 %v3347, %v3340
    %v4104 = vpack.c.b16 %v3348, %v3341
    %v4105 = vpack.c.b16 %v3349, %v3342
    %v4106 = vpack.c.b16 %v3350, %v3343
    %v4107 = vpack.c.b16 %v3351, %v3344
    %v4108 = vpack.c.b16 %v3359, %v3352
    %v4109 = vpack.c.b16 %v3360, %v3353
    %v4110 = vpack.c.b16 %v3361, %v3354
    %v4111 = vpack.c.b16 %v3362, %v3355
    %v4112 = vpack.c.b16 %v3363, %v3356
    %v4113 = vpack.c.b16 %v3364, %v3357
    %v4114 = vpack.c.b16 %v3365, %v3358
    %v4115 = vpack.c.b16 %v3373, %v3366
    %v4116 = vpack.c.b16 %v3374, %v3367
    %v4117 = vpack.c.b16 %v3375, %v3368
    %v4118 = vpack.c.b16 %v3376, %v3369
    %v4119 = vpack.c.b16 %v3377, %v3370
    %v4120 = vpack.c.b16 %v3378, %v3371
    %v4121 = vpack.c.b16 %v3379, %v3372
    %v4122 = vpack.c.b16 %v3387, %v3380
    %v4123 = vpack.c.b16 %v3388, %v3381
    %v4124 = vpack.c.b16 %v3389, %v3382
    %v4125 = vpack.c.b16 %v3390, %v3383
    %v4126 = vpack.c.b16 %v3391, %v3384
    %v4127 = vpack.c.b16 %v3392, %v3385
    %v4128 = vpack.c.b16 %v3393, %v3386
    %v4129 = vpack.c.b16 %v3401, %v3394
    %v4130 = vpack.c.b16 %v3402, %v3395
    %v4131 = vpack.c.b16 %v3403, %v3396
    %v4132 = vpack.c.b16 %v3404, %v3397
    %v4133 = vpack.c.b16 %v3405, %v3398
    %v4134 = vpack.c.b16 %v3406, %v3399
    %v4135 = vpack.c.b16 %v3407, %v3400
    %v4136 = vpack.c.b16 %v3415, %v3408
    %v4137 = vpack.c.b16 %v3416, %v3409
    %v4138 = vpack.c.b16 %v3417, %v3410
    %v4139 = vpack.c.b16 %v3418, %v3411
    %v4140 = vpack.c.b16 %v3419, %v3412
    %v4141 = vpack.c.b16 %v3420, %v3413
    %v4142 = vpack.c.b16 %v3421, %v3414
    %v4143 = vpack.c.b16 %v3429, %v3422
    %v4144 = vpack.c.b16 %v3430, %v3423
    %v4145 = vpack.c.b16 %v3431, %v3424
    %v4146 = vpack.c.b16 %v3432, %v3425
    %v4147 = vpack.c.b16 %v3433, %v3426
    %v4148 = vpack.c.b16 %v3434, %v3427
    %v4149 = vpack.c.b16 %v3435, %v3428
    %v4150 = vpack.c.b16 %v3443, %v3436
    %v4151 = vpack.c.b16 %v3444, %v3437
    %v4152 = vpack.c.b16 %v3445, %v3438
    %v4153 = vpack.c.b16 %v3446, %v3439
    %v4154 = vpack.c.b16 %v3447, %v3440
    %v4155 = vpack.c.b16 %v3448, %v3441
    %v4156 = vpack.c.b16 %v3449, %v3442
    %v4157 = vpack.c.b16 %v3457, %v3450
    %v4158 = vpack.c.b16 %v3458, %v3451
    %v4159 = vpack.c.b16 %v3459, %v3452
    %v4160 = vpack.c.b16 %v3460, %v3453
    %v4161 = vpack.c.b16 %v3461, %v3454
    %v4162 = vpack.c.b16 %v3462, %v3455
    %v4163 = vpack.c.b16 %v3463, %v3456
    %v4164 = vpack.c.b16 %v3471, %v3464
    %v4165 = vpack.c.b16 %v3472, %v3465
    %v4166 = vpack.c.b16 %v3473, %v3466
    %v4167 = vpack.c.b16 %v3474, %v3467
    %v4168 = vpack.c.b16 %v3475, %v3468
    %v4169 = vpack.c.b16 %v3476, %v3469
    %v4170 = vpack.c.b16 %v3477, %v3470
    %v4171 = vpack.c.b16 %v3485, %v3478
    %v4172 = vpack.c.b16 %v3486, %v3479
    %v4173 = vpack.c.b16 %v3487, %v3480
    %v4174 = vpack.c.b16 %v3488, %v3481
    %v4175 = vpack.c.b16 %v3489, %v3482
    %v4176 = vpack.c.b16 %v3490, %v3483
    %v4177 = vpack.c.b16 %v3491, %v3484
    %v4178 = vpack.c.b16 %v3499, %v3492
    %v4179 = vpack.c.b16 %v3500, %v3493
    %v4180 = vpack.c.b16 %v3501, %v3494
    %v4181 = vpack.c.b16 %v3502, %v3495
    %v4182 = vpack.c.b16 %v3503, %v3496
    %v4183 = vpack.c.b16 %v3504, %v3497
    %v4184 = vpack.c.b16 %v3505, %v3498
    %v4185 = vpack.c.b16 %v3513, %v3506
    %v4186 = vpack.c.b16 %v3514, %v3507
    %v4187 = vpack.c.b16 %v3515, %v3508
    %v4188 = vpack.c.b16 %v3516, %v3509
    %v4189 = vpack.c.b16 %v3517, %v3510
    %v4190 = vpack.c.b16 %v3518, %v3511
    %v4191 = vpack.c.b16 %v3519, %v3512
    %v4192 = vpack.c.b16 %v3527, %v3520
    %v4193 = vpack.c.b16 %v3528, %v3521
    %v4194 = vpack.c.b16 %v3529, %v3522
    %v4195 = vpack.c.b16 %v3530, %v3523
    %v4196 = vpack.c.b16 %v3531, %v3524
    %v4197 = vpack.c.b16 %v3532, %v3525
    %v4198 = vpack.c.b16 %v3533, %v3526
    %v4199 = vpack.c.b16 %v3541, %v3534
    %v4200 = vpack.c.b16 %v3542, %v3535
    %v4201 = vpack.c.b16 %v3543, %v3536
    %v4202 = vpack.c.b16 %v3544, %v3537
    %v4203 = vpack.c.b16 %v3545, %v3538
    %v4204 = vpack.c.b16 %v3546, %v3539
    %v4205 = vpack.c.b16 %v3547, %v3540
    %v4206 = vpack.c.b16 %v3555, %v3548
    %v4207 = vpack.c.b16 %v3556, %v3549
    %v4208 = vpack.c.b16 %v3557, %v3550
    %v4209 = vpack.c.b16 %v3558, %v3551
    %v4210 = vpack.c.b16 %v3559, %v3552
    %v4211 = vpack.c.b16 %v3560, %v3553
    %v4212 = vpack.c.b16 %v3561, %v3554
    %v4213 = vpack.c.b16 %v3569, %v3562
    %v4214 = vpack.c.b16 %v3570, %v3563
    %v4215 = vpack.c.b16 %v3571, %v3564
    %v4216 = vpack.c.b16 %v3572, %v3565
    %v4217 = vpack.c.b16 %v3573, %v3566
    %v4218 = vpack.c.b16 %v3574, %v3567
    %v4219 = vpack.c.b16 %v3575, %v3568
    %v4220 = vpack.c.b16 %v3583, %v3576
    %v4221 = vpack.c.b16 %v3584, %v3577
    %v4222 = vpack.c.b16 %v3585, %v3578
    %v4223 = vpack.c.b16 %v3586, %v3579
    %v4224 = vpack.c.b16 %v3587, %v3580
    %v4225 = vpack.c.b16 %v3588, %v3581
    %v4226 = vpack.c.b16 %v3589, %v3582
    %v4227 = vpack.c.b16 %v3597, %v3590
    %v4228 = vpack.c.b16 %v3598, %v3591
    %v4229 = vpack.c.b16 %v3599, %v3592
    %v4230 = vpack.c.b16 %v3600, %v3593
    %v4231 = vpack.c.b16 %v3601, %v3594
    %v4232 = vpack.c.b16 %v3602, %v3595
    %v4233 = vpack.c.b16 %v3603, %v3596
    %v4234 = vpack.c.b16 %v3611, %v3604
    %v4235 = vpack.c.b16 %v3612, %v3605
    %v4236 = vpack.c.b16 %v3613, %v3606
    %v4237 = vpack.c.b16 %v3614, %v3607
    %v4238 = vpack.c.b16 %v3615, %v3608
    %v4239 = vpack.c.b16 %v3616, %v3609
    %v4240 = vpack.c.b16 %v3617, %v3610
    %v4241 = vpack.c.b16 %v3625, %v3618
    %v4242 = vpack.c.b16 %v3626, %v3619
    %v4243 = vpack.c.b16 %v3627, %v3620
    %v4244 = vpack.c.b16 %v3628, %v3621
    %v4245 = vpack.c.b16 %v3629, %v3622
    %v4246 = vpack.c.b16 %v3630, %v3623
    %v4247 = vpack.c.b16 %v3631, %v3624
    %v4248 = vpack.c.b16 %v3639, %v3632
    %v4249 = vpack.c.b16 %v3640, %v3633
    %v4250 = vpack.c.b16 %v3641, %v3634
    %v4251 = vpack.c.b16 %v3642, %v3635
    %v4252 = vpack.c.b16 %v3643, %v3636
    %v4253 = vpack.c.b16 %v3644, %v3637
    %v4254 = vpack.c.b16 %v3645, %v3638
    %v4255 = vpack.c.b16 %v3653, %v3646
    %v4256 = vpack.c.b16 %v3654, %v3647
    %v4257 = vpack.c.b16 %v3655, %v3648
    %v4258 = vpack.c.b16 %v3656, %v3649
    %v4259 = vpack.c.b16 %v3657, %v3650
    %v4260 = vpack.c.b16 %v3658, %v3651
    %v4261 = vpack.c.b16 %v3659, %v3652
    %v4262 = vpack.c.b16 %v3667, %v3660
    %v4263 = vpack.c.b16 %v3668, %v3661
    %v4264 = vpack.c.b16 %v3669, %v3662
    %v4265 = vpack.c.b16 %v3670, %v3663
    %v4266 = vpack.c.b16 %v3671, %v3664
    %v4267 = vpack.c.b16 %v3672, %v3665
    %v4268 = vpack.c.b16 %v3673, %v3666
    %v4269 = vpack.c.b16 %v3681, %v3674
    %v4270 = vpack.c.b16 %v3682, %v3675
    %v4271 = vpack.c.b16 %v3683, %v3676
    %v4272 = vpack.c.b16 %v3684, %v3677
    %v4273 = vpack.c.b16 %v3685, %v3678
    %v4274 = vpack.c.b16 %v3686, %v3679
    %v4275 = vpack.c.b16 %v3687, %v3680
    %v4276 = vpack.c.b16 %v3695, %v3688
    %v4277 = vpack.c.b16 %v3696, %v3689
    %v4278 = vpack.c.b16 %v3697, %v3690
    %v4279 = vpack.c.b16 %v3698, %v3691
    %v4280 = vpack.c.b16 %v3699, %v3692
    %v4281 = vpack.c.b16 %v3700, %v3693
    %v4282 = vpack.c.b16 %v3701, %v3694
    %v4283 = vpack.c.b16 %v3709, %v3702
    %v4284 = vpack.c.b16 %v3710, %v3703
    %v4285 = vpack.c.b16 %v3711, %v3704
    %v4286 = vpack.c.b16 %v3712, %v3705
    %v4287 = vpack.c.b16 %v3713, %v3706
    %v4288 = vpack.c.b16 %v3714, %v3707
    %v4289 = vpack.c.b16 %v3715, %v3708
    %v4290 = vpack.c.b16 %v3723, %v3716
    %v4291 = vpack.c.b16 %v3724, %v3717
    %v4292 = vpack.c.b16 %v3725, %v3718
    %v4293 = vpack.c.b16 %v3726, %v3719
    %v4294 = vpack.c.b16 %v3727, %v3720
    %v4295 = vpack.c.b16 %v3728, %v3721
    %v4296 = vpack.c.b16 %v3729, %v3722
    %v4297 = vpack.c.b16 %v3737, %v3730
    %v4298 = vpack.c.b16 %v3738, %v3731
    %v4299 = vpack.c.b16 %v3739, %v3732
    %v4300 = vpack.c.b16 %v3740, %v3733
    %v4301 = vpack.c.b16 %v3741, %v3734
    %v4302 = vpack.c.b16 %v3742, %v3735
    %v4303 = vpack.c.b16 %v3743, %v3736
    %v4304 = vpack.c.b16 %v3751, %v3744
    %v4305 = vpack.c.b16 %v3752, %v3745
    %v4306 = vpack.c.b16 %v3753, %v3746
    %v4307 = vpack.c.b16 %v3754, %v3747
    %v4308 = vpack.c.b16 %v3755, %v3748
    %v4309 = vpack.c.b16 %v3756, %v3749
    %v4310 = vpack.c.b16 %v3757, %v3750
    %v4311 = vpack.c.b16 %v3765, %v3758
    %v4312 = vpack.c.b16 %v3766, %v3759
    %v4313 = vpack.c.b16 %v3767, %v3760
    %v4314 = vpack.c.b16 %v3768, %v3761
    %v4315 = vpack.c.b16 %v3769, %v3762
    %v4316 = vpack.c.b16 %v3770, %v3763
    %v4317 = vpack.c.b16 %v3771, %v3764
    %v4318 = vpack.c.b16 %v3779, %v3772
    %v4319 = vpack.c.b16 %v3780, %v3773
    %v4320 = vpack.c.b16 %v3781, %v3774
    %v4321 = vpack.c.b16 %v3782, %v3775
    %v4322 = vpack.c.b16 %v3783, %v3776
    %v4323 = vpack.c.b16 %v3784, %v3777
    %v4324 = vpack.c.b16 %v3785, %v3778
    %v4325 = vpack.c.b16 %v3793, %v3786
    %v4326 = vpack.c.b16 %v3794, %v3787
    %v4327 = vpack.c.b16 %v3795, %v3788
    %v4328 = vpack.c.b16 %v3796, %v3789
    %v4329 = vpack.c.b16 %v3797, %v3790
    %v4330 = vpack.c.b16 %v3798, %v3791
    %v4331 = vpack.c.b16 %v3799, %v3792
    %v4332 = vpack.c.b16 %v3807, %v3800
    %v4333 = vpack.c.b16 %v3808, %v3801
    %v4334 = vpack.c.b16 %v3809, %v3802
    %v4335 = vpack.c.b16 %v3810, %v3803
    %v4336 = vpack.c.b16 %v3811, %v3804
    %v4337 = vpack.c.b16 %v3812, %v3805
    %v4338 = vpack.c.b16 %v3813, %v3806
    %v4339 = vpack.c.b16 %v3821, %v3814
    %v4340 = vpack.c.b16 %v3822, %v3815
    %v4341 = vpack.c.b16 %v3823, %v3816
    %v4342 = vpack.c.b16 %v3824, %v3817
    %v4343 = vpack.c.b16 %v3825, %v3818
    %v4344 = vpack.c.b16 %v3826, %v3819
    %v4345 = vpack.c.b16 %v3827, %v3820
    %v4346 = vpack.c.b16 %v3835, %v3828
    %v4347 = vpack.c.b16 %v3836, %v3829
    %v4348 = vpack.c.b16 %v3837, %v3830
    %v4349 = vpack.c.b16 %v3838, %v3831
    %v4350 = vpack.c.b16 %v3839, %v3832
    %v4351 = vpack.c.b16 %v3840, %v3833
    %v4352 = vpack.c.b16 %v3841, %v3834
    %v4353 = vpack.c.b16 %v3849, %v3842
    %v4354 = vpack.c.b16 %v3850, %v3843
    %v4355 = vpack.c.b16 %v3851, %v3844
    %v4356 = vpack.c.b16 %v3852, %v3845
    %v4357 = vpack.c.b16 %v3853, %v3846
    %v4358 = vpack.c.b16 %v3854, %v3847
    %v4359 = vpack.c.b16 %v3855, %v3848
    %v4360 = vpack.c.b16 %v3863, %v3856
    %v4361 = vpack.c.b16 %v3864, %v3857
    %v4362 = vpack.c.b16 %v3865, %v3858
    %v4363 = vpack.c.b16 %v3866, %v3859
    %v4364 = vpack.c.b16 %v3867, %v3860
    %v4365 = vpack.c.b16 %v3868, %v3861
    %v4366 = vpack.c.b16 %v3869, %v3862
    %v4367 = vpack.c.b16 %v3877, %v3870
    %v4368 = vpack.c.b16 %v3878, %v3871
    %v4369 = vpack.c.b16 %v3879, %v3872
    %v4370 = vpack.c.b16 %v3880, %v3873
    %v4371 = vpack.c.b16 %v3881, %v3874
    %v4372 = vpack.c.b16 %v3882, %v3875
    %v4373 = vpack.c.b16 %v3883, %v3876
    %v4374 = vpack.c.b16 %v3891, %v3884
    %v4375 = vpack.c.b16 %v3892, %v3885
    %v4376 = vpack.c.b16 %v3893, %v3886
    %v4377 = vpack.c.b16 %v3894, %v3887
    %v4378 = vpack.c.b16 %v3895, %v3888
    %v4379 = vpack.c.b16 %v3896, %v3889
    %v4380 = vpack.c.b16 %v3897, %v3890
    %v4381 = vpack.c.b16 %v3905, %v3898
    %v4382 = vpack.c.b16 %v3906, %v3899
    %v4383 = vpack.c.b16 %v3907, %v3900
    %v4384 = vpack.c.b16 %v3908, %v3901
    %v4385 = vpack.c.b16 %v3909, %v3902
    %v4386 = vpack.c.b16 %v3910, %v3903
    %v4387 = vpack.c.b16 %v3911, %v3904
    %v4388 = vpack.c.b16 %v3919, %v3912
    %v4389 = vpack.c.b16 %v3920, %v3913
    %v4390 = vpack.c.b16 %v3921, %v3914
    %v4391 = vpack.c.b16 %v3922, %v3915
    %v4392 = vpack.c.b16 %v3923, %v3916
    %v4393 = vpack.c.b16 %v3924, %v3917
    %v4394 = vpack.c.b16 %v3925, %v3918
    %v4395 = vpack.c.b16 %v3933, %v3926
    %v4396 = vpack.c.b16 %v3934, %v3927
    %v4397 = vpack.c.b16 %v3935, %v3928
    %v4398 = vpack.c.b16 %v3936, %v3929
    %v4399 = vpack.c.b16 %v3937, %v3930
    %v4400 = vpack.c.b16 %v3938, %v3931
    %v4401 = vpack.c.b16 %v3939, %v3932
    %v4402 = vpack.c.b16 %v3947, %v3940
    %v4403 = vpack.c.b16 %v3948, %v3941
    %v4404 = vpack.c.b16 %v3949, %v3942
    %v4405 = vpack.c.b16 %v3950, %v3943
    %v4406 = vpack.c.b16 %v3951, %v3944
    %v4407 = vpack.c.b16 %v3952, %v3945
    %v4408 = vpack.c.b16 %v3953, %v3946
    %v4409 = vpack.c.b16 %v3961, %v3954
    %v4410 = vpack.c.b16 %v3962, %v3955
    %v4411 = vpack.c.b16 %v3963, %v3956
    %v4412 = vpack.c.b16 %v3964, %v3957
    %v4413 = vpack.c.b16 %v3965, %v3958
    %v4414 = vpack.c.b16 %v3966, %v3959
    %v4415 = vpack.c.b16 %v3967, %v3960
    %4864 = vmatprep.subr.bf16.mxu0 %v3969
    %4865 = vmatpush1.bf16.msra.mxu0 %v3968
    %4866 = vmatprep.subr.bf16.mxu0 %v3976
    %4867 = vmatpush1.bf16.msra.mxu0 %v3975
    %4868 = vmatprep.subr.bf16.mxu0 %v3983
    %4869 = vmatpush1.bf16.msra.mxu0 %v3982
    %4870 = vmatprep.subr.bf16.mxu0 %v3990
    %4871 = vmatpush1.bf16.msra.mxu0 %v3989
    %4872 = vmatprep.subr.bf16.mxu0 %v3997
    %4873 = vmatpush1.bf16.msra.mxu0 %v3996
    %4874 = vmatprep.subr.bf16.mxu0 %v4004
    %4875 = vmatpush1.bf16.msra.mxu0 %v4003
    %4876 = vmatprep.subr.bf16.mxu0 %v4011
    %4877 = vmatpush1.bf16.msra.mxu0 %v4010
    %4878 = vmatprep.subr.bf16.mxu0 %v4018
    %4879 = vmatpush1.bf16.msra.mxu0 %v4017
    %4880 = vmatprep.subr.bf16.mxu0 %v4025
    %4881 = vmatpush1.bf16.msra.mxu0 %v4024
    %4882 = vmatprep.subr.bf16.mxu0 %v4032
    %4883 = vmatpush1.bf16.msra.mxu0 %v4031
    %4884 = vmatprep.subr.bf16.mxu0 %v4039
    %4885 = vmatpush1.bf16.msra.mxu0 %v4038
    %4886 = vmatprep.subr.bf16.mxu0 %v4046
    %4887 = vmatpush1.bf16.msra.mxu0 %v4045
    %4888 = vmatprep.subr.bf16.mxu0 %v4053
    %4889 = vmatpush1.bf16.msra.mxu0 %v4052
    %4890 = vmatprep.subr.bf16.mxu0 %v4060
    %4891 = vmatpush1.bf16.msra.mxu0 %v4059
    %4892 = vmatprep.subr.bf16.mxu0 %v4067
    %4893 = vmatpush1.bf16.msra.mxu0 %v4066
    %4894 = vmatprep.subr.bf16.mxu0 %v4074
    %4895 = vmatpush1.bf16.msra.mxu0 %v4073
    %4896 = vmatprep.mubr.bf16.mxu0 %v2004
    %4897 = vmatmul.mubr.bf16.gmra.mrb[0].mxu0 %v2003
    %v4898 = vpop.f32.mrb[0].mxu0
    %v4899 = vadd.f32 %v2528, %v4898
    %v4900 = vpop.f32.mrb[0].mxu0
    %v4901 = vadd.f32 %v2532, %v4900
    %v4902 = vpop.f32.mrb[0].mxu0
    %v4903 = vpop.f32.mrb[0].mxu0
    %4904 = vdwg.mxu0
    %4905 = vmatprep.subr.bf16.mxu0 %v4081
    %4906 = vmatpush1.bf16.msra.mxu0 %v4080
    %4907 = vmatprep.subr.bf16.mxu0 %v4088
    %4908 = vmatpush1.bf16.msra.mxu0 %v4087
    %4909 = vmatprep.subr.bf16.mxu0 %v4095
    %4910 = vmatpush1.bf16.msra.mxu0 %v4094
    %4911 = vmatprep.subr.bf16.mxu0 %v4102
    %4912 = vmatpush1.bf16.msra.mxu0 %v4101
    %4913 = vmatprep.subr.bf16.mxu0 %v4109
    %4914 = vmatpush1.bf16.msra.mxu0 %v4108
    %4915 = vmatprep.subr.bf16.mxu0 %v4116
    %4916 = vmatpush1.bf16.msra.mxu0 %v4115
    %4917 = vmatprep.subr.bf16.mxu0 %v4123
    %4918 = vmatpush1.bf16.msra.mxu0 %v4122
    %4919 = vmatprep.subr.bf16.mxu0 %v4130
    %4920 = vmatpush1.bf16.msra.mxu0 %v4129
    %4921 = vmatprep.subr.bf16.mxu0 %v4137
    %4922 = vmatpush1.bf16.msra.mxu0 %v4136
    %4923 = vmatprep.subr.bf16.mxu0 %v4144
    %4924 = vmatpush1.bf16.msra.mxu0 %v4143
    %4925 = vmatprep.subr.bf16.mxu0 %v4151
    %4926 = vmatpush1.bf16.msra.mxu0 %v4150
    %4927 = vmatprep.subr.bf16.mxu0 %v4158
    %4928 = vmatpush1.bf16.msra.mxu0 %v4157
    %4929 = vmatprep.subr.bf16.mxu0 %v4165
    %4930 = vmatpush1.bf16.msra.mxu0 %v4164
    %4931 = vmatprep.subr.bf16.mxu0 %v4172
    %4932 = vmatpush1.bf16.msra.mxu0 %v4171
    %4933 = vmatprep.subr.bf16.mxu0 %v4179
    %4934 = vmatpush1.bf16.msra.mxu0 %v4178
    %4935 = vmatprep.subr.bf16.mxu0 %v4186
    %4936 = vmatpush1.bf16.msra.mxu0 %v4185
    %4937 = vmatprep.mubr.bf16.mxu0 %v2006
    %4938 = vmatmul.mubr.bf16.gmra.mrb[0].mxu0 %v2005
    %v4939 = vpop.f32.mrb[0].mxu0
    %v4940 = vadd.f32 %v4899, %v4939
    %v4941 = vpop.f32.mrb[0].mxu0
    %v4942 = vadd.f32 %v4901, %v4941
    %v4943 = vpop.f32.mrb[0].mxu0
    %v4944 = vpop.f32.mrb[0].mxu0
    %4945 = vdwg.mxu0
    %4946 = vmatprep.subr.bf16.mxu0 %v4193
    %4947 = vmatpush1.bf16.msra.mxu0 %v4192
    %4948 = vmatprep.subr.bf16.mxu0 %v4200
    %4949 = vmatpush1.bf16.msra.mxu0 %v4199
    %4950 = vmatprep.subr.bf16.mxu0 %v4207
    %4951 = vmatpush1.bf16.msra.mxu0 %v4206
    %4952 = vmatprep.subr.bf16.mxu0 %v4214
    %4953 = vmatpush1.bf16.msra.mxu0 %v4213
    %4954 = vmatprep.subr.bf16.mxu0 %v4221
    %4955 = vmatpush1.bf16.msra.mxu0 %v4220
    %4956 = vmatprep.subr.bf16.mxu0 %v4228
    %4957 = vmatpush1.bf16.msra.mxu0 %v4227
    %4958 = vmatprep.subr.bf16.mxu0 %v4235
    %4959 = vmatpush1.bf16.msra.mxu0 %v4234
    %4960 = vmatprep.subr.bf16.mxu0 %v4242
    %4961 = vmatpush1.bf16.msra.mxu0 %v4241
    %4962 = vmatprep.subr.bf16.mxu0 %v4249
    %4963 = vmatpush1.bf16.msra.mxu0 %v4248
    %4964 = vmatprep.subr.bf16.mxu0 %v4256
    %4965 = vmatpush1.bf16.msra.mxu0 %v4255
    %4966 = vmatprep.subr.bf16.mxu0 %v4263
    %4967 = vmatpush1.bf16.msra.mxu0 %v4262
    %4968 = vmatprep.subr.bf16.mxu0 %v4270
    %4969 = vmatpush1.bf16.msra.mxu0 %v4269
    %4970 = vmatprep.subr.bf16.mxu0 %v4277
    %4971 = vmatpush1.bf16.msra.mxu0 %v4276
    %4972 = vmatprep.subr.bf16.mxu0 %v4284
    %4973 = vmatpush1.bf16.msra.mxu0 %v4283
    %4974 = vmatprep.subr.bf16.mxu0 %v4291
    %4975 = vmatpush1.bf16.msra.mxu0 %v4290
    %4976 = vmatprep.subr.bf16.mxu0 %v4298
    %4977 = vmatpush1.bf16.msra.mxu0 %v4297
    %4978 = vmatprep.mubr.bf16.mxu0 %v2008
    %4979 = vmatmul.mubr.bf16.gmra.mrb[0].mxu0 %v2007
    %v4980 = vpop.f32.mrb[0].mxu0
    %v4981 = vadd.f32 %v4940, %v4980
    %v4982 = vpop.f32.mrb[0].mxu0
    %v4983 = vadd.f32 %v4942, %v4982
    %v4984 = vpop.f32.mrb[0].mxu0
    %v4985 = vpop.f32.mrb[0].mxu0
    %4986 = vdwg.mxu0
    %4987 = vmatprep.subr.bf16.mxu0 %v4305
    %4988 = vmatpush1.bf16.msra.mxu0 %v4304
    %4989 = vmatprep.subr.bf16.mxu0 %v4312
    %4990 = vmatpush1.bf16.msra.mxu0 %v4311
    %4991 = vmatprep.subr.bf16.mxu0 %v4319
    %4992 = vmatpush1.bf16.msra.mxu0 %v4318
    %4993 = vmatprep.subr.bf16.mxu0 %v4326
    %4994 = vmatpush1.bf16.msra.mxu0 %v4325
    %4995 = vmatprep.subr.bf16.mxu0 %v4333
    %4996 = vmatpush1.bf16.msra.mxu0 %v4332
    %4997 = vmatprep.subr.bf16.mxu0 %v4340
    %4998 = vmatpush1.bf16.msra.mxu0 %v4339
    %4999 = vmatprep.subr.bf16.mxu0 %v4347
    %5000 = vmatpush1.bf16.msra.mxu0 %v4346
    %5001 = vmatprep.subr.bf16.mxu0 %v4354
    %5002 = vmatpush1.bf16.msra.mxu0 %v4353
    %5003 = vmatprep.subr.bf16.mxu0 %v4361
    %5004 = vmatpush1.bf16.msra.mxu0 %v4360
    %5005 = vmatprep.subr.bf16.mxu0 %v4368
    %5006 = vmatpush1.bf16.msra.mxu0 %v4367
    %5007 = vmatprep.subr.bf16.mxu0 %v4375
    %5008 = vmatpush1.bf16.msra.mxu0 %v4374
    %5009 = vmatprep.subr.bf16.mxu0 %v4382
    %5010 = vmatpush1.bf16.msra.mxu0 %v4381
    %5011 = vmatprep.subr.bf16.mxu0 %v4389
    %5012 = vmatpush1.bf16.msra.mxu0 %v4388
    %5013 = vmatprep.subr.bf16.mxu0 %v4396
    %5014 = vmatpush1.bf16.msra.mxu0 %v4395
    %5015 = vmatprep.subr.bf16.mxu0 %v4403
    %5016 = vmatpush1.bf16.msra.mxu0 %v4402
    %5017 = vmatprep.subr.bf16.mxu0 %v4410
    %5018 = vmatpush1.bf16.msra.mxu0 %v4409
    %5019 = vmatprep.mubr.bf16.mxu0 %v2010
    %5020 = vmatmul.mubr.bf16.gmra.mrb[0].mxu0 %v2009
    %v5021 = vpop.f32.mrb[0].mxu0
    %v5022 = vadd.f32 %v4981, %v5021
    %v5023 = vpop.f32.mrb[0].mxu0
    %v5024 = vadd.f32 %v4983, %v5023
    %v5025 = vpop.f32.mrb[0].mxu0
    %v5026 = vpop.f32.mrb[0].mxu0
    %5027 = vdwg.mxu0
    %5028 = vmatprep.subr.bf16.mxu0 %v3971
    %5029 = vmatpush1.bf16.msra.mxu0 %v3970
    %5030 = vmatprep.subr.bf16.mxu0 %v3978
    %5031 = vmatpush1.bf16.msra.mxu0 %v3977
    %5032 = vmatprep.subr.bf16.mxu0 %v3985
    %5033 = vmatpush1.bf16.msra.mxu0 %v3984
    %5034 = vmatprep.subr.bf16.mxu0 %v3992
    %5035 = vmatpush1.bf16.msra.mxu0 %v3991
    %5036 = vmatprep.subr.bf16.mxu0 %v3999
    %5037 = vmatpush1.bf16.msra.mxu0 %v3998
    %5038 = vmatprep.subr.bf16.mxu0 %v4006
    %5039 = vmatpush1.bf16.msra.mxu0 %v4005
    %5040 = vmatprep.subr.bf16.mxu0 %v4013
    %5041 = vmatpush1.bf16.msra.mxu0 %v4012
    %5042 = vmatprep.subr.bf16.mxu0 %v4020
    %5043 = vmatpush1.bf16.msra.mxu0 %v4019
    %5044 = vmatprep.subr.bf16.mxu0 %v4027
    %5045 = vmatpush1.bf16.msra.mxu0 %v4026
    %5046 = vmatprep.subr.bf16.mxu0 %v4034
    %5047 = vmatpush1.bf16.msra.mxu0 %v4033
    %5048 = vmatprep.subr.bf16.mxu0 %v4041
    %5049 = vmatpush1.bf16.msra.mxu0 %v4040
    %5050 = vmatprep.subr.bf16.mxu0 %v4048
    %5051 = vmatpush1.bf16.msra.mxu0 %v4047
    %5052 = vmatprep.subr.bf16.mxu0 %v4055
    %5053 = vmatpush1.bf16.msra.mxu0 %v4054
    %5054 = vmatprep.subr.bf16.mxu0 %v4062
    %5055 = vmatpush1.bf16.msra.mxu0 %v4061
    %5056 = vmatprep.subr.bf16.mxu0 %v4069
    %5057 = vmatpush1.bf16.msra.mxu0 %v4068
    %5058 = vmatprep.subr.bf16.mxu0 %v4076
    %5059 = vmatpush1.bf16.msra.mxu0 %v4075
    %5060 = vmatprep.mubr.bf16.mxu0 %v2004
    %5061 = vmatmul.mubr.bf16.gmra.mrb[0].mxu0 %v2003
    %v5062 = vpop.f32.mrb[0].mxu0
    %v5063 = vadd.f32 %v2536, %v5062
    %v5064 = vpop.f32.mrb[0].mxu0
    %v5065 = vadd.f32 %v2540, %v5064
    %v5066 = vpop.f32.mrb[0].mxu0
    %v5067 = vpop.f32.mrb[0].mxu0
    %5068 = vdwg.mxu0
    %5069 = vmatprep.subr.bf16.mxu0 %v4083
    %5070 = vmatpush1.bf16.msra.mxu0 %v4082
    %5071 = vmatprep.subr.bf16.mxu0 %v4090
    %5072 = vmatpush1.bf16.msra.mxu0 %v4089
    %5073 = vmatprep.subr.bf16.mxu0 %v4097
    %5074 = vmatpush1.bf16.msra.mxu0 %v4096
    %5075 = vmatprep.subr.bf16.mxu0 %v4104
    %5076 = vmatpush1.bf16.msra.mxu0 %v4103
    %5077 = vmatprep.subr.bf16.mxu0 %v4111
    %5078 = vmatpush1.bf16.msra.mxu0 %v4110
    %5079 = vmatprep.subr.bf16.mxu0 %v4118
    %5080 = vmatpush1.bf16.msra.mxu0 %v4117
    %5081 = vmatprep.subr.bf16.mxu0 %v4125
    %5082 = vmatpush1.bf16.msra.mxu0 %v4124
    %5083 = vmatprep.subr.bf16.mxu0 %v4132
    %5084 = vmatpush1.bf16.msra.mxu0 %v4131
    %5085 = vmatprep.subr.bf16.mxu0 %v4139
    %5086 = vmatpush1.bf16.msra.mxu0 %v4138
    %5087 = vmatprep.subr.bf16.mxu0 %v4146
    %5088 = vmatpush1.bf16.msra.mxu0 %v4145
    %5089 = vmatprep.subr.bf16.mxu0 %v4153
    %5090 = vmatpush1.bf16.msra.mxu0 %v4152
    %5091 = vmatprep.subr.bf16.mxu0 %v4160
    %5092 = vmatpush1.bf16.msra.mxu0 %v4159
    %5093 = vmatprep.subr.bf16.mxu0 %v4167
    %5094 = vmatpush1.bf16.msra.mxu0 %v4166
    %5095 = vmatprep.subr.bf16.mxu0 %v4174
    %5096 = vmatpush1.bf16.msra.mxu0 %v4173
    %5097 = vmatprep.subr.bf16.mxu0 %v4181
    %5098 = vmatpush1.bf16.msra.mxu0 %v4180
    %5099 = vmatprep.subr.bf16.mxu0 %v4188
    %5100 = vmatpush1.bf16.msra.mxu0 %v4187
    %5101 = vmatprep.mubr.bf16.mxu0 %v2006
    %5102 = vmatmul.mubr.bf16.gmra.mrb[0].mxu0 %v2005
    %v5103 = vpop.f32.mrb[0].mxu0
    %v5104 = vadd.f32 %v5063, %v5103
    %v5105 = vpop.f32.mrb[0].mxu0
    %v5106 = vadd.f32 %v5065, %v5105
    %v5107 = vpop.f32.mrb[0].mxu0
    %v5108 = vpop.f32.mrb[0].mxu0
    %5109 = vdwg.mxu0
    %5110 = vmatprep.subr.bf16.mxu0 %v4195
    %5111 = vmatpush1.bf16.msra.mxu0 %v4194
    %5112 = vmatprep.subr.bf16.mxu0 %v4202
    %5113 = vmatpush1.bf16.msra.mxu0 %v4201
    %5114 = vmatprep.subr.bf16.mxu0 %v4209
    %5115 = vmatpush1.bf16.msra.mxu0 %v4208
    %5116 = vmatprep.subr.bf16.mxu0 %v4216
    %5117 = vmatpush1.bf16.msra.mxu0 %v4215
    %5118 = vmatprep.subr.bf16.mxu0 %v4223
    %5119 = vmatpush1.bf16.msra.mxu0 %v4222
    %5120 = vmatprep.subr.bf16.mxu0 %v4230
    %5121 = vmatpush1.bf16.msra.mxu0 %v4229
    %5122 = vmatprep.subr.bf16.mxu0 %v4237
    %5123 = vmatpush1.bf16.msra.mxu0 %v4236
    %5124 = vmatprep.subr.bf16.mxu0 %v4244
    %5125 = vmatpush1.bf16.msra.mxu0 %v4243
    %5126 = vmatprep.subr.bf16.mxu0 %v4251
    %5127 = vmatpush1.bf16.msra.mxu0 %v4250
    %5128 = vmatprep.subr.bf16.mxu0 %v4258
    %5129 = vmatpush1.bf16.msra.mxu0 %v4257
    %5130 = vmatprep.subr.bf16.mxu0 %v4265
    %5131 = vmatpush1.bf16.msra.mxu0 %v4264
    %5132 = vmatprep.subr.bf16.mxu0 %v4272
    %5133 = vmatpush1.bf16.msra.mxu0 %v4271
    %5134 = vmatprep.subr.bf16.mxu0 %v4279
    %5135 = vmatpush1.bf16.msra.mxu0 %v4278
    %5136 = vmatprep.subr.bf16.mxu0 %v4286
    %5137 = vmatpush1.bf16.msra.mxu0 %v4285
    %5138 = vmatprep.subr.bf16.mxu0 %v4293
    %5139 = vmatpush1.bf16.msra.mxu0 %v4292
    %5140 = vmatprep.subr.bf16.mxu0 %v4300
    %5141 = vmatpush1.bf16.msra.mxu0 %v4299
    %5142 = vmatprep.mubr.bf16.mxu0 %v2008
    %5143 = vmatmul.mubr.bf16.gmra.mrb[0].mxu0 %v2007
    %v5144 = vpop.f32.mrb[0].mxu0
    %v5145 = vadd.f32 %v5104, %v5144
    %v5146 = vpop.f32.mrb[0].mxu0
    %v5147 = vadd.f32 %v5106, %v5146
    %v5148 = vpop.f32.mrb[0].mxu0
    %v5149 = vpop.f32.mrb[0].mxu0
    %5150 = vdwg.mxu0
    %5151 = vmatprep.subr.bf16.mxu0 %v4307
    %5152 = vmatpush1.bf16.msra.mxu0 %v4306
    %5153 = vmatprep.subr.bf16.mxu0 %v4314
    %5154 = vmatpush1.bf16.msra.mxu0 %v4313
    %5155 = vmatprep.subr.bf16.mxu0 %v4321
    %5156 = vmatpush1.bf16.msra.mxu0 %v4320
    %5157 = vmatprep.subr.bf16.mxu0 %v4328
    %5158 = vmatpush1.bf16.msra.mxu0 %v4327
    %5159 = vmatprep.subr.bf16.mxu0 %v4335
    %5160 = vmatpush1.bf16.msra.mxu0 %v4334
    %5161 = vmatprep.subr.bf16.mxu0 %v4342
    %5162 = vmatpush1.bf16.msra.mxu0 %v4341
    %5163 = vmatprep.subr.bf16.mxu0 %v4349
    %5164 = vmatpush1.bf16.msra.mxu0 %v4348
    %5165 = vmatprep.subr.bf16.mxu0 %v4356
    %5166 = vmatpush1.bf16.msra.mxu0 %v4355
    %5167 = vmatprep.subr.bf16.mxu0 %v4363
    %5168 = vmatpush1.bf16.msra.mxu0 %v4362
    %5169 = vmatprep.subr.bf16.mxu0 %v4370
    %5170 = vmatpush1.bf16.msra.mxu0 %v4369
    %5171 = vmatprep.subr.bf16.mxu0 %v4377
    %5172 = vmatpush1.bf16.msra.mxu0 %v4376
    %5173 = vmatprep.subr.bf16.mxu0 %v4384
    %5174 = vmatpush1.bf16.msra.mxu0 %v4383
    %5175 = vmatprep.subr.bf16.mxu0 %v4391
    %5176 = vmatpush1.bf16.msra.mxu0 %v4390
    %5177 = vmatprep.subr.bf16.mxu0 %v4398
    %5178 = vmatpush1.bf16.msra.mxu0 %v4397
    %5179 = vmatprep.subr.bf16.mxu0 %v4405
    %5180 = vmatpush1.bf16.msra.mxu0 %v4404
    %5181 = vmatprep.subr.bf16.mxu0 %v4412
    %5182 = vmatpush1.bf16.msra.mxu0 %v4411
    %5183 = vmatprep.mubr.bf16.mxu0 %v2010
    %5184 = vmatmul.mubr.bf16.gmra.mrb[0].mxu0 %v2009
    %v5185 = vpop.f32.mrb[0].mxu0
    %v5186 = vadd.f32 %v5145, %v5185
    %v5187 = vpop.f32.mrb[0].mxu0
    %v5188 = vadd.f32 %v5147, %v5187
    %v5189 = vpop.f32.mrb[0].mxu0
    %v5190 = vpop.f32.mrb[0].mxu0
    %5191 = vdwg.mxu0
    %5192 = vmatprep.subr.bf16.mxu0 %v3973
    %5193 = vmatpush1.bf16.msra.mxu0 %v3972
    %5194 = vmatprep.subr.bf16.mxu0 %v3980
    %5195 = vmatpush1.bf16.msra.mxu0 %v3979
    %5196 = vmatprep.subr.bf16.mxu0 %v3987
    %5197 = vmatpush1.bf16.msra.mxu0 %v3986
    %5198 = vmatprep.subr.bf16.mxu0 %v3994
    %5199 = vmatpush1.bf16.msra.mxu0 %v3993
    %5200 = vmatprep.subr.bf16.mxu0 %v4001
    %5201 = vmatpush1.bf16.msra.mxu0 %v4000
    %5202 = vmatprep.subr.bf16.mxu0 %v4008
    %5203 = vmatpush1.bf16.msra.mxu0 %v4007
    %5204 = vmatprep.subr.bf16.mxu0 %v4015
    %5205 = vmatpush1.bf16.msra.mxu0 %v4014
    %5206 = vmatprep.subr.bf16.mxu0 %v4022
    %5207 = vmatpush1.bf16.msra.mxu0 %v4021
    %5208 = vmatprep.subr.bf16.mxu0 %v4029
    %5209 = vmatpush1.bf16.msra.mxu0 %v4028
    %5210 = vmatprep.subr.bf16.mxu0 %v4036
    %5211 = vmatpush1.bf16.msra.mxu0 %v4035
    %5212 = vmatprep.subr.bf16.mxu0 %v4043
    %5213 = vmatpush1.bf16.msra.mxu0 %v4042
    %5214 = vmatprep.subr.bf16.mxu0 %v4050
    %5215 = vmatpush1.bf16.msra.mxu0 %v4049
    %5216 = vmatprep.subr.bf16.mxu0 %v4057
    %5217 = vmatpush1.bf16.msra.mxu0 %v4056
    %5218 = vmatprep.subr.bf16.mxu0 %v4064
    %5219 = vmatpush1.bf16.msra.mxu0 %v4063
    %5220 = vmatprep.subr.bf16.mxu0 %v4071
    %5221 = vmatpush1.bf16.msra.mxu0 %v4070
    %5222 = vmatprep.subr.bf16.mxu0 %v4078
    %5223 = vmatpush1.bf16.msra.mxu0 %v4077
    %5224 = vmatprep.mubr.bf16.mxu0 %v2004
    %5225 = vmatmul.mubr.bf16.gmra.mrb[0].mxu0 %v2003
    %v5226 = vpop.f32.mrb[0].mxu0
    %v5227 = vadd.f32 %v2544, %v5226
    %v5228 = vpop.f32.mrb[0].mxu0
    %v5229 = vadd.f32 %v2548, %v5228
    %v5230 = vpop.f32.mrb[0].mxu0
    %v5231 = vpop.f32.mrb[0].mxu0
    %5232 = vdwg.mxu0
    %5233 = vmatprep.subr.bf16.mxu0 %v4085
    %5234 = vmatpush1.bf16.msra.mxu0 %v4084
    %5235 = vmatprep.subr.bf16.mxu0 %v4092
    %5236 = vmatpush1.bf16.msra.mxu0 %v4091
    %5237 = vmatprep.subr.bf16.mxu0 %v4099
    %5238 = vmatpush1.bf16.msra.mxu0 %v4098
    %5239 = vmatprep.subr.bf16.mxu0 %v4106
    %5240 = vmatpush1.bf16.msra.mxu0 %v4105
    %5241 = vmatprep.subr.bf16.mxu0 %v4113
    %5242 = vmatpush1.bf16.msra.mxu0 %v4112
    %5243 = vmatprep.subr.bf16.mxu0 %v4120
    %5244 = vmatpush1.bf16.msra.mxu0 %v4119
    %5245 = vmatprep.subr.bf16.mxu0 %v4127
    %5246 = vmatpush1.bf16.msra.mxu0 %v4126
    %5247 = vmatprep.subr.bf16.mxu0 %v4134
    %5248 = vmatpush1.bf16.msra.mxu0 %v4133
    %5249 = vmatprep.subr.bf16.mxu0 %v4141
    %5250 = vmatpush1.bf16.msra.mxu0 %v4140
    %5251 = vmatprep.subr.bf16.mxu0 %v4148
    %5252 = vmatpush1.bf16.msra.mxu0 %v4147
    %5253 = vmatprep.subr.bf16.mxu0 %v4155
    %5254 = vmatpush1.bf16.msra.mxu0 %v4154
    %5255 = vmatprep.subr.bf16.mxu0 %v4162
    %5256 = vmatpush1.bf16.msra.mxu0 %v4161
    %5257 = vmatprep.subr.bf16.mxu0 %v4169
    %5258 = vmatpush1.bf16.msra.mxu0 %v4168
    %5259 = vmatprep.subr.bf16.mxu0 %v4176
    %5260 = vmatpush1.bf16.msra.mxu0 %v4175
    %5261 = vmatprep.subr.bf16.mxu0 %v4183
    %5262 = vmatpush1.bf16.msra.mxu0 %v4182
    %5263 = vmatprep.subr.bf16.mxu0 %v4190
    %5264 = vmatpush1.bf16.msra.mxu0 %v4189
    %5265 = vmatprep.mubr.bf16.mxu0 %v2006
    %5266 = vmatmul.mubr.bf16.gmra.mrb[0].mxu0 %v2005
    %v5267 = vpop.f32.mrb[0].mxu0
    %v5268 = vadd.f32 %v5227, %v5267
    %v5269 = vpop.f32.mrb[0].mxu0
    %v5270 = vadd.f32 %v5229, %v5269
    %v5271 = vpop.f32.mrb[0].mxu0
    %v5272 = vpop.f32.mrb[0].mxu0
    %5273 = vdwg.mxu0
    %5274 = vmatprep.subr.bf16.mxu0 %v4197
    %5275 = vmatpush1.bf16.msra.mxu0 %v4196
    %5276 = vmatprep.subr.bf16.mxu0 %v4204
    %5277 = vmatpush1.bf16.msra.mxu0 %v4203
    %5278 = vmatprep.subr.bf16.mxu0 %v4211
    %5279 = vmatpush1.bf16.msra.mxu0 %v4210
    %5280 = vmatprep.subr.bf16.mxu0 %v4218
    %5281 = vmatpush1.bf16.msra.mxu0 %v4217
    %5282 = vmatprep.subr.bf16.mxu0 %v4225
    %5283 = vmatpush1.bf16.msra.mxu0 %v4224
    %5284 = vmatprep.subr.bf16.mxu0 %v4232
    %5285 = vmatpush1.bf16.msra.mxu0 %v4231
    %5286 = vmatprep.subr.bf16.mxu0 %v4239
    %5287 = vmatpush1.bf16.msra.mxu0 %v4238
    %5288 = vmatprep.subr.bf16.mxu0 %v4246
    %5289 = vmatpush1.bf16.msra.mxu0 %v4245
    %5290 = vmatprep.subr.bf16.mxu0 %v4253
    %5291 = vmatpush1.bf16.msra.mxu0 %v4252
    %5292 = vmatprep.subr.bf16.mxu0 %v4260
    %5293 = vmatpush1.bf16.msra.mxu0 %v4259
    %5294 = vmatprep.subr.bf16.mxu0 %v4267
    %5295 = vmatpush1.bf16.msra.mxu0 %v4266
    %5296 = vmatprep.subr.bf16.mxu0 %v4274
    %5297 = vmatpush1.bf16.msra.mxu0 %v4273
    %5298 = vmatprep.subr.bf16.mxu0 %v4281
    %5299 = vmatpush1.bf16.msra.mxu0 %v4280
    %5300 = vmatprep.subr.bf16.mxu0 %v4288
    %5301 = vmatpush1.bf16.msra.mxu0 %v4287
    %5302 = vmatprep.subr.bf16.mxu0 %v4295
    %5303 = vmatpush1.bf16.msra.mxu0 %v4294
    %5304 = vmatprep.subr.bf16.mxu0 %v4302
    %5305 = vmatpush1.bf16.msra.mxu0 %v4301
    %5306 = vmatprep.mubr.bf16.mxu0 %v2008
    %5307 = vmatmul.mubr.bf16.gmra.mrb[0].mxu0 %v2007
    %v5308 = vpop.f32.mrb[0].mxu0
    %v5309 = vadd.f32 %v5268, %v5308
    %v5310 = vpop.f32.mrb[0].mxu0
    %v5311 = vadd.f32 %v5270, %v5310
    %v5312 = vpop.f32.mrb[0].mxu0
    %v5313 = vpop.f32.mrb[0].mxu0
    %5314 = vdwg.mxu0
    %5315 = vmatprep.subr.bf16.mxu0 %v4309
    %5316 = vmatpush1.bf16.msra.mxu0 %v4308
    %5317 = vmatprep.subr.bf16.mxu0 %v4316
    %5318 = vmatpush1.bf16.msra.mxu0 %v4315
    %5319 = vmatprep.subr.bf16.mxu0 %v4323
    %5320 = vmatpush1.bf16.msra.mxu0 %v4322
    %5321 = vmatprep.subr.bf16.mxu0 %v4330
    %5322 = vmatpush1.bf16.msra.mxu0 %v4329
    %5323 = vmatprep.subr.bf16.mxu0 %v4337
    %5324 = vmatpush1.bf16.msra.mxu0 %v4336
    %5325 = vmatprep.subr.bf16.mxu0 %v4344
    %5326 = vmatpush1.bf16.msra.mxu0 %v4343
    %5327 = vmatprep.subr.bf16.mxu0 %v4351
    %5328 = vmatpush1.bf16.msra.mxu0 %v4350
    %5329 = vmatprep.subr.bf16.mxu0 %v4358
    %5330 = vmatpush1.bf16.msra.mxu0 %v4357
    %5331 = vmatprep.subr.bf16.mxu0 %v4365
    %5332 = vmatpush1.bf16.msra.mxu0 %v4364
    %5333 = vmatprep.subr.bf16.mxu0 %v4372
    %5334 = vmatpush1.bf16.msra.mxu0 %v4371
    %5335 = vmatprep.subr.bf16.mxu0 %v4379
    %5336 = vmatpush1.bf16.msra.mxu0 %v4378
    %5337 = vmatprep.subr.bf16.mxu0 %v4386
    %5338 = vmatpush1.bf16.msra.mxu0 %v4385
    %5339 = vmatprep.subr.bf16.mxu0 %v4393
    %5340 = vmatpush1.bf16.msra.mxu0 %v4392
    %5341 = vmatprep.subr.bf16.mxu0 %v4400
    %5342 = vmatpush1.bf16.msra.mxu0 %v4399
    %5343 = vmatprep.subr.bf16.mxu0 %v4407
    %5344 = vmatpush1.bf16.msra.mxu0 %v4406
    %5345 = vmatprep.subr.bf16.mxu0 %v4414
    %5346 = vmatpush1.bf16.msra.mxu0 %v4413
    %5347 = vmatprep.mubr.bf16.mxu0 %v2010
    %5348 = vmatmul.mubr.bf16.gmra.mrb[0].mxu0 %v2009
    %v5349 = vpop.f32.mrb[0].mxu0
    %v5350 = vadd.f32 %v5309, %v5349
    %v5351 = vpop.f32.mrb[0].mxu0
    %v5352 = vadd.f32 %v5311, %v5351
    %v5353 = vpop.f32.mrb[0].mxu0
    %v5354 = vpop.f32.mrb[0].mxu0
    %5355 = vdwg.mxu0
    %5356 = vmatprep.subr.bf16.mxu0 0
    %5357 = vmatpush1.bf16.msra.mxu0 %v3974
    %5358 = vmatprep.subr.bf16.mxu0 0
    %5359 = vmatpush1.bf16.msra.mxu0 %v3981
    %5360 = vmatprep.subr.bf16.mxu0 0
    %5361 = vmatpush1.bf16.msra.mxu0 %v3988
    %5362 = vmatprep.subr.bf16.mxu0 0
    %5363 = vmatpush1.bf16.msra.mxu0 %v3995
    %5364 = vmatprep.subr.bf16.mxu0 0
    %5365 = vmatpush1.bf16.msra.mxu0 %v4002
    %5366 = vmatprep.subr.bf16.mxu0 0
    %5367 = vmatpush1.bf16.msra.mxu0 %v4009
    %5368 = vmatprep.subr.bf16.mxu0 0
    %5369 = vmatpush1.bf16.msra.mxu0 %v4016
    %5370 = vmatprep.subr.bf16.mxu0 0
    %5371 = vmatpush1.bf16.msra.mxu0 %v4023
    %5372 = vmatprep.subr.bf16.mxu0 0
    %5373 = vmatpush1.bf16.msra.mxu0 %v4030
    %5374 = vmatprep.subr.bf16.mxu0 0
    %5375 = vmatpush1.bf16.msra.mxu0 %v4037
    %5376 = vmatprep.subr.bf16.mxu0 0
    %5377 = vmatpush1.bf16.msra.mxu0 %v4044
    %5378 = vmatprep.subr.bf16.mxu0 0
    %5379 = vmatpush1.bf16.msra.mxu0 %v4051
    %5380 = vmatprep.subr.bf16.mxu0 0
    %5381 = vmatpush1.bf16.msra.mxu0 %v4058
    %5382 = vmatprep.subr.bf16.mxu0 0
    %5383 = vmatpush1.bf16.msra.mxu0 %v4065
    %5384 = vmatprep.subr.bf16.mxu0 0
    %5385 = vmatpush1.bf16.msra.mxu0 %v4072
    %5386 = vmatprep.subr.bf16.mxu0 0
    %5387 = vmatpush1.bf16.msra.mxu0 %v4079
    %5388 = vmatprep.mubr.bf16.mxu0 %v2004
    %5389 = vmatmul.mubr.bf16.gmra.mrb[0].mxu0 %v2003
    %v5390 = vpop.f32.mrb[0].mxu0
    %v5391 = vadd.f32 %v2552, %v5390
    %v5392 = vpop.f32.mrb[0].mxu0
    %v5393 = vpop.f32.mrb[0].mxu0
    %v5394 = vpop.f32.mrb[0].mxu0
    %5395 = vdwg.mxu0
    %5396 = vmatprep.subr.bf16.mxu0 0
    %5397 = vmatpush1.bf16.msra.mxu0 %v4086
    %5398 = vmatprep.subr.bf16.mxu0 0
    %5399 = vmatpush1.bf16.msra.mxu0 %v4093
    %5400 = vmatprep.subr.bf16.mxu0 0
    %5401 = vmatpush1.bf16.msra.mxu0 %v4100
    %5402 = vmatprep.subr.bf16.mxu0 0
    %5403 = vmatpush1.bf16.msra.mxu0 %v4107
    %5404 = vmatprep.subr.bf16.mxu0 0
    %5405 = vmatpush1.bf16.msra.mxu0 %v4114
    %5406 = vmatprep.subr.bf16.mxu0 0
    %5407 = vmatpush1.bf16.msra.mxu0 %v4121
    %5408 = vmatprep.subr.bf16.mxu0 0
    %5409 = vmatpush1.bf16.msra.mxu0 %v4128
    %5410 = vmatprep.subr.bf16.mxu0 0
    %5411 = vmatpush1.bf16.msra.mxu0 %v4135
    %5412 = vmatprep.subr.bf16.mxu0 0
    %5413 = vmatpush1.bf16.msra.mxu0 %v4142
    %5414 = vmatprep.subr.bf16.mxu0 0
    %5415 = vmatpush1.bf16.msra.mxu0 %v4149
    %5416 = vmatprep.subr.bf16.mxu0 0
    %5417 = vmatpush1.bf16.msra.mxu0 %v4156
    %5418 = vmatprep.subr.bf16.mxu0 0
    %5419 = vmatpush1.bf16.msra.mxu0 %v4163
    %5420 = vmatprep.subr.bf16.mxu0 0
    %5421 = vmatpush1.bf16.msra.mxu0 %v4170
    %5422 = vmatprep.subr.bf16.mxu0 0
    %5423 = vmatpush1.bf16.msra.mxu0 %v4177
    %5424 = vmatprep.subr.bf16.mxu0 0
    %5425 = vmatpush1.bf16.msra.mxu0 %v4184
    %5426 = vmatprep.subr.bf16.mxu0 0
    %5427 = vmatpush1.bf16.msra.mxu0 %v4191
    %5428 = vmatprep.mubr.bf16.mxu0 %v2006
    %5429 = vmatmul.mubr.bf16.gmra.mrb[0].mxu0 %v2005
    %v5430 = vpop.f32.mrb[0].mxu0
    %v5431 = vadd.f32 %v5391, %v5430
    %v5432 = vpop.f32.mrb[0].mxu0
    %v5433 = vpop.f32.mrb[0].mxu0
    %v5434 = vpop.f32.mrb[0].mxu0
    %5435 = vdwg.mxu0
    %5436 = vmatprep.subr.bf16.mxu0 0
    %5437 = vmatpush1.bf16.msra.mxu0 %v4198
    %5438 = vmatprep.subr.bf16.mxu0 0
    %5439 = vmatpush1.bf16.msra.mxu0 %v4205
    %5440 = vmatprep.subr.bf16.mxu0 0
    %5441 = vmatpush1.bf16.msra.mxu0 %v4212
    %5442 = vmatprep.subr.bf16.mxu0 0
    %5443 = vmatpush1.bf16.msra.mxu0 %v4219
    %5444 = vmatprep.subr.bf16.mxu0 0
    %5445 = vmatpush1.bf16.msra.mxu0 %v4226
    %5446 = vmatprep.subr.bf16.mxu0 0
    %5447 = vmatpush1.bf16.msra.mxu0 %v4233
    %5448 = vmatprep.subr.bf16.mxu0 0
    %5449 = vmatpush1.bf16.msra.mxu0 %v4240
    %5450 = vmatprep.subr.bf16.mxu0 0
    %5451 = vmatpush1.bf16.msra.mxu0 %v4247
    %5452 = vmatprep.subr.bf16.mxu0 0
    %5453 = vmatpush1.bf16.msra.mxu0 %v4254
    %5454 = vmatprep.subr.bf16.mxu0 0
    %5455 = vmatpush1.bf16.msra.mxu0 %v4261
    %5456 = vmatprep.subr.bf16.mxu0 0
    %5457 = vmatpush1.bf16.msra.mxu0 %v4268
    %5458 = vmatprep.subr.bf16.mxu0 0
    %5459 = vmatpush1.bf16.msra.mxu0 %v4275
    %5460 = vmatprep.subr.bf16.mxu0 0
    %5461 = vmatpush1.bf16.msra.mxu0 %v4282
    %5462 = vmatprep.subr.bf16.mxu0 0
    %5463 = vmatpush1.bf16.msra.mxu0 %v4289
    %5464 = vmatprep.subr.bf16.mxu0 0
    %5465 = vmatpush1.bf16.msra.mxu0 %v4296
    %5466 = vmatprep.subr.bf16.mxu0 0
    %5467 = vmatpush1.bf16.msra.mxu0 %v4303
    %5468 = vmatprep.mubr.bf16.mxu0 %v2008
    %5469 = vmatmul.mubr.bf16.gmra.mrb[0].mxu0 %v2007
    %v5470 = vpop.f32.mrb[0].mxu0
    %v5471 = vadd.f32 %v5431, %v5470
    %v5472 = vpop.f32.mrb[0].mxu0
    %v5473 = vpop.f32.mrb[0].mxu0
    %v5474 = vpop.f32.mrb[0].mxu0
    %5475 = vdwg.mxu0
    %5476 = vmatprep.subr.bf16.mxu0 0
    %5477 = vmatpush1.bf16.msra.mxu0 %v4310
    %5478 = vmatprep.subr.bf16.mxu0 0
    %5479 = vmatpush1.bf16.msra.mxu0 %v4317
    %5480 = vmatprep.subr.bf16.mxu0 0
    %5481 = vmatpush1.bf16.msra.mxu0 %v4324
    %5482 = vmatprep.subr.bf16.mxu0 0
    %5483 = vmatpush1.bf16.msra.mxu0 %v4331
    %5484 = vmatprep.subr.bf16.mxu0 0
    %5485 = vmatpush1.bf16.msra.mxu0 %v4338
    %5486 = vmatprep.subr.bf16.mxu0 0
    %5487 = vmatpush1.bf16.msra.mxu0 %v4345
    %5488 = vmatprep.subr.bf16.mxu0 0
    %5489 = vmatpush1.bf16.msra.mxu0 %v4352
    %5490 = vmatprep.subr.bf16.mxu0 0
    %5491 = vmatpush1.bf16.msra.mxu0 %v4359
    %5492 = vmatprep.subr.bf16.mxu0 0
    %5493 = vmatpush1.bf16.msra.mxu0 %v4366
    %5494 = vmatprep.subr.bf16.mxu0 0
    %5495 = vmatpush1.bf16.msra.mxu0 %v4373
    %5496 = vmatprep.subr.bf16.mxu0 0
    %5497 = vmatpush1.bf16.msra.mxu0 %v4380
    %5498 = vmatprep.subr.bf16.mxu0 0
    %5499 = vmatpush1.bf16.msra.mxu0 %v4387
    %5500 = vmatprep.subr.bf16.mxu0 0
    %5501 = vmatpush1.bf16.msra.mxu0 %v4394
    %5502 = vmatprep.subr.bf16.mxu0 0
    %5503 = vmatpush1.bf16.msra.mxu0 %v4401
    %5504 = vmatprep.subr.bf16.mxu0 0
    %5505 = vmatpush1.bf16.msra.mxu0 %v4408
    %5506 = vmatprep.subr.bf16.mxu0 0
    %5507 = vmatpush1.bf16.msra.mxu0 %v4415
    %5508 = vmatprep.mubr.bf16.mxu0 %v2010
    %5509 = vmatmul.mubr.bf16.gmra.mrb[0].mxu0 %v2009
    %v5510 = vpop.f32.mrb[0].mxu0
    %v5511 = vadd.f32 %v5471, %v5510
    %v5512 = vpop.f32.mrb[0].mxu0
    %v5513 = vpop.f32.mrb[0].mxu0
    %v5514 = vpop.f32.mrb[0].mxu0
    %5515 = vdwg.mxu0
    %5516 = vst [vmem:[#allocation10] sm:$0xff] %v5022
    %5517 = vst [vmem:[#allocation10 + $0x8] sm:$0xff] %v5024
    %5518 = vst [vmem:[#allocation10 + $0x10] sm:$0xff] %v5186
    %5519 = vst [vmem:[#allocation10 + $0x18] sm:$0xff] %v5188
    %5520 = vst [vmem:[#allocation10 + $0x20] sm:$0xff] %v5350
    %5521 = vst [vmem:[#allocation10 + $0x28] sm:$0xff] %v5352
    %5522 = vst [vmem:[#allocation10 + $0x30] sm:$0xff] %v5511
    // Predicated region
    $region38: #{_attacker_forward_impl.1} parent=1 // pred_check
      _
    $region39: #{_attacker_forward_impl.1} parent=1 // pred_check_branch
      %5524 = sbr.rel (0) target = $region41
    $region40: #{_attacker_forward_impl.1} parent=1 // pred_region
      %s5526 = ssub.s32 896, 896
      %5527 = vsyncadd [#allocation4], %s5526
      %s5529 = sshll.u32 [#allocation10], 4
      %s5530 = int_to_ptr.vmem [resolvable:$true] %s5529
      %5532 = dma.vmem_to_hbm [thread:$0]  %s5530, 896, %s5, [#allocation4]
    $region41: #{_attacker_forward_impl.1} parent=1 // pred_fallthru
      _
    // Predicated region
    $region42: #{_attacker_forward_impl.1} parent=1 // pred_check
      _
    $region43: #{_attacker_forward_impl.1} parent=1 // pred_check_branch
      %5534 = sbr.rel (0) target = $region45
    $region44: #{_attacker_forward_impl.1} parent=1 // pred_region
      %5535 = dma.done [#allocation4], 896
    $region45: #{_attacker_forward_impl.1} parent=1 // pred_fallthru
      _
    %5536 = vsyncpa [#allocation3], 1
    %5537 = vsyncpa [#allocation6], 1
    %5538 = vsyncpa [#allocation9], 1
    %5539 = vsyncpa [#allocation4], 1

</llo_original>
